<compile_context>
chip_gen: v6e
topology: v6e:2x2x1
jax: 0.10.0
libtpu: 0.0.40
codegen_flags: <defaults>
</compile_context>

<pallas_src>
import functools

import jax
import jax.numpy as jnp
from jax.experimental import pallas as pl
from jax.experimental.pallas import tpu as pltpu

LANES = 128  # pad small output dims to one full lane group


# ---------------- fused Pallas kernel (hot path) ----------------

def cnn_mlp_kernel(x_ref, wc_ref, bc_ref, w1_ref, b1_ref,
                   w2_ref, b2_ref, w3_ref, b3_ref, o_ref):
    # Conv1d(kernel_size=1) as a lane-dense channel-mix matmul:
    #   (L, C) @ (C, 128) -> (L, 128)   (full 128-lane output tile)
    y = jnp.dot(x_ref[...], wc_ref[...], preferred_element_type=jnp.float32)
    # ReLU; MaxPool1d(k=1) is identity; the second ReLU is idempotent -> dropped.
    y = jnp.maximum(y + bc_ref[...], 0.0)
    yb = y.astype(jnp.bfloat16)

    # flatten + fc_1 with no in-kernel relayout:
    #   torch: fc1[j] = sum_{o,l} conv[o,l] * w1[j, o*L+l]
    #   here : fc1[j] = sum_l  ( y[l,:] @ w1p[l] )[j]  with w1p[l,o,j] = w1[j, o*L+l]
    L = yb.shape[0]                      # static (== batch_size)
    acc = b1_ref[...]                    # (1, 1024) f32
    for l in range(L):                   # small static unrolled loop (L == 8)
        acc = acc + jnp.dot(yb[l:l + 1, :], w1_ref[l],
                            preferred_element_type=jnp.float32)
    h = jnp.maximum(acc, 0.0)
    # TODO(synk): nn.Dropout treated as inference-mode identity (training-mode
    # dropout would use pltpu.prng_seed / pltpu.prng_random_bits).

    # fc_2 (+ReLU), padded to 128 output lanes (padding columns are exact zeros)
    h = jnp.dot(h.astype(jnp.bfloat16), w2_ref[...],
                preferred_element_type=jnp.float32) + b2_ref[...]
    h = jnp.maximum(h, 0.0)

    # fc_3, padded to 128 output lanes; single unmasked (1,128) store
    o_ref[...] = jnp.dot(h.astype(jnp.bfloat16), w3_ref[...],
                         preferred_element_type=jnp.float32) + b3_ref[...]


# ---------------- wrapper-side weight plumbing ----------------

def prep_params(params, num_classes):
    """Permute / pad / downcast PyTorch-layout params for the fused kernel."""
    wc, bc, w1, b1, w2, b2, w3, b3 = params
    O, C = wc.shape                    # (cnn_out=128, batch)
    L = C                              # conv length forced equal to batch
    H1 = w1.shape[0]                   # 1024
    H2 = w2.shape[0]                   # 64
    NP = LANES

    wcT = wc.T.astype(jnp.float32)                         # (C, O)
    bc_row = bc.reshape(1, O).astype(jnp.float32)

    # w1p[l, o, j] = w1[j, o*L + l]  (matches torch flatten order of (O, L))
    w1p = jnp.transpose(w1.reshape(H1, O, L), (2, 1, 0)).astype(jnp.bfloat16)
    b1_row = b1.reshape(1, H1).astype(jnp.float32)

    # fc_2 / fc_3 zero-padded to 128 lane-dense outputs (padding is a no-op:
    # padded h2 entries are relu(0)=0 and the matching w3 rows are zero).
    w2p = jnp.zeros((H1, NP), jnp.bfloat16).at[:, :H2].set(w2.T.astype(jnp.bfloat16))
    b2p = jnp.zeros((1, NP), jnp.float32).at[:, :H2].set(b2)
    w3p = jnp.zeros((NP, NP), jnp.bfloat16).at[:H2, :num_classes].set(
        w3.T.astype(jnp.bfloat16))
    b3p = jnp.zeros((1, NP), jnp.float32).at[:, :num_classes].set(b3)

    return wcT, bc_row, w1p, b1_row, w2p, b2p, w3p, b3p


def _cost_estimate(L, O, H1, H2):
    flops = 2 * (L * L * O + L * O * H1 + H1 * LANES + LANES * LANES)
    bytes_accessed = (
        L * L * 4 + L * O * 4 + O * 4            # x, wc, bc
        + L * O * H1 * 2 + H1 * 4                # w1 (bf16), b1
        + H1 * LANES * 2 + LANES * 4             # w2 (bf16 padded), b2
        + LANES * LANES * 2 + LANES * 4          # w3 (bf16 padded), b3
        + LANES * 4)                             # output
    return pl.CostEstimate(flops=flops, transcendentals=0,
                           bytes_accessed=bytes_accessed)


@functools.partial(jax.jit, static_argnames=("num_classes",))
def cnn_batch_forward(x, prepped_params, num_classes):
    xT = jnp.asarray(x, jnp.float32).T                     # (L, C)
    L, C = xT.shape
    H1 = prepped_params[3].shape[1]
    in_specs = [pl.BlockSpec(memory_space=pltpu.MemorySpace.VMEM)
                for _ in range(1 + len(prepped_params))]
    out_pad = pl.pallas_call(
        cnn_mlp_kernel,
        out_shape=jax.ShapeDtypeStruct((1, LANES), jnp.float32),
        in_specs=in_specs,
        out_specs=pl.BlockSpec(memory_space=pltpu.MemorySpace.VMEM),
        cost_estimate=_cost_estimate(L, LANES, H1, 64),
    )(xT, *prepped_params)
    return out_pad[0, :num_classes]                         # torch returns (num_classes,)


# ---------------- deterministic param init (PyTorch-style uniform) ----------------

def init_params(key, batch_size, num_classes, cnn_out=128):
    ks = jax.random.split(key, 8)

    def unif(k, shape, fan_in):
        bound = 1.0 / jnp.sqrt(jnp.float32(fan_in))
        return jax.random.uniform(k, shape, jnp.float32, -bound, bound)

    wc = unif(ks[0], (cnn_out, batch_size), batch_size)     # Conv1d weight (k=1 squeezed)
    bc = unif(ks[1], (cnn_out,), batch_size)
    w1 = unif(ks[2], (1024, cnn_out * batch_size), cnn_out * batch_size)
    b1 = unif(ks[3], (1024,), cnn_out * batch_size)
    w2 = unif(ks[4], (64, 1024), 1024)
    b2 = unif(ks[5], (64,), 1024)
    w3 = unif(ks[6], (num_classes, 64), 64)
    b3 = unif(ks[7], (num_classes,), 64)
    return wc, bc, w1, b1, w2, b2, w3, b3


# ---------------- pure-JAX references ----------------

def reference_forward_f32(x, params):
    """Exact torch-semantics forward in f32 (loose-tolerance check)."""
    wc, bc, w1, b1, w2, b2, w3, b3 = params
    y = jnp.maximum(wc @ x + bc[:, None], 0.0)              # conv(k=1)+relu; pool(k=1)+relu = id
    f = y.reshape(-1)
    h = jnp.maximum(w1 @ f + b1, 0.0)
    h = jnp.maximum(w2 @ h + b2, 0.0)
    return w3 @ h + b3


def reference_forward_matched(x, params):
    """Mirrors the kernel numerics (bf16 weights/activations, f32 accumulation)."""
    wc, bc, w1, b1, w2, b2, w3, b3 = params
    y = jnp.maximum(x.T @ wc.T + bc[None, :], 0.0)          # (L, 128) f32
    yb = y.astype(jnp.bfloat16)
    L, O = y.shape
    w1p = jnp.transpose(w1.reshape(w1.shape[0], O, L), (2, 1, 0)).astype(jnp.bfloat16)
    acc = b1.reshape(1, -1).astype(jnp.float32)
    for l in range(L):
        acc = acc + jnp.dot(yb[l:l + 1, :], w1p[l], preferred_element_type=jnp.float32)
    h = jnp.maximum(acc, 0.0)
    h = jnp.maximum(
        jnp.dot(h.astype(jnp.bfloat16), w2.T.astype(jnp.bfloat16),
                preferred_element_type=jnp.float32) + b2[None, :], 0.0)
    out = jnp.dot(h.astype(jnp.bfloat16), w3.T.astype(jnp.bfloat16),
                  preferred_element_type=jnp.float32) + b3[None, :]
    return out[0]


if __name__ == "__main__":
    num_classes = 5
    batch_size = 8          # -> Conv1d(8, 128, k=1), fc_1 in_features = 128*8 = 1024
    L = batch_size          # forced by fc_1(cnn_out * batch, ...) after .view(-1)

    key = jax.random.PRNGKey(0)
    kx, kp = jax.random.split(key)
    x = jax.random.normal(kx, (batch_size, L), jnp.float32)
    params = init_params(kp, batch_size, num_classes)
    prepped = prep_params(params, num_classes)

    out = jax.block_until_ready(cnn_batch_forward(x, prepped, num_classes))

    ref_match = reference_forward_matched(x, params)
    ref_f32 = reference_forward_f32(x, params)

    assert out.shape == (num_classes,)
    assert jnp.allclose(out, ref_match, atol=1e-2, rtol=1e-2), (out, ref_match)
    assert jnp.allclose(out, ref_f32, atol=5e-2, rtol=5e-2), (out, ref_f32)
    print("KERNEL_OK")
</pallas_src>

<mosaic_0001>
module attributes {stable_mosaic.version = 11 : i64} {
  func.func @cnn_mlp_kernel(%arg0: memref<8x8xf32, #tpu.memory_space<vmem>>, %arg1: memref<8x128xf32, #tpu.memory_space<vmem>>, %arg2: memref<1x128xf32, #tpu.memory_space<vmem>>, %arg3: memref<8x128x1024xbf16, #tpu.memory_space<vmem>>, %arg4: memref<1x1024xf32, #tpu.memory_space<vmem>>, %arg5: memref<1024x128xbf16, #tpu.memory_space<vmem>>, %arg6: memref<1x128xf32, #tpu.memory_space<vmem>>, %arg7: memref<128x128xbf16, #tpu.memory_space<vmem>>, %arg8: memref<1x128xf32, #tpu.memory_space<vmem>>, %arg9: memref<1x128xf32, #tpu.memory_space<vmem>>) attributes {dimension_semantics = [], scalar_prefetch = 0 : i64, scratch_operands = 0 : i64, tpu.core_type = #tpu.core_type<tc>} {
    %c0 = arith.constant 0 : index
    %c0_0 = arith.constant 0 : index
    %0 = vector.load %arg0[%c0, %c0_0] : memref<8x8xf32, #tpu.memory_space<vmem>>, vector<8x8xf32>
    %c0_1 = arith.constant 0 : index
    %c0_2 = arith.constant 0 : index
    %1 = vector.load %arg1[%c0_1, %c0_2] : memref<8x128xf32, #tpu.memory_space<vmem>>, vector<8x128xf32>
    %cst = arith.constant dense<0.000000e+00> : vector<8x128xf32>
    %2 = tpu.matmul %0, %1, %cst {dimension_numbers = #tpu.dot_dimension_numbers<[1], [0], [0], [1], [0, 0, 1, 1], [], []>} : vector<8x8xf32>, vector<8x128xf32>, vector<8x128xf32> -> vector<8x128xf32>
    %c0_3 = arith.constant 0 : index
    %c0_4 = arith.constant 0 : index
    %3 = vector.load %arg2[%c0_3, %c0_4] : memref<1x128xf32, #tpu.memory_space<vmem>>, vector<1x128xf32>
    %4 = vector.broadcast %3 : vector<1x128xf32> to vector<8x128xf32>
    %5 = arith.addf %2, %4 : vector<8x128xf32>
    %cst_5 = arith.constant 0.000000e+00 : f32
    %6 = vector.broadcast %cst_5 : f32 to vector<8x128xf32>
    %7 = arith.maximumf %5, %6 : vector<8x128xf32>
    %8 = arith.truncf %7 : vector<8x128xf32> to vector<8x128xbf16>
    %c0_6 = arith.constant 0 : index
    %c0_7 = arith.constant 0 : index
    %9 = vector.load %arg4[%c0_6, %c0_7] : memref<1x1024xf32, #tpu.memory_space<vmem>>, vector<1x1024xf32>
    %10 = vector.extract_strided_slice %8 {offsets = [0, 0], sizes = [1, 128], strides = [1, 1]} : vector<8x128xbf16> to vector<1x128xbf16>
    %c0_8 = arith.constant 0 : index
    %c0_9 = arith.constant 0 : index
    %c0_10 = arith.constant 0 : index
    %11 = vector.load %arg3[%c0_8, %c0_9, %c0_10] : memref<8x128x1024xbf16, #tpu.memory_space<vmem>>, vector<1x128x1024xbf16>
    %12 = vector.shape_cast %11 : vector<1x128x1024xbf16> to vector<128x1024xbf16>
    %cst_11 = arith.constant dense<0.000000e+00> : vector<1x1024xf32>
    %13 = tpu.matmul %10, %12, %cst_11 {dimension_numbers = #tpu.dot_dimension_numbers<[1], [0], [0], [1], [0, 0, 1, 1], [], []>} : vector<1x128xbf16>, vector<128x1024xbf16>, vector<1x1024xf32> -> vector<1x1024xf32>
    %14 = arith.addf %9, %13 : vector<1x1024xf32>
    %15 = vector.extract_strided_slice %8 {offsets = [1, 0], sizes = [1, 128], strides = [1, 1]} : vector<8x128xbf16> to vector<1x128xbf16>
    %c1 = arith.constant 1 : index
    %c0_12 = arith.constant 0 : index
    %c0_13 = arith.constant 0 : index
    %16 = vector.load %arg3[%c1, %c0_12, %c0_13] : memref<8x128x1024xbf16, #tpu.memory_space<vmem>>, vector<1x128x1024xbf16>
    %17 = vector.shape_cast %16 : vector<1x128x1024xbf16> to vector<128x1024xbf16>
    %cst_14 = arith.constant dense<0.000000e+00> : vector<1x1024xf32>
    %18 = tpu.matmul %15, %17, %cst_14 {dimension_numbers = #tpu.dot_dimension_numbers<[1], [0], [0], [1], [0, 0, 1, 1], [], []>} : vector<1x128xbf16>, vector<128x1024xbf16>, vector<1x1024xf32> -> vector<1x1024xf32>
    %19 = arith.addf %14, %18 : vector<1x1024xf32>
    %20 = vector.extract_strided_slice %8 {offsets = [2, 0], sizes = [1, 128], strides = [1, 1]} : vector<8x128xbf16> to vector<1x128xbf16>
    %c2 = arith.constant 2 : index
    %c0_15 = arith.constant 0 : index
    %c0_16 = arith.constant 0 : index
    %21 = vector.load %arg3[%c2, %c0_15, %c0_16] : memref<8x128x1024xbf16, #tpu.memory_space<vmem>>, vector<1x128x1024xbf16>
    %22 = vector.shape_cast %21 : vector<1x128x1024xbf16> to vector<128x1024xbf16>
    %cst_17 = arith.constant dense<0.000000e+00> : vector<1x1024xf32>
    %23 = tpu.matmul %20, %22, %cst_17 {dimension_numbers = #tpu.dot_dimension_numbers<[1], [0], [0], [1], [0, 0, 1, 1], [], []>} : vector<1x128xbf16>, vector<128x1024xbf16>, vector<1x1024xf32> -> vector<1x1024xf32>
    %24 = arith.addf %19, %23 : vector<1x1024xf32>
    %25 = vector.extract_strided_slice %8 {offsets = [3, 0], sizes = [1, 128], strides = [1, 1]} : vector<8x128xbf16> to vector<1x128xbf16>
    %c3 = arith.constant 3 : index
    %c0_18 = arith.constant 0 : index
    %c0_19 = arith.constant 0 : index
    %26 = vector.load %arg3[%c3, %c0_18, %c0_19] : memref<8x128x1024xbf16, #tpu.memory_space<vmem>>, vector<1x128x1024xbf16>
    %27 = vector.shape_cast %26 : vector<1x128x1024xbf16> to vector<128x1024xbf16>
    %cst_20 = arith.constant dense<0.000000e+00> : vector<1x1024xf32>
    %28 = tpu.matmul %25, %27, %cst_20 {dimension_numbers = #tpu.dot_dimension_numbers<[1], [0], [0], [1], [0, 0, 1, 1], [], []>} : vector<1x128xbf16>, vector<128x1024xbf16>, vector<1x1024xf32> -> vector<1x1024xf32>
    %29 = arith.addf %24, %28 : vector<1x1024xf32>
    %30 = vector.extract_strided_slice %8 {offsets = [4, 0], sizes = [1, 128], strides = [1, 1]} : vector<8x128xbf16> to vector<1x128xbf16>
    %c4 = arith.constant 4 : index
    %c0_21 = arith.constant 0 : index
    %c0_22 = arith.constant 0 : index
    %31 = vector.load %arg3[%c4, %c0_21, %c0_22] : memref<8x128x1024xbf16, #tpu.memory_space<vmem>>, vector<1x128x1024xbf16>
    %32 = vector.shape_cast %31 : vector<1x128x1024xbf16> to vector<128x1024xbf16>
    %cst_23 = arith.constant dense<0.000000e+00> : vector<1x1024xf32>
    %33 = tpu.matmul %30, %32, %cst_23 {dimension_numbers = #tpu.dot_dimension_numbers<[1], [0], [0], [1], [0, 0, 1, 1], [], []>} : vector<1x128xbf16>, vector<128x1024xbf16>, vector<1x1024xf32> -> vector<1x1024xf32>
    %34 = arith.addf %29, %33 : vector<1x1024xf32>
    %35 = vector.extract_strided_slice %8 {offsets = [5, 0], sizes = [1, 128], strides = [1, 1]} : vector<8x128xbf16> to vector<1x128xbf16>
    %c5 = arith.constant 5 : index
    %c0_24 = arith.constant 0 : index
    %c0_25 = arith.constant 0 : index
    %36 = vector.load %arg3[%c5, %c0_24, %c0_25] : memref<8x128x1024xbf16, #tpu.memory_space<vmem>>, vector<1x128x1024xbf16>
    %37 = vector.shape_cast %36 : vector<1x128x1024xbf16> to vector<128x1024xbf16>
    %cst_26 = arith.constant dense<0.000000e+00> : vector<1x1024xf32>
    %38 = tpu.matmul %35, %37, %cst_26 {dimension_numbers = #tpu.dot_dimension_numbers<[1], [0], [0], [1], [0, 0, 1, 1], [], []>} : vector<1x128xbf16>, vector<128x1024xbf16>, vector<1x1024xf32> -> vector<1x1024xf32>
    %39 = arith.addf %34, %38 : vector<1x1024xf32>
    %40 = vector.extract_strided_slice %8 {offsets = [6, 0], sizes = [1, 128], strides = [1, 1]} : vector<8x128xbf16> to vector<1x128xbf16>
    %c6 = arith.constant 6 : index
    %c0_27 = arith.constant 0 : index
    %c0_28 = arith.constant 0 : index
    %41 = vector.load %arg3[%c6, %c0_27, %c0_28] : memref<8x128x1024xbf16, #tpu.memory_space<vmem>>, vector<1x128x1024xbf16>
    %42 = vector.shape_cast %41 : vector<1x128x1024xbf16> to vector<128x1024xbf16>
    %cst_29 = arith.constant dense<0.000000e+00> : vector<1x1024xf32>
    %43 = tpu.matmul %40, %42, %cst_29 {dimension_numbers = #tpu.dot_dimension_numbers<[1], [0], [0], [1], [0, 0, 1, 1], [], []>} : vector<1x128xbf16>, vector<128x1024xbf16>, vector<1x1024xf32> -> vector<1x1024xf32>
    %44 = arith.addf %39, %43 : vector<1x1024xf32>
    %45 = vector.extract_strided_slice %8 {offsets = [7, 0], sizes = [1, 128], strides = [1, 1]} : vector<8x128xbf16> to vector<1x128xbf16>
    %c7 = arith.constant 7 : index
    %c0_30 = arith.constant 0 : index
    %c0_31 = arith.constant 0 : index
    %46 = vector.load %arg3[%c7, %c0_30, %c0_31] : memref<8x128x1024xbf16, #tpu.memory_space<vmem>>, vector<1x128x1024xbf16>
    %47 = vector.shape_cast %46 : vector<1x128x1024xbf16> to vector<128x1024xbf16>
    %cst_32 = arith.constant dense<0.000000e+00> : vector<1x1024xf32>
    %48 = tpu.matmul %45, %47, %cst_32 {dimension_numbers = #tpu.dot_dimension_numbers<[1], [0], [0], [1], [0, 0, 1, 1], [], []>} : vector<1x128xbf16>, vector<128x1024xbf16>, vector<1x1024xf32> -> vector<1x1024xf32>
    %49 = arith.addf %44, %48 : vector<1x1024xf32>
    %cst_33 = arith.constant 0.000000e+00 : f32
    %50 = vector.broadcast %cst_33 : f32 to vector<1x1024xf32>
    %51 = arith.maximumf %49, %50 : vector<1x1024xf32>
    %52 = arith.truncf %51 : vector<1x1024xf32> to vector<1x1024xbf16>
    %c0_34 = arith.constant 0 : index
    %c0_35 = arith.constant 0 : index
    %53 = vector.load %arg5[%c0_34, %c0_35] : memref<1024x128xbf16, #tpu.memory_space<vmem>>, vector<1024x128xbf16>
    %cst_36 = arith.constant dense<0.000000e+00> : vector<1x128xf32>
    %54 = tpu.matmul %52, %53, %cst_36 {dimension_numbers = #tpu.dot_dimension_numbers<[1], [0], [0], [1], [0, 0, 1, 1], [], []>} : vector<1x1024xbf16>, vector<1024x128xbf16>, vector<1x128xf32> -> vector<1x128xf32>
    %c0_37 = arith.constant 0 : index
    %c0_38 = arith.constant 0 : index
    %55 = vector.load %arg6[%c0_37, %c0_38] : memref<1x128xf32, #tpu.memory_space<vmem>>, vector<1x128xf32>
    %56 = arith.addf %54, %55 : vector<1x128xf32>
    %cst_39 = arith.constant 0.000000e+00 : f32
    %57 = vector.broadcast %cst_39 : f32 to vector<1x128xf32>
    %58 = arith.maximumf %56, %57 : vector<1x128xf32>
    %59 = arith.truncf %58 : vector<1x128xf32> to vector<1x128xbf16>
    %c0_40 = arith.constant 0 : index
    %c0_41 = arith.constant 0 : index
    %60 = vector.load %arg7[%c0_40, %c0_41] : memref<128x128xbf16, #tpu.memory_space<vmem>>, vector<128x128xbf16>
    %cst_42 = arith.constant dense<0.000000e+00> : vector<1x128xf32>
    %61 = tpu.matmul %59, %60, %cst_42 {dimension_numbers = #tpu.dot_dimension_numbers<[1], [0], [0], [1], [0, 0, 1, 1], [], []>} : vector<1x128xbf16>, vector<128x128xbf16>, vector<1x128xf32> -> vector<1x128xf32>
    %c0_43 = arith.constant 0 : index
    %c0_44 = arith.constant 0 : index
    %62 = vector.load %arg8[%c0_43, %c0_44] : memref<1x128xf32, #tpu.memory_space<vmem>>, vector<1x128xf32>
    %63 = arith.addf %61, %62 : vector<1x128xf32>
    %c0_45 = arith.constant 0 : index
    %c0_46 = arith.constant 0 : index
    %64 = vector.load %arg9[%c0_45, %c0_46] : memref<1x128xf32, #tpu.memory_space<vmem>>, vector<1x128xf32>
    tpu.vector_store %arg9[%c0_45, %c0_46], %63 {strides = array<i32>} : memref<1x128xf32, #tpu.memory_space<vmem>>, vector<1x128xf32>,
    return
  }
}

</mosaic_0001>

<llo_original>
// kernel: cnn_batch_forward.1
$region0: #{cnn_batch_forward.1}
  #allocation0 [shape = 'u32[]', space=smem, size = 0x4, offset = 0x4, fixed_abs, tag = 'smem constant byte address 0x4 - core index']
  #allocation1 [shape = 'u32[144,128]{1,0:T(1,128)}', space=vmem, size = 0x12000, scoped, tag = 'internal scratch']
  %s0 = inlined_call_operand.vmem [shape: f32[8,8], index: 0, kind: input, shape index: {}]
  %s1 = inlined_call_operand.hbm [shape: f32[8,128], index: 1, kind: input, shape index: {}]
  %s2 = inlined_call_operand.hbm [shape: f32[1,128], index: 2, kind: input, shape index: {}]
  %s3 = inlined_call_operand.hbm [shape: bf16[8,128,1024], index: 3, kind: input, shape index: {}]
  %s4 = inlined_call_operand.hbm [shape: f32[1,1024], index: 4, kind: input, shape index: {}]
  %s5 = inlined_call_operand.hbm [shape: bf16[1024,128], index: 5, kind: input, shape index: {}]
  %s6 = inlined_call_operand.hbm [shape: f32[1,128], index: 6, kind: input, shape index: {}]
  %s7 = inlined_call_operand.hbm [shape: bf16[128,128], index: 7, kind: input, shape index: {}]
  %s8 = inlined_call_operand.hbm [shape: f32[1,128], index: 8, kind: input, shape index: {}]
  %s9 = inlined_call_operand.vmem [shape: f32[1,128], index: 9, kind: output, shape index: {}]
  %s10 = sld [smem:[#allocation0]]
  $region78: #{cnn_batch_forward.1} parent=0
    _
  %s12 = ssub.s32 1, %s10
  %s13 = scalar_select 0, %s12, %s10
  $region1: #{cnn_batch_forward.1} parent=0
    #allocation2 [shape = 'u8[4096]{0}', space=vmem, size = 0x1000, scoped, tag = 'input window, operand 1, single buffered']
    #allocation3 [shape = 's32[1]{0}', space=sflag, size = 0x4, scoped, tag = 'scoped memory for cnn_batch_forward.1']
    #allocation4 [shape = 'u8[512]{0}', space=vmem, size = 0x400, scoped, tag = 'input window, operand 2, single buffered']
    #allocation5 [shape = 's32[1]{0}', space=sflag, size = 0x4, scoped, tag = 'scoped memory for cnn_batch_forward.1']
    #allocation6 [shape = 'u8[2097152]{0}', space=vmem, size = 0x200000, scoped, tag = 'input window, operand 3, single buffered']
    #allocation7 [shape = 'u8[4096]{0}', space=vmem, size = 0x1000, scoped, tag = 'input window, operand 4, single buffered']
    #allocation8 [shape = 's32[1]{0}', space=sflag, size = 0x4, scoped, tag = 'scoped memory for cnn_batch_forward.1']
    #allocation9 [shape = 'u8[262144]{0}', space=vmem, size = 0x40000, scoped, tag = 'input window, operand 5, single buffered']
    #allocation10 [shape = 'u8[512]{0}', space=vmem, size = 0x400, scoped, tag = 'input window, operand 6, single buffered']
    #allocation11 [shape = 's32[1]{0}', space=sflag, size = 0x4, scoped, tag = 'scoped memory for cnn_batch_forward.1']
    #allocation12 [shape = 'u8[32768]{0}', space=vmem, size = 0x8000, scoped, tag = 'input window, operand 7, single buffered']
    #allocation13 [shape = 'u8[512]{0}', space=vmem, size = 0x400, scoped, tag = 'input window, operand 8, single buffered']
    #allocation14 [shape = 's32[1]{0}', space=sflag, size = 0x4, scoped, tag = 'scoped memory for cnn_batch_forward.1']
    %14 = vsyncpa [#allocation3], 0
    %15 = vsyncpa [#allocation5], 0
    %16 = vsyncpa [#allocation8], 0
    %17 = vsyncpa [#allocation11], 0
    %18 = vsyncpa [#allocation14], 0
    // Predicated region
    $region2: #{cnn_batch_forward.1} parent=1 // pred_check
      _
    $region3: #{cnn_batch_forward.1} parent=1 // pred_check_branch
      %20 = sbr.rel (0) target = $region5
    $region4: #{cnn_batch_forward.1} parent=1 // pred_region
      _
    $region5: #{cnn_batch_forward.1} parent=1 // pred_fallthru
      _
    // Predicated region
    $region6: #{cnn_batch_forward.1} parent=1 // pred_check
      _
    $region7: #{cnn_batch_forward.1} parent=1 // pred_check_branch
      %22 = sbr.rel (0) target = $region9
    $region8: #{cnn_batch_forward.1} parent=1 // pred_region
      %s24 = ssub.s32 128, 128
      %25 = vsyncadd [#allocation3], %s24
      %s27 = sshll.u32 [#allocation2], 4
      %s28 = int_to_ptr.vmem [resolvable:$true] %s27
      %30 = dma.hbm_to_vmem [thread:$0]  %s1, 128, %s28, [#allocation3]
    $region9: #{cnn_batch_forward.1} parent=1 // pred_fallthru
      _
    // Predicated region
    $region10: #{cnn_batch_forward.1} parent=1 // pred_check
      _
    $region11: #{cnn_batch_forward.1} parent=1 // pred_check_branch
      %32 = sbr.rel (0) target = $region13
    $region12: #{cnn_batch_forward.1} parent=1 // pred_region
      %s34 = ssub.s32 16, 16
      %35 = vsyncadd [#allocation5], %s34
      %s37 = sshll.u32 [#allocation4], 4
      %s38 = int_to_ptr.vmem [resolvable:$true] %s37
      %40 = dma.hbm_to_vmem [thread:$0]  %s2, 16, %s38, [#allocation5]
    $region13: #{cnn_batch_forward.1} parent=1 // pred_fallthru
      _
    // Predicated region
    $region14: #{cnn_batch_forward.1} parent=1 // pred_check
      _
    $region15: #{cnn_batch_forward.1} parent=1 // pred_check_branch
      %42 = sbr.rel (0) target = $region17
    $region16: #{cnn_batch_forward.1} parent=1 // pred_region
      %s44 = ssub.s32 65536, 65536
      %45 = vsyncadd [#allocation5], %s44
      %s46 = sshll.u32 [#allocation6], 4
      %s47 = int_to_ptr.vmem [resolvable:$true] %s46
      %52 = dma.hbm_to_vmem [thread:$0]  %s3, 65536, %s47, [#allocation5], 512, 512, 32
    $region17: #{cnn_batch_forward.1} parent=1 // pred_fallthru
      _
    // Predicated region
    $region18: #{cnn_batch_forward.1} parent=1 // pred_check
      _
    $region19: #{cnn_batch_forward.1} parent=1 // pred_check_branch
      %54 = sbr.rel (0) target = $region21
    $region20: #{cnn_batch_forward.1} parent=1 // pred_region
      %s56 = ssub.s32 128, 128
      %57 = vsyncadd [#allocation8], %s56
      %s59 = sshll.u32 [#allocation7], 4
      %s60 = int_to_ptr.vmem [resolvable:$true] %s59
      %62 = dma.hbm_to_vmem [thread:$0]  %s4, 128, %s60, [#allocation8]
    $region21: #{cnn_batch_forward.1} parent=1 // pred_fallthru
      _
    // Predicated region
    $region22: #{cnn_batch_forward.1} parent=1 // pred_check
      _
    $region23: #{cnn_batch_forward.1} parent=1 // pred_check_branch
      %64 = sbr.rel (0) target = $region25
    $region24: #{cnn_batch_forward.1} parent=1 // pred_region
      %s66 = ssub.s32 8192, 8192
      %67 = vsyncadd [#allocation8], %s66
      %s68 = sshll.u32 [#allocation9], 4
      %s69 = int_to_ptr.vmem [resolvable:$true] %s68
      %74 = dma.hbm_to_vmem [thread:$0]  %s5, 8192, %s69, [#allocation8], 64, 64, 4
    $region25: #{cnn_batch_forward.1} parent=1 // pred_fallthru
      _
    // Predicated region
    $region26: #{cnn_batch_forward.1} parent=1 // pred_check
      _
    $region27: #{cnn_batch_forward.1} parent=1 // pred_check_branch
      %76 = sbr.rel (0) target = $region29
    $region28: #{cnn_batch_forward.1} parent=1 // pred_region
      %s78 = ssub.s32 16, 16
      %79 = vsyncadd [#allocation11], %s78
      %s81 = sshll.u32 [#allocation10], 4
      %s82 = int_to_ptr.vmem [resolvable:$true] %s81
      %84 = dma.hbm_to_vmem [thread:$0]  %s6, 16, %s82, [#allocation11]
    $region29: #{cnn_batch_forward.1} parent=1 // pred_fallthru
      _
    // Predicated region
    $region30: #{cnn_batch_forward.1} parent=1 // pred_check
      _
    $region31: #{cnn_batch_forward.1} parent=1 // pred_check_branch
      %86 = sbr.rel (0) target = $region33
    $region32: #{cnn_batch_forward.1} parent=1 // pred_region
      %s88 = ssub.s32 1024, 1024
      %89 = vsyncadd [#allocation11], %s88
      %s90 = sshll.u32 [#allocation12], 4
      %s91 = int_to_ptr.vmem [resolvable:$true] %s90
      %96 = dma.hbm_to_vmem [thread:$0]  %s7, 1024, %s91, [#allocation11], 64, 64, 4
    $region33: #{cnn_batch_forward.1} parent=1 // pred_fallthru
      _
    // Predicated region
    $region34: #{cnn_batch_forward.1} parent=1 // pred_check
      _
    $region35: #{cnn_batch_forward.1} parent=1 // pred_check_branch
      %98 = sbr.rel (0) target = $region37
    $region36: #{cnn_batch_forward.1} parent=1 // pred_region
      %s100 = ssub.s32 16, 16
      %101 = vsyncadd [#allocation14], %s100
      %s103 = sshll.u32 [#allocation13], 4
      %s104 = int_to_ptr.vmem [resolvable:$true] %s103
      %106 = dma.hbm_to_vmem [thread:$0]  %s8, 16, %s104, [#allocation14]
    $region37: #{cnn_batch_forward.1} parent=1 // pred_fallthru
      _
    // Predicated region
    $region38: #{cnn_batch_forward.1} parent=1 // pred_check
      _
    $region39: #{cnn_batch_forward.1} parent=1 // pred_check_branch
      %108 = sbr.rel (0) target = $region41
    $region40: #{cnn_batch_forward.1} parent=1 // pred_region
      %109 = dma.done [#allocation3], 128
    $region41: #{cnn_batch_forward.1} parent=1 // pred_fallthru
      _
    // Predicated region
    $region42: #{cnn_batch_forward.1} parent=1 // pred_check
      _
    $region43: #{cnn_batch_forward.1} parent=1 // pred_check_branch
      %111 = sbr.rel (0) target = $region45
    $region44: #{cnn_batch_forward.1} parent=1 // pred_region
      %112 = dma.done [#allocation5], 16
    $region45: #{cnn_batch_forward.1} parent=1 // pred_fallthru
      _
    // Predicated region
    $region46: #{cnn_batch_forward.1} parent=1 // pred_check
      _
    $region47: #{cnn_batch_forward.1} parent=1 // pred_check_branch
      %114 = sbr.rel (0) target = $region49
    $region48: #{cnn_batch_forward.1} parent=1 // pred_region
      %115 = dma.done [#allocation5], 65536
    $region49: #{cnn_batch_forward.1} parent=1 // pred_fallthru
      _
    // Predicated region
    $region50: #{cnn_batch_forward.1} parent=1 // pred_check
      _
    $region51: #{cnn_batch_forward.1} parent=1 // pred_check_branch
      %117 = sbr.rel (0) target = $region53
    $region52: #{cnn_batch_forward.1} parent=1 // pred_region
      %118 = dma.done [#allocation8], 128
    $region53: #{cnn_batch_forward.1} parent=1 // pred_fallthru
      _
    // Predicated region
    $region54: #{cnn_batch_forward.1} parent=1 // pred_check
      _
    $region55: #{cnn_batch_forward.1} parent=1 // pred_check_branch
      %120 = sbr.rel (0) target = $region57
    $region56: #{cnn_batch_forward.1} parent=1 // pred_region
      %121 = dma.done [#allocation8], 8192
    $region57: #{cnn_batch_forward.1} parent=1 // pred_fallthru
      _
    // Predicated region
    $region58: #{cnn_batch_forward.1} parent=1 // pred_check
      _
    $region59: #{cnn_batch_forward.1} parent=1 // pred_check_branch
      %123 = sbr.rel (0) target = $region61
    $region60: #{cnn_batch_forward.1} parent=1 // pred_region
      %124 = dma.done [#allocation11], 16
    $region61: #{cnn_batch_forward.1} parent=1 // pred_fallthru
      _
    // Predicated region
    $region62: #{cnn_batch_forward.1} parent=1 // pred_check
      _
    $region63: #{cnn_batch_forward.1} parent=1 // pred_check_branch
      %126 = sbr.rel (0) target = $region65
    $region64: #{cnn_batch_forward.1} parent=1 // pred_region
      %127 = dma.done [#allocation11], 1024
    $region65: #{cnn_batch_forward.1} parent=1 // pred_fallthru
      _
    // Predicated region
    $region66: #{cnn_batch_forward.1} parent=1 // pred_check
      _
    $region67: #{cnn_batch_forward.1} parent=1 // pred_check_branch
      %129 = sbr.rel (0) target = $region69
    $region68: #{cnn_batch_forward.1} parent=1 // pred_region
      %130 = dma.done [#allocation14], 16
    $region69: #{cnn_batch_forward.1} parent=1 // pred_fallthru
      _
    %v132 = vld [vmem:[%s0] sm:$0xff]
    %v133 = vld [vmem:[#allocation2] sm:$0xff]
    %v134 = vld [vmem:[#allocation4] sm:$0x1]
    %v136 = vlaneseq
    %v137 = vshrl.u32 %v136, 7
    %v138 = vsub.s32 0, %v137
    %v139 = vrot.slane %v134, %v138
    %vm141 = vcmask 64512
    %v143 = vsel %vm141, %v132, 0
    %145 = vmatprep.subr.mxu0 0.0
    %146 = vmatpush1.msra.mxu0 0.0
    %147 = vmatprep.subr.mxu0 0.0
    %148 = vmatpush1.msra.mxu0 0.0
    %149 = vmatprep.subr.mxu0 0.0
    %150 = vmatpush1.msra.mxu0 0.0
    %151 = vmatprep.subr.mxu0 0.0
    %152 = vmatpush1.msra.mxu0 0.0
    %153 = vmatprep.subr.mxu0 0.0
    %154 = vmatpush1.msra.mxu0 0.0
    %155 = vmatprep.subr.mxu0 0.0
    %156 = vmatpush1.msra.mxu0 0.0
    %157 = vmatprep.subr.mxu0 0.0
    %158 = vmatpush1.msra.mxu0 0.0
    %159 = vmatprep.subr.mxu0 0.0
    %160 = vmatpush1.msra.mxu0 0.0
    %161 = vmatprep.subr.mxu0 0.0
    %162 = vmatpush1.msra.mxu0 0.0
    %163 = vmatprep.subr.mxu0 0.0
    %164 = vmatpush1.msra.mxu0 0.0
    %165 = vmatprep.subr.mxu0 0.0
    %166 = vmatpush1.msra.mxu0 0.0
    %167 = vmatprep.subr.mxu0 0.0
    %168 = vmatpush1.msra.mxu0 0.0
    %169 = vmatprep.subr.mxu0 0.0
    %170 = vmatpush1.msra.mxu0 0.0
    %171 = vmatprep.subr.mxu0 0.0
    %172 = vmatpush1.msra.mxu0 0.0
    %173 = vmatprep.subr.mxu0 0.0
    %174 = vmatpush1.msra.mxu0 0.0
    %175 = vmatprep.subr.mxu0 0.0
    %176 = vmatpush1.msra.mxu0 %v133
    %177 = vmatprep.subr.mxu0 0.0
    %178 = vmatpush2.msra.mxu0 0.0
    %179 = vmatprep.subr.mxu0 0.0
    %180 = vmatpush2.msra.mxu0 0.0
    %181 = vmatprep.subr.mxu0 0.0
    %182 = vmatpush2.msra.mxu0 0.0
    %183 = vmatprep.subr.mxu0 0.0
    %184 = vmatpush2.msra.mxu0 0.0
    %185 = vmatprep.subr.mxu0 0.0
    %186 = vmatpush2.msra.mxu0 0.0
    %187 = vmatprep.subr.mxu0 0.0
    %188 = vmatpush2.msra.mxu0 0.0
    %189 = vmatprep.subr.mxu0 0.0
    %190 = vmatpush2.msra.mxu0 0.0
    %191 = vmatprep.subr.mxu0 0.0
    %192 = vmatpush2.msra.mxu0 0.0
    %193 = vmatprep.subr.mxu0 0.0
    %194 = vmatpush2.msra.mxu0 0.0
    %195 = vmatprep.subr.mxu0 0.0
    %196 = vmatpush2.msra.mxu0 0.0
    %197 = vmatprep.subr.mxu0 0.0
    %198 = vmatpush2.msra.mxu0 0.0
    %199 = vmatprep.subr.mxu0 0.0
    %200 = vmatpush2.msra.mxu0 0.0
    %201 = vmatprep.subr.mxu0 0.0
    %202 = vmatpush2.msra.mxu0 0.0
    %203 = vmatprep.subr.mxu0 0.0
    %204 = vmatpush2.msra.mxu0 0.0
    %205 = vmatprep.subr.mxu0 0.0
    %206 = vmatpush2.msra.mxu0 0.0
    %207 = vmatprep.subr.mxu0 0.0
    %208 = vmatpush2.msra.mxu0 0.0
    %209 = vmatprep.mubr.f32.mxu0 0.0
    %210 = vmatmul.mubr.f32.gmra.mxu0 %v143
    %v211 = vpop.f32.mrf.mxu0
    %v212 = vadd.f32 %v139, %v211
    %v213 = vpop.f32.mrf.mxu0
    %214 = vdwg.mxu0
    %v215 = vmax.f32 %v212, 0.0
    %v216 = vpack.c.bf16 %v215, %v215
    %v217 = vld [vmem:[#allocation7] sm:$0xff]
    %v218 = vld [vmem:[#allocation6] sm:$0xff]
    %v219 = vld [vmem:[#allocation6 + $0x8] sm:$0xff]
    %v220 = vld [vmem:[#allocation6 + $0x10] sm:$0xff]
    %v221 = vld [vmem:[#allocation6 + $0x18] sm:$0xff]
    %v222 = vld [vmem:[#allocation6 + $0x20] sm:$0xff]
    %v223 = vld [vmem:[#allocation6 + $0x28] sm:$0xff]
    %v224 = vld [vmem:[#allocation6 + $0x30] sm:$0xff]
    %v225 = vld [vmem:[#allocation6 + $0x38] sm:$0xff]
    %v226 = vld [vmem:[#allocation6 + $0x40] sm:$0xff]
    %v227 = vld [vmem:[#allocation6 + $0x48] sm:$0xff]
    %v228 = vld [vmem:[#allocation6 + $0x50] sm:$0xff]
    %v229 = vld [vmem:[#allocation6 + $0x58] sm:$0xff]
    %v230 = vld [vmem:[#allocation6 + $0x60] sm:$0xff]
    %v231 = vld [vmem:[#allocation6 + $0x68] sm:$0xff]
    %v232 = vld [vmem:[#allocation6 + $0x70] sm:$0xff]
    %v233 = vld [vmem:[#allocation6 + $0x78] sm:$0xff]
    %v234 = vld [vmem:[#allocation6 + $0x80] sm:$0xff]
    %v235 = vld [vmem:[#allocation6 + $0x88] sm:$0xff]
    %v236 = vld [vmem:[#allocation6 + $0x90] sm:$0xff]
    %v237 = vld [vmem:[#allocation6 + $0x98] sm:$0xff]
    %v238 = vld [vmem:[#allocation6 + $0xa0] sm:$0xff]
    %v239 = vld [vmem:[#allocation6 + $0xa8] sm:$0xff]
    %v240 = vld [vmem:[#allocation6 + $0xb0] sm:$0xff]
    %v241 = vld [vmem:[#allocation6 + $0xb8] sm:$0xff]
    %v242 = vld [vmem:[#allocation6 + $0xc0] sm:$0xff]
    %v243 = vld [vmem:[#allocation6 + $0xc8] sm:$0xff]
    %v244 = vld [vmem:[#allocation6 + $0xd0] sm:$0xff]
    %v245 = vld [vmem:[#allocation6 + $0xd8] sm:$0xff]
    %v246 = vld [vmem:[#allocation6 + $0xe0] sm:$0xff]
    %v247 = vld [vmem:[#allocation6 + $0xe8] sm:$0xff]
    %v248 = vld [vmem:[#allocation6 + $0xf0] sm:$0xff]
    %v249 = vld [vmem:[#allocation6 + $0xf8] sm:$0xff]
    %v250 = vld [vmem:[#allocation6 + $0x100] sm:$0xff]
    %v251 = vld [vmem:[#allocation6 + $0x108] sm:$0xff]
    %v252 = vld [vmem:[#allocation6 + $0x110] sm:$0xff]
    %v253 = vld [vmem:[#allocation6 + $0x118] sm:$0xff]
    %v254 = vld [vmem:[#allocation6 + $0x120] sm:$0xff]
    %v255 = vld [vmem:[#allocation6 + $0x128] sm:$0xff]
    %v256 = vld [vmem:[#allocation6 + $0x130] sm:$0xff]
    %v257 = vld [vmem:[#allocation6 + $0x138] sm:$0xff]
    %v258 = vld [vmem:[#allocation6 + $0x140] sm:$0xff]
    %v259 = vld [vmem:[#allocation6 + $0x148] sm:$0xff]
    %v260 = vld [vmem:[#allocation6 + $0x150] sm:$0xff]
    %v261 = vld [vmem:[#allocation6 + $0x158] sm:$0xff]
    %v262 = vld [vmem:[#allocation6 + $0x160] sm:$0xff]
    %v263 = vld [vmem:[#allocation6 + $0x168] sm:$0xff]
    %v264 = vld [vmem:[#allocation6 + $0x170] sm:$0xff]
    %v265 = vld [vmem:[#allocation6 + $0x178] sm:$0xff]
    %v266 = vld [vmem:[#allocation6 + $0x180] sm:$0xff]
    %v267 = vld [vmem:[#allocation6 + $0x188] sm:$0xff]
    %v268 = vld [vmem:[#allocation6 + $0x190] sm:$0xff]
    %v269 = vld [vmem:[#allocation6 + $0x198] sm:$0xff]
    %v270 = vld [vmem:[#allocation6 + $0x1a0] sm:$0xff]
    %v271 = vld [vmem:[#allocation6 + $0x1a8] sm:$0xff]
    %v272 = vld [vmem:[#allocation6 + $0x1b0] sm:$0xff]
    %v273 = vld [vmem:[#allocation6 + $0x1b8] sm:$0xff]
    %v274 = vld [vmem:[#allocation6 + $0x1c0] sm:$0xff]
    %v275 = vld [vmem:[#allocation6 + $0x1c8] sm:$0xff]
    %v276 = vld [vmem:[#allocation6 + $0x1d0] sm:$0xff]
    %v277 = vld [vmem:[#allocation6 + $0x1d8] sm:$0xff]
    %v278 = vld [vmem:[#allocation6 + $0x1e0] sm:$0xff]
    %v279 = vld [vmem:[#allocation6 + $0x1e8] sm:$0xff]
    %v280 = vld [vmem:[#allocation6 + $0x1f0] sm:$0xff]
    %v281 = vld [vmem:[#allocation6 + $0x1f8] sm:$0xff]
    %v346 = vunpack.c.l.b16 %v218
    %v347 = vunpack.c.h.b16 %v218
    %v348 = vunpack.c.l.b16 %v219
    %v349 = vunpack.c.h.b16 %v219
    %v350 = vunpack.c.l.b16 %v220
    %v351 = vunpack.c.h.b16 %v220
    %v352 = vunpack.c.l.b16 %v221
    %v353 = vunpack.c.h.b16 %v221
    %v354 = vunpack.c.l.b16 %v222
    %v355 = vunpack.c.h.b16 %v222
    %v356 = vunpack.c.l.b16 %v223
    %v357 = vunpack.c.h.b16 %v223
    %v358 = vunpack.c.l.b16 %v224
    %v359 = vunpack.c.h.b16 %v224
    %v360 = vunpack.c.l.b16 %v225
    %v361 = vunpack.c.h.b16 %v225
    %v362 = vunpack.c.l.b16 %v226
    %v363 = vunpack.c.h.b16 %v226
    %v364 = vunpack.c.l.b16 %v227
    %v365 = vunpack.c.h.b16 %v227
    %v366 = vunpack.c.l.b16 %v228
    %v367 = vunpack.c.h.b16 %v228
    %v368 = vunpack.c.l.b16 %v229
    %v369 = vunpack.c.h.b16 %v229
    %v370 = vunpack.c.l.b16 %v230
    %v371 = vunpack.c.h.b16 %v230
    %v372 = vunpack.c.l.b16 %v231
    %v373 = vunpack.c.h.b16 %v231
    %v374 = vunpack.c.l.b16 %v232
    %v375 = vunpack.c.h.b16 %v232
    %v376 = vunpack.c.l.b16 %v233
    %v377 = vunpack.c.h.b16 %v233
    %v378 = vunpack.c.l.b16 %v234
    %v379 = vunpack.c.h.b16 %v234
    %v380 = vunpack.c.l.b16 %v235
    %v381 = vunpack.c.h.b16 %v235
    %v382 = vunpack.c.l.b16 %v236
    %v383 = vunpack.c.h.b16 %v236
    %v384 = vunpack.c.l.b16 %v237
    %v385 = vunpack.c.h.b16 %v237
    %v386 = vunpack.c.l.b16 %v238
    %v387 = vunpack.c.h.b16 %v238
    %v388 = vunpack.c.l.b16 %v239
    %v389 = vunpack.c.h.b16 %v239
    %v390 = vunpack.c.l.b16 %v240
    %v391 = vunpack.c.h.b16 %v240
    %v392 = vunpack.c.l.b16 %v241
    %v393 = vunpack.c.h.b16 %v241
    %v394 = vunpack.c.l.b16 %v242
    %v395 = vunpack.c.h.b16 %v242
    %v396 = vunpack.c.l.b16 %v243
    %v397 = vunpack.c.h.b16 %v243
    %v398 = vunpack.c.l.b16 %v244
    %v399 = vunpack.c.h.b16 %v244
    %v400 = vunpack.c.l.b16 %v245
    %v401 = vunpack.c.h.b16 %v245
    %v402 = vunpack.c.l.b16 %v246
    %v403 = vunpack.c.h.b16 %v246
    %v404 = vunpack.c.l.b16 %v247
    %v405 = vunpack.c.h.b16 %v247
    %v406 = vunpack.c.l.b16 %v248
    %v407 = vunpack.c.h.b16 %v248
    %v408 = vunpack.c.l.b16 %v249
    %v409 = vunpack.c.h.b16 %v249
    %v410 = vunpack.c.l.b16 %v250
    %v411 = vunpack.c.h.b16 %v250
    %v412 = vunpack.c.l.b16 %v251
    %v413 = vunpack.c.h.b16 %v251
    %v414 = vunpack.c.l.b16 %v252
    %v415 = vunpack.c.h.b16 %v252
    %v416 = vunpack.c.l.b16 %v253
    %v417 = vunpack.c.h.b16 %v253
    %v418 = vunpack.c.l.b16 %v254
    %v419 = vunpack.c.h.b16 %v254
    %v420 = vunpack.c.l.b16 %v255
    %v421 = vunpack.c.h.b16 %v255
    %v422 = vunpack.c.l.b16 %v256
    %v423 = vunpack.c.h.b16 %v256
    %v424 = vunpack.c.l.b16 %v257
    %v425 = vunpack.c.h.b16 %v257
    %v426 = vunpack.c.l.b16 %v258
    %v427 = vunpack.c.h.b16 %v258
    %v428 = vunpack.c.l.b16 %v259
    %v429 = vunpack.c.h.b16 %v259
    %v430 = vunpack.c.l.b16 %v260
    %v431 = vunpack.c.h.b16 %v260
    %v432 = vunpack.c.l.b16 %v261
    %v433 = vunpack.c.h.b16 %v261
    %v434 = vunpack.c.l.b16 %v262
    %v435 = vunpack.c.h.b16 %v262
    %v436 = vunpack.c.l.b16 %v263
    %v437 = vunpack.c.h.b16 %v263
    %v438 = vunpack.c.l.b16 %v264
    %v439 = vunpack.c.h.b16 %v264
    %v440 = vunpack.c.l.b16 %v265
    %v441 = vunpack.c.h.b16 %v265
    %v442 = vunpack.c.l.b16 %v266
    %v443 = vunpack.c.h.b16 %v266
    %v444 = vunpack.c.l.b16 %v267
    %v445 = vunpack.c.h.b16 %v267
    %v446 = vunpack.c.l.b16 %v268
    %v447 = vunpack.c.h.b16 %v268
    %v448 = vunpack.c.l.b16 %v269
    %v449 = vunpack.c.h.b16 %v269
    %v450 = vunpack.c.l.b16 %v270
    %v451 = vunpack.c.h.b16 %v270
    %v452 = vunpack.c.l.b16 %v271
    %v453 = vunpack.c.h.b16 %v271
    %v454 = vunpack.c.l.b16 %v272
    %v455 = vunpack.c.h.b16 %v272
    %v456 = vunpack.c.l.b16 %v273
    %v457 = vunpack.c.h.b16 %v273
    %v458 = vunpack.c.l.b16 %v274
    %v459 = vunpack.c.h.b16 %v274
    %v460 = vunpack.c.l.b16 %v275
    %v461 = vunpack.c.h.b16 %v275
    %v462 = vunpack.c.l.b16 %v276
    %v463 = vunpack.c.h.b16 %v276
    %v464 = vunpack.c.l.b16 %v277
    %v465 = vunpack.c.h.b16 %v277
    %v466 = vunpack.c.l.b16 %v278
    %v467 = vunpack.c.h.b16 %v278
    %v468 = vunpack.c.l.b16 %v279
    %v469 = vunpack.c.h.b16 %v279
    %v470 = vunpack.c.l.b16 %v280
    %v471 = vunpack.c.h.b16 %v280
    %v472 = vunpack.c.l.b16 %v281
    %v473 = vunpack.c.h.b16 %v281
    %v474 = vpack.c.b16 %v354, %v346
    %v475 = vpack.c.b16 %v355, %v347
    %v476 = vpack.c.b16 %v356, %v348
    %v477 = vpack.c.b16 %v357, %v349
    %v478 = vpack.c.b16 %v358, %v350
    %v479 = vpack.c.b16 %v359, %v351
    %v480 = vpack.c.b16 %v360, %v352
    %v481 = vpack.c.b16 %v361, %v353
    %v482 = vpack.c.b16 %v370, %v362
    %v483 = vpack.c.b16 %v371, %v363
    %v484 = vpack.c.b16 %v372, %v364
    %v485 = vpack.c.b16 %v373, %v365
    %v486 = vpack.c.b16 %v374, %v366
    %v487 = vpack.c.b16 %v375, %v367
    %v488 = vpack.c.b16 %v376, %v368
    %v489 = vpack.c.b16 %v377, %v369
    %v490 = vpack.c.b16 %v386, %v378
    %v491 = vpack.c.b16 %v387, %v379
    %v492 = vpack.c.b16 %v388, %v380
    %v493 = vpack.c.b16 %v389, %v381
    %v494 = vpack.c.b16 %v390, %v382
    %v495 = vpack.c.b16 %v391, %v383
    %v496 = vpack.c.b16 %v392, %v384
    %v497 = vpack.c.b16 %v393, %v385
    %v498 = vpack.c.b16 %v402, %v394
    %v499 = vpack.c.b16 %v403, %v395
    %v500 = vpack.c.b16 %v404, %v396
    %v501 = vpack.c.b16 %v405, %v397
    %v502 = vpack.c.b16 %v406, %v398
    %v503 = vpack.c.b16 %v407, %v399
    %v504 = vpack.c.b16 %v408, %v400
    %v505 = vpack.c.b16 %v409, %v401
    %v506 = vpack.c.b16 %v418, %v410
    %v507 = vpack.c.b16 %v419, %v411
    %v508 = vpack.c.b16 %v420, %v412
    %v509 = vpack.c.b16 %v421, %v413
    %v510 = vpack.c.b16 %v422, %v414
    %v511 = vpack.c.b16 %v423, %v415
    %v512 = vpack.c.b16 %v424, %v416
    %v513 = vpack.c.b16 %v425, %v417
    %v514 = vpack.c.b16 %v434, %v426
    %v515 = vpack.c.b16 %v435, %v427
    %v516 = vpack.c.b16 %v436, %v428
    %v517 = vpack.c.b16 %v437, %v429
    %v518 = vpack.c.b16 %v438, %v430
    %v519 = vpack.c.b16 %v439, %v431
    %v520 = vpack.c.b16 %v440, %v432
    %v521 = vpack.c.b16 %v441, %v433
    %v522 = vpack.c.b16 %v450, %v442
    %v523 = vpack.c.b16 %v451, %v443
    %v524 = vpack.c.b16 %v452, %v444
    %v525 = vpack.c.b16 %v453, %v445
    %v526 = vpack.c.b16 %v454, %v446
    %v527 = vpack.c.b16 %v455, %v447
    %v528 = vpack.c.b16 %v456, %v448
    %v529 = vpack.c.b16 %v457, %v449
    %v530 = vpack.c.b16 %v466, %v458
    %v531 = vpack.c.b16 %v467, %v459
    %v532 = vpack.c.b16 %v468, %v460
    %v533 = vpack.c.b16 %v469, %v461
    %v534 = vpack.c.b16 %v470, %v462
    %v535 = vpack.c.b16 %v471, %v463
    %v536 = vpack.c.b16 %v472, %v464
    %v537 = vpack.c.b16 %v473, %v465
    %602 = vmatprep.subr.bf16.mxu0 %v531
    %603 = vmatpush1.bf16.msra.mxu0 %v530
    %604 = vmatprep.subr.bf16.mxu0 %v523
    %605 = vmatpush1.bf16.msra.mxu0 %v522
    %606 = vmatprep.subr.bf16.mxu0 %v515
    %607 = vmatpush1.bf16.msra.mxu0 %v514
    %608 = vmatprep.subr.bf16.mxu0 %v507
    %609 = vmatpush1.bf16.msra.mxu0 %v506
    %610 = vmatprep.subr.bf16.mxu0 %v499
    %611 = vmatpush1.bf16.msra.mxu0 %v498
    %612 = vmatprep.subr.bf16.mxu0 %v491
    %613 = vmatpush1.bf16.msra.mxu0 %v490
    %614 = vmatprep.subr.bf16.mxu0 %v483
    %615 = vmatpush1.bf16.msra.mxu0 %v482
    %616 = vmatprep.subr.bf16.mxu0 %v475
    %617 = vmatpush1.bf16.msra.mxu0 %v474
    %618 = vmatprep.subr.bf16.mxu0 0
    %619 = vmatpush2.bf16.msra.mxu0 0
    %620 = vmatprep.subr.bf16.mxu0 0
    %621 = vmatpush2.bf16.msra.mxu0 0
    %622 = vmatprep.subr.bf16.mxu0 0
    %623 = vmatpush2.bf16.msra.mxu0 0
    %624 = vmatprep.subr.bf16.mxu0 0
    %625 = vmatpush2.bf16.msra.mxu0 0
    %626 = vmatprep.subr.bf16.mxu0 0
    %627 = vmatpush2.bf16.msra.mxu0 0
    %628 = vmatprep.subr.bf16.mxu0 0
    %629 = vmatpush2.bf16.msra.mxu0 0
    %630 = vmatprep.subr.bf16.mxu0 0
    %631 = vmatpush2.bf16.msra.mxu0 0
    %632 = vmatprep.subr.bf16.mxu0 0
    %633 = vmatpush2.bf16.msra.mxu0 0
    %634 = vmatprep.mubr.bf16.mxu0 0
    %635 = vmatmul.mubr.bf16.gmra.mxu0 %v216
    %v636 = vpop.f32.mrf.mxu0
    %v637 = vadd.f32 0.0, %v636
    %v638 = vpop.f32.mrf.mxu0
    %v639 = vadd.f32 0.0, %v638
    %v640 = vpop.f32.mrf.mxu0
    %v641 = vpop.f32.mrf.mxu0
    %642 = vdwg.mxu0
    %643 = vmatprep.subr.bf16.mxu0 %v533
    %644 = vmatpush1.bf16.msra.mxu0 %v532
    %645 = vmatprep.subr.bf16.mxu0 %v525
    %646 = vmatpush1.bf16.msra.mxu0 %v524
    %647 = vmatprep.subr.bf16.mxu0 %v517
    %648 = vmatpush1.bf16.msra.mxu0 %v516
    %649 = vmatprep.subr.bf16.mxu0 %v509
    %650 = vmatpush1.bf16.msra.mxu0 %v508
    %651 = vmatprep.subr.bf16.mxu0 %v501
    %652 = vmatpush1.bf16.msra.mxu0 %v500
    %653 = vmatprep.subr.bf16.mxu0 %v493
    %654 = vmatpush1.bf16.msra.mxu0 %v492
    %655 = vmatprep.subr.bf16.mxu0 %v485
    %656 = vmatpush1.bf16.msra.mxu0 %v484
    %657 = vmatprep.subr.bf16.mxu0 %v477
    %658 = vmatpush1.bf16.msra.mxu0 %v476
    %659 = vmatprep.subr.bf16.mxu0 0
    %660 = vmatpush2.bf16.msra.mxu0 0
    %661 = vmatprep.subr.bf16.mxu0 0
    %662 = vmatpush2.bf16.msra.mxu0 0
    %663 = vmatprep.subr.bf16.mxu0 0
    %664 = vmatpush2.bf16.msra.mxu0 0
    %665 = vmatprep.subr.bf16.mxu0 0
    %666 = vmatpush2.bf16.msra.mxu0 0
    %667 = vmatprep.subr.bf16.mxu0 0
    %668 = vmatpush2.bf16.msra.mxu0 0
    %669 = vmatprep.subr.bf16.mxu0 0
    %670 = vmatpush2.bf16.msra.mxu0 0
    %671 = vmatprep.subr.bf16.mxu0 0
    %672 = vmatpush2.bf16.msra.mxu0 0
    %673 = vmatprep.subr.bf16.mxu0 0
    %674 = vmatpush2.bf16.msra.mxu0 0
    %675 = vmatprep.mubr.bf16.mxu0 0
    %676 = vmatmul.mubr.bf16.gmra.mxu0 %v216
    %v677 = vpop.f32.mrf.mxu0
    %v678 = vadd.f32 0.0, %v677
    %v679 = vpop.f32.mrf.mxu0
    %v680 = vadd.f32 0.0, %v679
    %v681 = vpop.f32.mrf.mxu0
    %v682 = vpop.f32.mrf.mxu0
    %683 = vdwg.mxu0
    %684 = vmatprep.subr.bf16.mxu0 %v535
    %685 = vmatpush1.bf16.msra.mxu0 %v534
    %686 = vmatprep.subr.bf16.mxu0 %v527
    %687 = vmatpush1.bf16.msra.mxu0 %v526
    %688 = vmatprep.subr.bf16.mxu0 %v519
    %689 = vmatpush1.bf16.msra.mxu0 %v518
    %690 = vmatprep.subr.bf16.mxu0 %v511
    %691 = vmatpush1.bf16.msra.mxu0 %v510
    %692 = vmatprep.subr.bf16.mxu0 %v503
    %693 = vmatpush1.bf16.msra.mxu0 %v502
    %694 = vmatprep.subr.bf16.mxu0 %v495
    %695 = vmatpush1.bf16.msra.mxu0 %v494
    %696 = vmatprep.subr.bf16.mxu0 %v487
    %697 = vmatpush1.bf16.msra.mxu0 %v486
    %698 = vmatprep.subr.bf16.mxu0 %v479
    %699 = vmatpush1.bf16.msra.mxu0 %v478
    %700 = vmatprep.subr.bf16.mxu0 0
    %701 = vmatpush2.bf16.msra.mxu0 0
    %702 = vmatprep.subr.bf16.mxu0 0
    %703 = vmatpush2.bf16.msra.mxu0 0
    %704 = vmatprep.subr.bf16.mxu0 0
    %705 = vmatpush2.bf16.msra.mxu0 0
    %706 = vmatprep.subr.bf16.mxu0 0
    %707 = vmatpush2.bf16.msra.mxu0 0
    %708 = vmatprep.subr.bf16.mxu0 0
    %709 = vmatpush2.bf16.msra.mxu0 0
    %710 = vmatprep.subr.bf16.mxu0 0
    %711 = vmatpush2.bf16.msra.mxu0 0
    %712 = vmatprep.subr.bf16.mxu0 0
    %713 = vmatpush2.bf16.msra.mxu0 0
    %714 = vmatprep.subr.bf16.mxu0 0
    %715 = vmatpush2.bf16.msra.mxu0 0
    %716 = vmatprep.mubr.bf16.mxu0 0
    %717 = vmatmul.mubr.bf16.gmra.mxu0 %v216
    %v718 = vpop.f32.mrf.mxu0
    %v719 = vadd.f32 0.0, %v718
    %v720 = vpop.f32.mrf.mxu0
    %v721 = vadd.f32 0.0, %v720
    %v722 = vpop.f32.mrf.mxu0
    %v723 = vpop.f32.mrf.mxu0
    %724 = vdwg.mxu0
    %725 = vmatprep.subr.bf16.mxu0 %v537
    %726 = vmatpush1.bf16.msra.mxu0 %v536
    %727 = vmatprep.subr.bf16.mxu0 %v529
    %728 = vmatpush1.bf16.msra.mxu0 %v528
    %729 = vmatprep.subr.bf16.mxu0 %v521
    %730 = vmatpush1.bf16.msra.mxu0 %v520
    %731 = vmatprep.subr.bf16.mxu0 %v513
    %732 = vmatpush1.bf16.msra.mxu0 %v512
    %733 = vmatprep.subr.bf16.mxu0 %v505
    %734 = vmatpush1.bf16.msra.mxu0 %v504
    %735 = vmatprep.subr.bf16.mxu0 %v497
    %736 = vmatpush1.bf16.msra.mxu0 %v496
    %737 = vmatprep.subr.bf16.mxu0 %v489
    %738 = vmatpush1.bf16.msra.mxu0 %v488
    %739 = vmatprep.subr.bf16.mxu0 %v481
    %740 = vmatpush1.bf16.msra.mxu0 %v480
    %741 = vmatprep.subr.bf16.mxu0 0
    %742 = vmatpush2.bf16.msra.mxu0 0
    %743 = vmatprep.subr.bf16.mxu0 0
    %744 = vmatpush2.bf16.msra.mxu0 0
    %745 = vmatprep.subr.bf16.mxu0 0
    %746 = vmatpush2.bf16.msra.mxu0 0
    %747 = vmatprep.subr.bf16.mxu0 0
    %748 = vmatpush2.bf16.msra.mxu0 0
    %749 = vmatprep.subr.bf16.mxu0 0
    %750 = vmatpush2.bf16.msra.mxu0 0
    %751 = vmatprep.subr.bf16.mxu0 0
    %752 = vmatpush2.bf16.msra.mxu0 0
    %753 = vmatprep.subr.bf16.mxu0 0
    %754 = vmatpush2.bf16.msra.mxu0 0
    %755 = vmatprep.subr.bf16.mxu0 0
    %756 = vmatpush2.bf16.msra.mxu0 0
    %757 = vmatprep.mubr.bf16.mxu0 0
    %758 = vmatmul.mubr.bf16.gmra.mxu0 %v216
    %v759 = vpop.f32.mrf.mxu0
    %v760 = vadd.f32 0.0, %v759
    %v761 = vpop.f32.mrf.mxu0
    %v762 = vadd.f32 0.0, %v761
    %v763 = vpop.f32.mrf.mxu0
    %v764 = vpop.f32.mrf.mxu0
    %765 = vdwg.mxu0
    %v774 = vcombine.low %v637, %v639
    %v775 = vcombine.low %v678, %v680
    %v776 = vcombine.low %v719, %v721
    %v777 = vcombine.low %v760, %v762
    %v779 = vunpack.c.l.s4 1966171168
    %v780 = vunpack.c.0.s8 %v779
    %v781 = vlaneseq
    %v782 = vshrl.u32 %v781, 7
    %v783 = vsub.s32 %v780, %v782
    %v784 = vrot.slane %v774, %v783
    %v786 = vunpack.c.l.s4 1966171168
    %v787 = vunpack.c.0.s8 %v786
    %v788 = vlaneseq
    %v789 = vshrl.u32 %v788, 7
    %v790 = vsub.s32 %v787, %v789
    %v791 = vrot.slane %v775, %v790
    %v793 = vunpack.c.l.s4 1966171168
    %v794 = vunpack.c.0.s8 %v793
    %v795 = vlaneseq
    %v796 = vshrl.u32 %v795, 7
    %v797 = vsub.s32 %v794, %v796
    %v798 = vrot.slane %v776, %v797
    %v800 = vunpack.c.l.s4 1966171168
    %v801 = vunpack.c.0.s8 %v800
    %v802 = vlaneseq
    %v803 = vshrl.u32 %v802, 7
    %v804 = vsub.s32 %v801, %v803
    %v805 = vrot.slane %v777, %v804
    %v806 = vcombine.low %v784, %v791
    %v807 = vcombine.low %v798, %v805
    %v809 = vunpack.c.l.s4 1966171168
    %v810 = vunpack.c.0.s8 %v809
    %v811 = vlaneseq
    %v812 = vshrl.u32 %v811, 7
    %v813 = vsub.s32 %v810, %v812
    %v814 = vrot.slane %v806, %v813
    %v816 = vunpack.c.l.s4 1966171168
    %v817 = vunpack.c.0.s8 %v816
    %v818 = vlaneseq
    %v819 = vshrl.u32 %v818, 7
    %v820 = vsub.s32 %v817, %v819
    %v821 = vrot.slane %v807, %v820
    %v822 = vcombine.low %v814, %v821
    %v824 = vadd.f32 %v217, %v822
    %s825 = scalar_lea.vmem [#allocation6], 512
    %v826 = vld [vmem:[%s825] sm:$0xff]
    %v827 = vld [vmem:[%s825 + $0x8] sm:$0xff]
    %v828 = vld [vmem:[%s825 + $0x10] sm:$0xff]
    %v829 = vld [vmem:[%s825 + $0x18] sm:$0xff]
    %v830 = vld [vmem:[%s825 + $0x20] sm:$0xff]
    %v831 = vld [vmem:[%s825 + $0x28] sm:$0xff]
    %v832 = vld [vmem:[%s825 + $0x30] sm:$0xff]
    %v833 = vld [vmem:[%s825 + $0x38] sm:$0xff]
    %v834 = vld [vmem:[%s825 + $0x40] sm:$0xff]
    %v835 = vld [vmem:[%s825 + $0x48] sm:$0xff]
    %v836 = vld [vmem:[%s825 + $0x50] sm:$0xff]
    %v837 = vld [vmem:[%s825 + $0x58] sm:$0xff]
    %v838 = vld [vmem:[%s825 + $0x60] sm:$0xff]
    %v839 = vld [vmem:[%s825 + $0x68] sm:$0xff]
    %v840 = vld [vmem:[%s825 + $0x70] sm:$0xff]
    %v841 = vld [vmem:[%s825 + $0x78] sm:$0xff]
    %v842 = vld [vmem:[%s825 + $0x80] sm:$0xff]
    %v843 = vld [vmem:[%s825 + $0x88] sm:$0xff]
    %v844 = vld [vmem:[%s825 + $0x90] sm:$0xff]
    %v845 = vld [vmem:[%s825 + $0x98] sm:$0xff]
    %v846 = vld [vmem:[%s825 + $0xa0] sm:$0xff]
    %v847 = vld [vmem:[%s825 + $0xa8] sm:$0xff]
    %v848 = vld [vmem:[%s825 + $0xb0] sm:$0xff]
    %v849 = vld [vmem:[%s825 + $0xb8] sm:$0xff]
    %v850 = vld [vmem:[%s825 + $0xc0] sm:$0xff]
    %v851 = vld [vmem:[%s825 + $0xc8] sm:$0xff]
    %v852 = vld [vmem:[%s825 + $0xd0] sm:$0xff]
    %v853 = vld [vmem:[%s825 + $0xd8] sm:$0xff]
    %v854 = vld [vmem:[%s825 + $0xe0] sm:$0xff]
    %v855 = vld [vmem:[%s825 + $0xe8] sm:$0xff]
    %v856 = vld [vmem:[%s825 + $0xf0] sm:$0xff]
    %v857 = vld [vmem:[%s825 + $0xf8] sm:$0xff]
    %v858 = vld [vmem:[%s825 + $0x100] sm:$0xff]
    %v859 = vld [vmem:[%s825 + $0x108] sm:$0xff]
    %v860 = vld [vmem:[%s825 + $0x110] sm:$0xff]
    %v861 = vld [vmem:[%s825 + $0x118] sm:$0xff]
    %v862 = vld [vmem:[%s825 + $0x120] sm:$0xff]
    %v863 = vld [vmem:[%s825 + $0x128] sm:$0xff]
    %v864 = vld [vmem:[%s825 + $0x130] sm:$0xff]
    %v865 = vld [vmem:[%s825 + $0x138] sm:$0xff]
    %v866 = vld [vmem:[%s825 + $0x140] sm:$0xff]
    %v867 = vld [vmem:[%s825 + $0x148] sm:$0xff]
    %v868 = vld [vmem:[%s825 + $0x150] sm:$0xff]
    %v869 = vld [vmem:[%s825 + $0x158] sm:$0xff]
    %v870 = vld [vmem:[%s825 + $0x160] sm:$0xff]
    %v871 = vld [vmem:[%s825 + $0x168] sm:$0xff]
    %v872 = vld [vmem:[%s825 + $0x170] sm:$0xff]
    %v873 = vld [vmem:[%s825 + $0x178] sm:$0xff]
    %v874 = vld [vmem:[%s825 + $0x180] sm:$0xff]
    %v875 = vld [vmem:[%s825 + $0x188] sm:$0xff]
    %v876 = vld [vmem:[%s825 + $0x190] sm:$0xff]
    %v877 = vld [vmem:[%s825 + $0x198] sm:$0xff]
    %v878 = vld [vmem:[%s825 + $0x1a0] sm:$0xff]
    %v879 = vld [vmem:[%s825 + $0x1a8] sm:$0xff]
    %v880 = vld [vmem:[%s825 + $0x1b0] sm:$0xff]
    %v881 = vld [vmem:[%s825 + $0x1b8] sm:$0xff]
    %v882 = vld [vmem:[%s825 + $0x1c0] sm:$0xff]
    %v883 = vld [vmem:[%s825 + $0x1c8] sm:$0xff]
    %v884 = vld [vmem:[%s825 + $0x1d0] sm:$0xff]
    %v885 = vld [vmem:[%s825 + $0x1d8] sm:$0xff]
    %v886 = vld [vmem:[%s825 + $0x1e0] sm:$0xff]
    %v887 = vld [vmem:[%s825 + $0x1e8] sm:$0xff]
    %v888 = vld [vmem:[%s825 + $0x1f0] sm:$0xff]
    %v889 = vld [vmem:[%s825 + $0x1f8] sm:$0xff]
    %v891 = vshrl.u32 %v216, 16
    %v958 = vunpack.c.l.b16 %v826
    %v959 = vunpack.c.h.b16 %v826
    %v960 = vunpack.c.l.b16 %v827
    %v961 = vunpack.c.h.b16 %v827
    %v962 = vunpack.c.l.b16 %v828
    %v963 = vunpack.c.h.b16 %v828
    %v964 = vunpack.c.l.b16 %v829
    %v965 = vunpack.c.h.b16 %v829
    %v966 = vunpack.c.l.b16 %v830
    %v967 = vunpack.c.h.b16 %v830
    %v968 = vunpack.c.l.b16 %v831
    %v969 = vunpack.c.h.b16 %v831
    %v970 = vunpack.c.l.b16 %v832
    %v971 = vunpack.c.h.b16 %v832
    %v972 = vunpack.c.l.b16 %v833
    %v973 = vunpack.c.h.b16 %v833
    %v974 = vunpack.c.l.b16 %v834
    %v975 = vunpack.c.h.b16 %v834
    %v976 = vunpack.c.l.b16 %v835
    %v977 = vunpack.c.h.b16 %v835
    %v978 = vunpack.c.l.b16 %v836
    %v979 = vunpack.c.h.b16 %v836
    %v980 = vunpack.c.l.b16 %v837
    %v981 = vunpack.c.h.b16 %v837
    %v982 = vunpack.c.l.b16 %v838
    %v983 = vunpack.c.h.b16 %v838
    %v984 = vunpack.c.l.b16 %v839
    %v985 = vunpack.c.h.b16 %v839
    %v986 = vunpack.c.l.b16 %v840
    %v987 = vunpack.c.h.b16 %v840
    %v988 = vunpack.c.l.b16 %v841
    %v989 = vunpack.c.h.b16 %v841
    %v990 = vunpack.c.l.b16 %v842
    %v991 = vunpack.c.h.b16 %v842
    %v992 = vunpack.c.l.b16 %v843
    %v993 = vunpack.c.h.b16 %v843
    %v994 = vunpack.c.l.b16 %v844
    %v995 = vunpack.c.h.b16 %v844
    %v996 = vunpack.c.l.b16 %v845
    %v997 = vunpack.c.h.b16 %v845
    %v998 = vunpack.c.l.b16 %v846
    %v999 = vunpack.c.h.b16 %v846
    %v1000 = vunpack.c.l.b16 %v847
    %v1001 = vunpack.c.h.b16 %v847
    %v1002 = vunpack.c.l.b16 %v848
    %v1003 = vunpack.c.h.b16 %v848
    %v1004 = vunpack.c.l.b16 %v849
    %v1005 = vunpack.c.h.b16 %v849
    %v1006 = vunpack.c.l.b16 %v850
    %v1007 = vunpack.c.h.b16 %v850
    %v1008 = vunpack.c.l.b16 %v851
    %v1009 = vunpack.c.h.b16 %v851
    %v1010 = vunpack.c.l.b16 %v852
    %v1011 = vunpack.c.h.b16 %v852
    %v1012 = vunpack.c.l.b16 %v853
    %v1013 = vunpack.c.h.b16 %v853
    %v1014 = vunpack.c.l.b16 %v854
    %v1015 = vunpack.c.h.b16 %v854
    %v1016 = vunpack.c.l.b16 %v855
    %v1017 = vunpack.c.h.b16 %v855
    %v1018 = vunpack.c.l.b16 %v856
    %v1019 = vunpack.c.h.b16 %v856
    %v1020 = vunpack.c.l.b16 %v857
    %v1021 = vunpack.c.h.b16 %v857
    %v1022 = vunpack.c.l.b16 %v858
    %v1023 = vunpack.c.h.b16 %v858
    %v1024 = vunpack.c.l.b16 %v859
    %v1025 = vunpack.c.h.b16 %v859
    %v1026 = vunpack.c.l.b16 %v860
    %v1027 = vunpack.c.h.b16 %v860
    %v1028 = vunpack.c.l.b16 %v861
    %v1029 = vunpack.c.h.b16 %v861
    %v1030 = vunpack.c.l.b16 %v862
    %v1031 = vunpack.c.h.b16 %v862
    %v1032 = vunpack.c.l.b16 %v863
    %v1033 = vunpack.c.h.b16 %v863
    %v1034 = vunpack.c.l.b16 %v864
    %v1035 = vunpack.c.h.b16 %v864
    %v1036 = vunpack.c.l.b16 %v865
    %v1037 = vunpack.c.h.b16 %v865
    %v1038 = vunpack.c.l.b16 %v866
    %v1039 = vunpack.c.h.b16 %v866
    %v1040 = vunpack.c.l.b16 %v867
    %v1041 = vunpack.c.h.b16 %v867
    %v1042 = vunpack.c.l.b16 %v868
    %v1043 = vunpack.c.h.b16 %v868
    %v1044 = vunpack.c.l.b16 %v869
    %v1045 = vunpack.c.h.b16 %v869
    %v1046 = vunpack.c.l.b16 %v870
    %v1047 = vunpack.c.h.b16 %v870
    %v1048 = vunpack.c.l.b16 %v871
    %v1049 = vunpack.c.h.b16 %v871
    %v1050 = vunpack.c.l.b16 %v872
    %v1051 = vunpack.c.h.b16 %v872
    %v1052 = vunpack.c.l.b16 %v873
    %v1053 = vunpack.c.h.b16 %v873
    %v1054 = vunpack.c.l.b16 %v874
    %v1055 = vunpack.c.h.b16 %v874
    %v1056 = vunpack.c.l.b16 %v875
    %v1057 = vunpack.c.h.b16 %v875
    %v1058 = vunpack.c.l.b16 %v876
    %v1059 = vunpack.c.h.b16 %v876
    %v1060 = vunpack.c.l.b16 %v877
    %v1061 = vunpack.c.h.b16 %v877
    %v1062 = vunpack.c.l.b16 %v878
    %v1063 = vunpack.c.h.b16 %v878
    %v1064 = vunpack.c.l.b16 %v879
    %v1065 = vunpack.c.h.b16 %v879
    %v1066 = vunpack.c.l.b16 %v880
    %v1067 = vunpack.c.h.b16 %v880
    %v1068 = vunpack.c.l.b16 %v881
    %v1069 = vunpack.c.h.b16 %v881
    %v1070 = vunpack.c.l.b16 %v882
    %v1071 = vunpack.c.h.b16 %v882
    %v1072 = vunpack.c.l.b16 %v883
    %v1073 = vunpack.c.h.b16 %v883
    %v1074 = vunpack.c.l.b16 %v884
    %v1075 = vunpack.c.h.b16 %v884
    %v1076 = vunpack.c.l.b16 %v885
    %v1077 = vunpack.c.h.b16 %v885
    %v1078 = vunpack.c.l.b16 %v886
    %v1079 = vunpack.c.h.b16 %v886
    %v1080 = vunpack.c.l.b16 %v887
    %v1081 = vunpack.c.h.b16 %v887
    %v1082 = vunpack.c.l.b16 %v888
    %v1083 = vunpack.c.h.b16 %v888
    %v1084 = vunpack.c.l.b16 %v889
    %v1085 = vunpack.c.h.b16 %v889
    %v1086 = vpack.c.b16 %v966, %v958
    %v1087 = vpack.c.b16 %v967, %v959
    %v1088 = vpack.c.b16 %v968, %v960
    %v1089 = vpack.c.b16 %v969, %v961
    %v1090 = vpack.c.b16 %v970, %v962
    %v1091 = vpack.c.b16 %v971, %v963
    %v1092 = vpack.c.b16 %v972, %v964
    %v1093 = vpack.c.b16 %v973, %v965
    %v1094 = vpack.c.b16 %v982, %v974
    %v1095 = vpack.c.b16 %v983, %v975
    %v1096 = vpack.c.b16 %v984, %v976
    %v1097 = vpack.c.b16 %v985, %v977
    %v1098 = vpack.c.b16 %v986, %v978
    %v1099 = vpack.c.b16 %v987, %v979
    %v1100 = vpack.c.b16 %v988, %v980
    %v1101 = vpack.c.b16 %v989, %v981
    %v1102 = vpack.c.b16 %v998, %v990
    %v1103 = vpack.c.b16 %v999, %v991
    %v1104 = vpack.c.b16 %v1000, %v992
    %v1105 = vpack.c.b16 %v1001, %v993
    %v1106 = vpack.c.b16 %v1002, %v994
    %v1107 = vpack.c.b16 %v1003, %v995
    %v1108 = vpack.c.b16 %v1004, %v996
    %v1109 = vpack.c.b16 %v1005, %v997
    %v1110 = vpack.c.b16 %v1014, %v1006
    %v1111 = vpack.c.b16 %v1015, %v1007
    %v1112 = vpack.c.b16 %v1016, %v1008
    %v1113 = vpack.c.b16 %v1017, %v1009
    %v1114 = vpack.c.b16 %v1018, %v1010
    %v1115 = vpack.c.b16 %v1019, %v1011
    %v1116 = vpack.c.b16 %v1020, %v1012
    %v1117 = vpack.c.b16 %v1021, %v1013
    %v1118 = vpack.c.b16 %v1030, %v1022
    %v1119 = vpack.c.b16 %v1031, %v1023
    %v1120 = vpack.c.b16 %v1032, %v1024
    %v1121 = vpack.c.b16 %v1033, %v1025
    %v1122 = vpack.c.b16 %v1034, %v1026
    %v1123 = vpack.c.b16 %v1035, %v1027
    %v1124 = vpack.c.b16 %v1036, %v1028
    %v1125 = vpack.c.b16 %v1037, %v1029
    %v1126 = vpack.c.b16 %v1046, %v1038
    %v1127 = vpack.c.b16 %v1047, %v1039
    %v1128 = vpack.c.b16 %v1048, %v1040
    %v1129 = vpack.c.b16 %v1049, %v1041
    %v1130 = vpack.c.b16 %v1050, %v1042
    %v1131 = vpack.c.b16 %v1051, %v1043
    %v1132 = vpack.c.b16 %v1052, %v1044
    %v1133 = vpack.c.b16 %v1053, %v1045
    %v1134 = vpack.c.b16 %v1062, %v1054
    %v1135 = vpack.c.b16 %v1063, %v1055
    %v1136 = vpack.c.b16 %v1064, %v1056
    %v1137 = vpack.c.b16 %v1065, %v1057
    %v1138 = vpack.c.b16 %v1066, %v1058
    %v1139 = vpack.c.b16 %v1067, %v1059
    %v1140 = vpack.c.b16 %v1068, %v1060
    %v1141 = vpack.c.b16 %v1069, %v1061
    %v1142 = vpack.c.b16 %v1078, %v1070
    %v1143 = vpack.c.b16 %v1079, %v1071
    %v1144 = vpack.c.b16 %v1080, %v1072
    %v1145 = vpack.c.b16 %v1081, %v1073
    %v1146 = vpack.c.b16 %v1082, %v1074
    %v1147 = vpack.c.b16 %v1083, %v1075
    %v1148 = vpack.c.b16 %v1084, %v1076
    %v1149 = vpack.c.b16 %v1085, %v1077
    %1214 = vmatprep.subr.bf16.mxu0 %v1143
    %1215 = vmatpush1.bf16.msra.mxu0 %v1142
    %1216 = vmatprep.subr.bf16.mxu0 %v1135
    %1217 = vmatpush1.bf16.msra.mxu0 %v1134
    %1218 = vmatprep.subr.bf16.mxu0 %v1127
    %1219 = vmatpush1.bf16.msra.mxu0 %v1126
    %1220 = vmatprep.subr.bf16.mxu0 %v1119
    %1221 = vmatpush1.bf16.msra.mxu0 %v1118
    %1222 = vmatprep.subr.bf16.mxu0 %v1111
    %1223 = vmatpush1.bf16.msra.mxu0 %v1110
    %1224 = vmatprep.subr.bf16.mxu0 %v1103
    %1225 = vmatpush1.bf16.msra.mxu0 %v1102
    %1226 = vmatprep.subr.bf16.mxu0 %v1095
    %1227 = vmatpush1.bf16.msra.mxu0 %v1094
    %1228 = vmatprep.subr.bf16.mxu0 %v1087
    %1229 = vmatpush1.bf16.msra.mxu0 %v1086
    %1230 = vmatprep.subr.bf16.mxu0 0
    %1231 = vmatpush2.bf16.msra.mxu0 0
    %1232 = vmatprep.subr.bf16.mxu0 0
    %1233 = vmatpush2.bf16.msra.mxu0 0
    %1234 = vmatprep.subr.bf16.mxu0 0
    %1235 = vmatpush2.bf16.msra.mxu0 0
    %1236 = vmatprep.subr.bf16.mxu0 0
    %1237 = vmatpush2.bf16.msra.mxu0 0
    %1238 = vmatprep.subr.bf16.mxu0 0
    %1239 = vmatpush2.bf16.msra.mxu0 0
    %1240 = vmatprep.subr.bf16.mxu0 0
    %1241 = vmatpush2.bf16.msra.mxu0 0
    %1242 = vmatprep.subr.bf16.mxu0 0
    %1243 = vmatpush2.bf16.msra.mxu0 0
    %1244 = vmatprep.subr.bf16.mxu0 0
    %1245 = vmatpush2.bf16.msra.mxu0 0
    %1246 = vmatprep.mubr.bf16.mxu0 0
    %1247 = vmatmul.mubr.bf16.gmra.mxu0 %v891
    %v1248 = vpop.f32.mrf.mxu0
    %v1249 = vadd.f32 0.0, %v1248
    %v1250 = vpop.f32.mrf.mxu0
    %v1251 = vadd.f32 0.0, %v1250
    %v1252 = vpop.f32.mrf.mxu0
    %v1253 = vpop.f32.mrf.mxu0
    %1254 = vdwg.mxu0
    %1255 = vmatprep.subr.bf16.mxu0 %v1145
    %1256 = vmatpush1.bf16.msra.mxu0 %v1144
    %1257 = vmatprep.subr.bf16.mxu0 %v1137
    %1258 = vmatpush1.bf16.msra.mxu0 %v1136
    %1259 = vmatprep.subr.bf16.mxu0 %v1129
    %1260 = vmatpush1.bf16.msra.mxu0 %v1128
    %1261 = vmatprep.subr.bf16.mxu0 %v1121
    %1262 = vmatpush1.bf16.msra.mxu0 %v1120
    %1263 = vmatprep.subr.bf16.mxu0 %v1113
    %1264 = vmatpush1.bf16.msra.mxu0 %v1112
    %1265 = vmatprep.subr.bf16.mxu0 %v1105
    %1266 = vmatpush1.bf16.msra.mxu0 %v1104
    %1267 = vmatprep.subr.bf16.mxu0 %v1097
    %1268 = vmatpush1.bf16.msra.mxu0 %v1096
    %1269 = vmatprep.subr.bf16.mxu0 %v1089
    %1270 = vmatpush1.bf16.msra.mxu0 %v1088
    %1271 = vmatprep.subr.bf16.mxu0 0
    %1272 = vmatpush2.bf16.msra.mxu0 0
    %1273 = vmatprep.subr.bf16.mxu0 0
    %1274 = vmatpush2.bf16.msra.mxu0 0
    %1275 = vmatprep.subr.bf16.mxu0 0
    %1276 = vmatpush2.bf16.msra.mxu0 0
    %1277 = vmatprep.subr.bf16.mxu0 0
    %1278 = vmatpush2.bf16.msra.mxu0 0
    %1279 = vmatprep.subr.bf16.mxu0 0
    %1280 = vmatpush2.bf16.msra.mxu0 0
    %1281 = vmatprep.subr.bf16.mxu0 0
    %1282 = vmatpush2.bf16.msra.mxu0 0
    %1283 = vmatprep.subr.bf16.mxu0 0
    %1284 = vmatpush2.bf16.msra.mxu0 0
    %1285 = vmatprep.subr.bf16.mxu0 0
    %1286 = vmatpush2.bf16.msra.mxu0 0
    %1287 = vmatprep.mubr.bf16.mxu0 0
    %1288 = vmatmul.mubr.bf16.gmra.mxu0 %v891
    %v1289 = vpop.f32.mrf.mxu0
    %v1290 = vadd.f32 0.0, %v1289
    %v1291 = vpop.f32.mrf.mxu0
    %v1292 = vadd.f32 0.0, %v1291
    %v1293 = vpop.f32.mrf.mxu0
    %v1294 = vpop.f32.mrf.mxu0
    %1295 = vdwg.mxu0
    %1296 = vmatprep.subr.bf16.mxu0 %v1147
    %1297 = vmatpush1.bf16.msra.mxu0 %v1146
    %1298 = vmatprep.subr.bf16.mxu0 %v1139
    %1299 = vmatpush1.bf16.msra.mxu0 %v1138
    %1300 = vmatprep.subr.bf16.mxu0 %v1131
    %1301 = vmatpush1.bf16.msra.mxu0 %v1130
    %1302 = vmatprep.subr.bf16.mxu0 %v1123
    %1303 = vmatpush1.bf16.msra.mxu0 %v1122
    %1304 = vmatprep.subr.bf16.mxu0 %v1115
    %1305 = vmatpush1.bf16.msra.mxu0 %v1114
    %1306 = vmatprep.subr.bf16.mxu0 %v1107
    %1307 = vmatpush1.bf16.msra.mxu0 %v1106
    %1308 = vmatprep.subr.bf16.mxu0 %v1099
    %1309 = vmatpush1.bf16.msra.mxu0 %v1098
    %1310 = vmatprep.subr.bf16.mxu0 %v1091
    %1311 = vmatpush1.bf16.msra.mxu0 %v1090
    %1312 = vmatprep.subr.bf16.mxu0 0
    %1313 = vmatpush2.bf16.msra.mxu0 0
    %1314 = vmatprep.subr.bf16.mxu0 0
    %1315 = vmatpush2.bf16.msra.mxu0 0
    %1316 = vmatprep.subr.bf16.mxu0 0
    %1317 = vmatpush2.bf16.msra.mxu0 0
    %1318 = vmatprep.subr.bf16.mxu0 0
    %1319 = vmatpush2.bf16.msra.mxu0 0
    %1320 = vmatprep.subr.bf16.mxu0 0
    %1321 = vmatpush2.bf16.msra.mxu0 0
    %1322 = vmatprep.subr.bf16.mxu0 0
    %1323 = vmatpush2.bf16.msra.mxu0 0
    %1324 = vmatprep.subr.bf16.mxu0 0
    %1325 = vmatpush2.bf16.msra.mxu0 0
    %1326 = vmatprep.subr.bf16.mxu0 0
    %1327 = vmatpush2.bf16.msra.mxu0 0
    %1328 = vmatprep.mubr.bf16.mxu0 0
    %1329 = vmatmul.mubr.bf16.gmra.mxu0 %v891
    %v1330 = vpop.f32.mrf.mxu0
    %v1331 = vadd.f32 0.0, %v1330
    %v1332 = vpop.f32.mrf.mxu0
    %v1333 = vadd.f32 0.0, %v1332
    %v1334 = vpop.f32.mrf.mxu0
    %v1335 = vpop.f32.mrf.mxu0
    %1336 = vdwg.mxu0
    %1337 = vmatprep.subr.bf16.mxu0 %v1149
    %1338 = vmatpush1.bf16.msra.mxu0 %v1148
    %1339 = vmatprep.subr.bf16.mxu0 %v1141
    %1340 = vmatpush1.bf16.msra.mxu0 %v1140
    %1341 = vmatprep.subr.bf16.mxu0 %v1133
    %1342 = vmatpush1.bf16.msra.mxu0 %v1132
    %1343 = vmatprep.subr.bf16.mxu0 %v1125
    %1344 = vmatpush1.bf16.msra.mxu0 %v1124
    %1345 = vmatprep.subr.bf16.mxu0 %v1117
    %1346 = vmatpush1.bf16.msra.mxu0 %v1116
    %1347 = vmatprep.subr.bf16.mxu0 %v1109
    %1348 = vmatpush1.bf16.msra.mxu0 %v1108
    %1349 = vmatprep.subr.bf16.mxu0 %v1101
    %1350 = vmatpush1.bf16.msra.mxu0 %v1100
    %1351 = vmatprep.subr.bf16.mxu0 %v1093
    %1352 = vmatpush1.bf16.msra.mxu0 %v1092
    %1353 = vmatprep.subr.bf16.mxu0 0
    %1354 = vmatpush2.bf16.msra.mxu0 0
    %1355 = vmatprep.subr.bf16.mxu0 0
    %1356 = vmatpush2.bf16.msra.mxu0 0
    %1357 = vmatprep.subr.bf16.mxu0 0
    %1358 = vmatpush2.bf16.msra.mxu0 0
    %1359 = vmatprep.subr.bf16.mxu0 0
    %1360 = vmatpush2.bf16.msra.mxu0 0
    %1361 = vmatprep.subr.bf16.mxu0 0
    %1362 = vmatpush2.bf16.msra.mxu0 0
    %1363 = vmatprep.subr.bf16.mxu0 0
    %1364 = vmatpush2.bf16.msra.mxu0 0
    %1365 = vmatprep.subr.bf16.mxu0 0
    %1366 = vmatpush2.bf16.msra.mxu0 0
    %1367 = vmatprep.subr.bf16.mxu0 0
    %1368 = vmatpush2.bf16.msra.mxu0 0
    %1369 = vmatprep.mubr.bf16.mxu0 0
    %1370 = vmatmul.mubr.bf16.gmra.mxu0 %v891
    %v1371 = vpop.f32.mrf.mxu0
    %v1372 = vadd.f32 0.0, %v1371
    %v1373 = vpop.f32.mrf.mxu0
    %v1374 = vadd.f32 0.0, %v1373
    %v1375 = vpop.f32.mrf.mxu0
    %v1376 = vpop.f32.mrf.mxu0
    %1377 = vdwg.mxu0
    %v1386 = vcombine.low %v1249, %v1251
    %v1387 = vcombine.low %v1290, %v1292
    %v1388 = vcombine.low %v1331, %v1333
    %v1389 = vcombine.low %v1372, %v1374
    %v1391 = vunpack.c.l.s4 1966171168
    %v1392 = vunpack.c.0.s8 %v1391
    %v1393 = vlaneseq
    %v1394 = vshrl.u32 %v1393, 7
    %v1395 = vsub.s32 %v1392, %v1394
    %v1396 = vrot.slane %v1386, %v1395
    %v1398 = vunpack.c.l.s4 1966171168
    %v1399 = vunpack.c.0.s8 %v1398
    %v1400 = vlaneseq
    %v1401 = vshrl.u32 %v1400, 7
    %v1402 = vsub.s32 %v1399, %v1401
    %v1403 = vrot.slane %v1387, %v1402
    %v1405 = vunpack.c.l.s4 1966171168
    %v1406 = vunpack.c.0.s8 %v1405
    %v1407 = vlaneseq
    %v1408 = vshrl.u32 %v1407, 7
    %v1409 = vsub.s32 %v1406, %v1408
    %v1410 = vrot.slane %v1388, %v1409
    %v1412 = vunpack.c.l.s4 1966171168
    %v1413 = vunpack.c.0.s8 %v1412
    %v1414 = vlaneseq
    %v1415 = vshrl.u32 %v1414, 7
    %v1416 = vsub.s32 %v1413, %v1415
    %v1417 = vrot.slane %v1389, %v1416
    %v1418 = vcombine.low %v1396, %v1403
    %v1419 = vcombine.low %v1410, %v1417
    %v1421 = vunpack.c.l.s4 1966171168
    %v1422 = vunpack.c.0.s8 %v1421
    %v1423 = vlaneseq
    %v1424 = vshrl.u32 %v1423, 7
    %v1425 = vsub.s32 %v1422, %v1424
    %v1426 = vrot.slane %v1418, %v1425
    %v1428 = vunpack.c.l.s4 1966171168
    %v1429 = vunpack.c.0.s8 %v1428
    %v1430 = vlaneseq
    %v1431 = vshrl.u32 %v1430, 7
    %v1432 = vsub.s32 %v1429, %v1431
    %v1433 = vrot.slane %v1419, %v1432
    %v1434 = vcombine.low %v1426, %v1433
    %v1436 = vadd.f32 %v824, %v1434
    %s1437 = scalar_lea.vmem [#allocation6], 1024
    %v1438 = vld [vmem:[%s1437] sm:$0xff]
    %v1439 = vld [vmem:[%s1437 + $0x8] sm:$0xff]
    %v1440 = vld [vmem:[%s1437 + $0x10] sm:$0xff]
    %v1441 = vld [vmem:[%s1437 + $0x18] sm:$0xff]
    %v1442 = vld [vmem:[%s1437 + $0x20] sm:$0xff]
    %v1443 = vld [vmem:[%s1437 + $0x28] sm:$0xff]
    %v1444 = vld [vmem:[%s1437 + $0x30] sm:$0xff]
    %v1445 = vld [vmem:[%s1437 + $0x38] sm:$0xff]
    %v1446 = vld [vmem:[%s1437 + $0x40] sm:$0xff]
    %v1447 = vld [vmem:[%s1437 + $0x48] sm:$0xff]
    %v1448 = vld [vmem:[%s1437 + $0x50] sm:$0xff]
    %v1449 = vld [vmem:[%s1437 + $0x58] sm:$0xff]
    %v1450 = vld [vmem:[%s1437 + $0x60] sm:$0xff]
    %v1451 = vld [vmem:[%s1437 + $0x68] sm:$0xff]
    %v1452 = vld [vmem:[%s1437 + $0x70] sm:$0xff]
    %v1453 = vld [vmem:[%s1437 + $0x78] sm:$0xff]
    %v1454 = vld [vmem:[%s1437 + $0x80] sm:$0xff]
    %v1455 = vld [vmem:[%s1437 + $0x88] sm:$0xff]
    %v1456 = vld [vmem:[%s1437 + $0x90] sm:$0xff]
    %v1457 = vld [vmem:[%s1437 + $0x98] sm:$0xff]
    %v1458 = vld [vmem:[%s1437 + $0xa0] sm:$0xff]
    %v1459 = vld [vmem:[%s1437 + $0xa8] sm:$0xff]
    %v1460 = vld [vmem:[%s1437 + $0xb0] sm:$0xff]
    %v1461 = vld [vmem:[%s1437 + $0xb8] sm:$0xff]
    %v1462 = vld [vmem:[%s1437 + $0xc0] sm:$0xff]
    %v1463 = vld [vmem:[%s1437 + $0xc8] sm:$0xff]
    %v1464 = vld [vmem:[%s1437 + $0xd0] sm:$0xff]
    %v1465 = vld [vmem:[%s1437 + $0xd8] sm:$0xff]
    %v1466 = vld [vmem:[%s1437 + $0xe0] sm:$0xff]
    %v1467 = vld [vmem:[%s1437 + $0xe8] sm:$0xff]
    %v1468 = vld [vmem:[%s1437 + $0xf0] sm:$0xff]
    %v1469 = vld [vmem:[%s1437 + $0xf8] sm:$0xff]
    %v1470 = vld [vmem:[%s1437 + $0x100] sm:$0xff]
    %v1471 = vld [vmem:[%s1437 + $0x108] sm:$0xff]
    %v1472 = vld [vmem:[%s1437 + $0x110] sm:$0xff]
    %v1473 = vld [vmem:[%s1437 + $0x118] sm:$0xff]
    %v1474 = vld [vmem:[%s1437 + $0x120] sm:$0xff]
    %v1475 = vld [vmem:[%s1437 + $0x128] sm:$0xff]
    %v1476 = vld [vmem:[%s1437 + $0x130] sm:$0xff]
    %v1477 = vld [vmem:[%s1437 + $0x138] sm:$0xff]
    %v1478 = vld [vmem:[%s1437 + $0x140] sm:$0xff]
    %v1479 = vld [vmem:[%s1437 + $0x148] sm:$0xff]
    %v1480 = vld [vmem:[%s1437 + $0x150] sm:$0xff]
    %v1481 = vld [vmem:[%s1437 + $0x158] sm:$0xff]
    %v1482 = vld [vmem:[%s1437 + $0x160] sm:$0xff]
    %v1483 = vld [vmem:[%s1437 + $0x168] sm:$0xff]
    %v1484 = vld [vmem:[%s1437 + $0x170] sm:$0xff]
    %v1485 = vld [vmem:[%s1437 + $0x178] sm:$0xff]
    %v1486 = vld [vmem:[%s1437 + $0x180] sm:$0xff]
    %v1487 = vld [vmem:[%s1437 + $0x188] sm:$0xff]
    %v1488 = vld [vmem:[%s1437 + $0x190] sm:$0xff]
    %v1489 = vld [vmem:[%s1437 + $0x198] sm:$0xff]
    %v1490 = vld [vmem:[%s1437 + $0x1a0] sm:$0xff]
    %v1491 = vld [vmem:[%s1437 + $0x1a8] sm:$0xff]
    %v1492 = vld [vmem:[%s1437 + $0x1b0] sm:$0xff]
    %v1493 = vld [vmem:[%s1437 + $0x1b8] sm:$0xff]
    %v1494 = vld [vmem:[%s1437 + $0x1c0] sm:$0xff]
    %v1495 = vld [vmem:[%s1437 + $0x1c8] sm:$0xff]
    %v1496 = vld [vmem:[%s1437 + $0x1d0] sm:$0xff]
    %v1497 = vld [vmem:[%s1437 + $0x1d8] sm:$0xff]
    %v1498 = vld [vmem:[%s1437 + $0x1e0] sm:$0xff]
    %v1499 = vld [vmem:[%s1437 + $0x1e8] sm:$0xff]
    %v1500 = vld [vmem:[%s1437 + $0x1f0] sm:$0xff]
    %v1501 = vld [vmem:[%s1437 + $0x1f8] sm:$0xff]
    %v1503 = vrot.slane %v216, 1
    %v1569 = vunpack.c.l.b16 %v1438
    %v1570 = vunpack.c.h.b16 %v1438
    %v1571 = vunpack.c.l.b16 %v1439
    %v1572 = vunpack.c.h.b16 %v1439
    %v1573 = vunpack.c.l.b16 %v1440
    %v1574 = vunpack.c.h.b16 %v1440
    %v1575 = vunpack.c.l.b16 %v1441
    %v1576 = vunpack.c.h.b16 %v1441
    %v1577 = vunpack.c.l.b16 %v1442
    %v1578 = vunpack.c.h.b16 %v1442
    %v1579 = vunpack.c.l.b16 %v1443
    %v1580 = vunpack.c.h.b16 %v1443
    %v1581 = vunpack.c.l.b16 %v1444
    %v1582 = vunpack.c.h.b16 %v1444
    %v1583 = vunpack.c.l.b16 %v1445
    %v1584 = vunpack.c.h.b16 %v1445
    %v1585 = vunpack.c.l.b16 %v1446
    %v1586 = vunpack.c.h.b16 %v1446
    %v1587 = vunpack.c.l.b16 %v1447
    %v1588 = vunpack.c.h.b16 %v1447
    %v1589 = vunpack.c.l.b16 %v1448
    %v1590 = vunpack.c.h.b16 %v1448
    %v1591 = vunpack.c.l.b16 %v1449
    %v1592 = vunpack.c.h.b16 %v1449
    %v1593 = vunpack.c.l.b16 %v1450
    %v1594 = vunpack.c.h.b16 %v1450
    %v1595 = vunpack.c.l.b16 %v1451
    %v1596 = vunpack.c.h.b16 %v1451
    %v1597 = vunpack.c.l.b16 %v1452
    %v1598 = vunpack.c.h.b16 %v1452
    %v1599 = vunpack.c.l.b16 %v1453
    %v1600 = vunpack.c.h.b16 %v1453
    %v1601 = vunpack.c.l.b16 %v1454
    %v1602 = vunpack.c.h.b16 %v1454
    %v1603 = vunpack.c.l.b16 %v1455
    %v1604 = vunpack.c.h.b16 %v1455
    %v1605 = vunpack.c.l.b16 %v1456
    %v1606 = vunpack.c.h.b16 %v1456
    %v1607 = vunpack.c.l.b16 %v1457
    %v1608 = vunpack.c.h.b16 %v1457
    %v1609 = vunpack.c.l.b16 %v1458
    %v1610 = vunpack.c.h.b16 %v1458
    %v1611 = vunpack.c.l.b16 %v1459
    %v1612 = vunpack.c.h.b16 %v1459
    %v1613 = vunpack.c.l.b16 %v1460
    %v1614 = vunpack.c.h.b16 %v1460
    %v1615 = vunpack.c.l.b16 %v1461
    %v1616 = vunpack.c.h.b16 %v1461
    %v1617 = vunpack.c.l.b16 %v1462
    %v1618 = vunpack.c.h.b16 %v1462
    %v1619 = vunpack.c.l.b16 %v1463
    %v1620 = vunpack.c.h.b16 %v1463
    %v1621 = vunpack.c.l.b16 %v1464
    %v1622 = vunpack.c.h.b16 %v1464
    %v1623 = vunpack.c.l.b16 %v1465
    %v1624 = vunpack.c.h.b16 %v1465
    %v1625 = vunpack.c.l.b16 %v1466
    %v1626 = vunpack.c.h.b16 %v1466
    %v1627 = vunpack.c.l.b16 %v1467
    %v1628 = vunpack.c.h.b16 %v1467
    %v1629 = vunpack.c.l.b16 %v1468
    %v1630 = vunpack.c.h.b16 %v1468
    %v1631 = vunpack.c.l.b16 %v1469
    %v1632 = vunpack.c.h.b16 %v1469
    %v1633 = vunpack.c.l.b16 %v1470
    %v1634 = vunpack.c.h.b16 %v1470
    %v1635 = vunpack.c.l.b16 %v1471
    %v1636 = vunpack.c.h.b16 %v1471
    %v1637 = vunpack.c.l.b16 %v1472
    %v1638 = vunpack.c.h.b16 %v1472
    %v1639 = vunpack.c.l.b16 %v1473
    %v1640 = vunpack.c.h.b16 %v1473
    %v1641 = vunpack.c.l.b16 %v1474
    %v1642 = vunpack.c.h.b16 %v1474
    %v1643 = vunpack.c.l.b16 %v1475
    %v1644 = vunpack.c.h.b16 %v1475
    %v1645 = vunpack.c.l.b16 %v1476
    %v1646 = vunpack.c.h.b16 %v1476
    %v1647 = vunpack.c.l.b16 %v1477
    %v1648 = vunpack.c.h.b16 %v1477
    %v1649 = vunpack.c.l.b16 %v1478
    %v1650 = vunpack.c.h.b16 %v1478
    %v1651 = vunpack.c.l.b16 %v1479
    %v1652 = vunpack.c.h.b16 %v1479
    %v1653 = vunpack.c.l.b16 %v1480
    %v1654 = vunpack.c.h.b16 %v1480
    %v1655 = vunpack.c.l.b16 %v1481
    %v1656 = vunpack.c.h.b16 %v1481
    %v1657 = vunpack.c.l.b16 %v1482
    %v1658 = vunpack.c.h.b16 %v1482
    %v1659 = vunpack.c.l.b16 %v1483
    %v1660 = vunpack.c.h.b16 %v1483
    %v1661 = vunpack.c.l.b16 %v1484
    %v1662 = vunpack.c.h.b16 %v1484
    %v1663 = vunpack.c.l.b16 %v1485
    %v1664 = vunpack.c.h.b16 %v1485
    %v1665 = vunpack.c.l.b16 %v1486
    %v1666 = vunpack.c.h.b16 %v1486
    %v1667 = vunpack.c.l.b16 %v1487
    %v1668 = vunpack.c.h.b16 %v1487
    %v1669 = vunpack.c.l.b16 %v1488
    %v1670 = vunpack.c.h.b16 %v1488
    %v1671 = vunpack.c.l.b16 %v1489
    %v1672 = vunpack.c.h.b16 %v1489
    %v1673 = vunpack.c.l.b16 %v1490
    %v1674 = vunpack.c.h.b16 %v1490
    %v1675 = vunpack.c.l.b16 %v1491
    %v1676 = vunpack.c.h.b16 %v1491
    %v1677 = vunpack.c.l.b16 %v1492
    %v1678 = vunpack.c.h.b16 %v1492
    %v1679 = vunpack.c.l.b16 %v1493
    %v1680 = vunpack.c.h.b16 %v1493
    %v1681 = vunpack.c.l.b16 %v1494
    %v1682 = vunpack.c.h.b16 %v1494
    %v1683 = vunpack.c.l.b16 %v1495
    %v1684 = vunpack.c.h.b16 %v1495
    %v1685 = vunpack.c.l.b16 %v1496
    %v1686 = vunpack.c.h.b16 %v1496
    %v1687 = vunpack.c.l.b16 %v1497
    %v1688 = vunpack.c.h.b16 %v1497
    %v1689 = vunpack.c.l.b16 %v1498
    %v1690 = vunpack.c.h.b16 %v1498
    %v1691 = vunpack.c.l.b16 %v1499
    %v1692 = vunpack.c.h.b16 %v1499
    %v1693 = vunpack.c.l.b16 %v1500
    %v1694 = vunpack.c.h.b16 %v1500
    %v1695 = vunpack.c.l.b16 %v1501
    %v1696 = vunpack.c.h.b16 %v1501
    %v1697 = vpack.c.b16 %v1577, %v1569
    %v1698 = vpack.c.b16 %v1578, %v1570
    %v1699 = vpack.c.b16 %v1579, %v1571
    %v1700 = vpack.c.b16 %v1580, %v1572
    %v1701 = vpack.c.b16 %v1581, %v1573
    %v1702 = vpack.c.b16 %v1582, %v1574
    %v1703 = vpack.c.b16 %v1583, %v1575
    %v1704 = vpack.c.b16 %v1584, %v1576
    %v1705 = vpack.c.b16 %v1593, %v1585
    %v1706 = vpack.c.b16 %v1594, %v1586
    %v1707 = vpack.c.b16 %v1595, %v1587
    %v1708 = vpack.c.b16 %v1596, %v1588
    %v1709 = vpack.c.b16 %v1597, %v1589
    %v1710 = vpack.c.b16 %v1598, %v1590
    %v1711 = vpack.c.b16 %v1599, %v1591
    %v1712 = vpack.c.b16 %v1600, %v1592
    %v1713 = vpack.c.b16 %v1609, %v1601
    %v1714 = vpack.c.b16 %v1610, %v1602
    %v1715 = vpack.c.b16 %v1611, %v1603
    %v1716 = vpack.c.b16 %v1612, %v1604
    %v1717 = vpack.c.b16 %v1613, %v1605
    %v1718 = vpack.c.b16 %v1614, %v1606
    %v1719 = vpack.c.b16 %v1615, %v1607
    %v1720 = vpack.c.b16 %v1616, %v1608
    %v1721 = vpack.c.b16 %v1625, %v1617
    %v1722 = vpack.c.b16 %v1626, %v1618
    %v1723 = vpack.c.b16 %v1627, %v1619
    %v1724 = vpack.c.b16 %v1628, %v1620
    %v1725 = vpack.c.b16 %v1629, %v1621
    %v1726 = vpack.c.b16 %v1630, %v1622
    %v1727 = vpack.c.b16 %v1631, %v1623
    %v1728 = vpack.c.b16 %v1632, %v1624
    %v1729 = vpack.c.b16 %v1641, %v1633
    %v1730 = vpack.c.b16 %v1642, %v1634
    %v1731 = vpack.c.b16 %v1643, %v1635
    %v1732 = vpack.c.b16 %v1644, %v1636
    %v1733 = vpack.c.b16 %v1645, %v1637
    %v1734 = vpack.c.b16 %v1646, %v1638
    %v1735 = vpack.c.b16 %v1647, %v1639
    %v1736 = vpack.c.b16 %v1648, %v1640
    %v1737 = vpack.c.b16 %v1657, %v1649
    %v1738 = vpack.c.b16 %v1658, %v1650
    %v1739 = vpack.c.b16 %v1659, %v1651
    %v1740 = vpack.c.b16 %v1660, %v1652
    %v1741 = vpack.c.b16 %v1661, %v1653
    %v1742 = vpack.c.b16 %v1662, %v1654
    %v1743 = vpack.c.b16 %v1663, %v1655
    %v1744 = vpack.c.b16 %v1664, %v1656
    %v1745 = vpack.c.b16 %v1673, %v1665
    %v1746 = vpack.c.b16 %v1674, %v1666
    %v1747 = vpack.c.b16 %v1675, %v1667
    %v1748 = vpack.c.b16 %v1676, %v1668
    %v1749 = vpack.c.b16 %v1677, %v1669
    %v1750 = vpack.c.b16 %v1678, %v1670
    %v1751 = vpack.c.b16 %v1679, %v1671
    %v1752 = vpack.c.b16 %v1680, %v1672
    %v1753 = vpack.c.b16 %v1689, %v1681
    %v1754 = vpack.c.b16 %v1690, %v1682
    %v1755 = vpack.c.b16 %v1691, %v1683
    %v1756 = vpack.c.b16 %v1692, %v1684
    %v1757 = vpack.c.b16 %v1693, %v1685
    %v1758 = vpack.c.b16 %v1694, %v1686
    %v1759 = vpack.c.b16 %v1695, %v1687
    %v1760 = vpack.c.b16 %v1696, %v1688
    %1825 = vmatprep.subr.bf16.mxu0 %v1754
    %1826 = vmatpush1.bf16.msra.mxu0 %v1753
    %1827 = vmatprep.subr.bf16.mxu0 %v1746
    %1828 = vmatpush1.bf16.msra.mxu0 %v1745
    %1829 = vmatprep.subr.bf16.mxu0 %v1738
    %1830 = vmatpush1.bf16.msra.mxu0 %v1737
    %1831 = vmatprep.subr.bf16.mxu0 %v1730
    %1832 = vmatpush1.bf16.msra.mxu0 %v1729
    %1833 = vmatprep.subr.bf16.mxu0 %v1722
    %1834 = vmatpush1.bf16.msra.mxu0 %v1721
    %1835 = vmatprep.subr.bf16.mxu0 %v1714
    %1836 = vmatpush1.bf16.msra.mxu0 %v1713
    %1837 = vmatprep.subr.bf16.mxu0 %v1706
    %1838 = vmatpush1.bf16.msra.mxu0 %v1705
    %1839 = vmatprep.subr.bf16.mxu0 %v1698
    %1840 = vmatpush1.bf16.msra.mxu0 %v1697
    %1841 = vmatprep.subr.bf16.mxu0 0
    %1842 = vmatpush2.bf16.msra.mxu0 0
    %1843 = vmatprep.subr.bf16.mxu0 0
    %1844 = vmatpush2.bf16.msra.mxu0 0
    %1845 = vmatprep.subr.bf16.mxu0 0
    %1846 = vmatpush2.bf16.msra.mxu0 0
    %1847 = vmatprep.subr.bf16.mxu0 0
    %1848 = vmatpush2.bf16.msra.mxu0 0
    %1849 = vmatprep.subr.bf16.mxu0 0
    %1850 = vmatpush2.bf16.msra.mxu0 0
    %1851 = vmatprep.subr.bf16.mxu0 0
    %1852 = vmatpush2.bf16.msra.mxu0 0
    %1853 = vmatprep.subr.bf16.mxu0 0
    %1854 = vmatpush2.bf16.msra.mxu0 0
    %1855 = vmatprep.subr.bf16.mxu0 0
    %1856 = vmatpush2.bf16.msra.mxu0 0
    %1857 = vmatprep.mubr.bf16.mxu0 0
    %1858 = vmatmul.mubr.bf16.gmra.mxu0 %v1503
    %v1859 = vpop.f32.mrf.mxu0
    %v1860 = vadd.f32 0.0, %v1859
    %v1861 = vpop.f32.mrf.mxu0
    %v1862 = vadd.f32 0.0, %v1861
    %v1863 = vpop.f32.mrf.mxu0
    %v1864 = vpop.f32.mrf.mxu0
    %1865 = vdwg.mxu0
    %1866 = vmatprep.subr.bf16.mxu0 %v1756
    %1867 = vmatpush1.bf16.msra.mxu0 %v1755
    %1868 = vmatprep.subr.bf16.mxu0 %v1748
    %1869 = vmatpush1.bf16.msra.mxu0 %v1747
    %1870 = vmatprep.subr.bf16.mxu0 %v1740
    %1871 = vmatpush1.bf16.msra.mxu0 %v1739
    %1872 = vmatprep.subr.bf16.mxu0 %v1732
    %1873 = vmatpush1.bf16.msra.mxu0 %v1731
    %1874 = vmatprep.subr.bf16.mxu0 %v1724
    %1875 = vmatpush1.bf16.msra.mxu0 %v1723
    %1876 = vmatprep.subr.bf16.mxu0 %v1716
    %1877 = vmatpush1.bf16.msra.mxu0 %v1715
    %1878 = vmatprep.subr.bf16.mxu0 %v1708
    %1879 = vmatpush1.bf16.msra.mxu0 %v1707
    %1880 = vmatprep.subr.bf16.mxu0 %v1700
    %1881 = vmatpush1.bf16.msra.mxu0 %v1699
    %1882 = vmatprep.subr.bf16.mxu0 0
    %1883 = vmatpush2.bf16.msra.mxu0 0
    %1884 = vmatprep.subr.bf16.mxu0 0
    %1885 = vmatpush2.bf16.msra.mxu0 0
    %1886 = vmatprep.subr.bf16.mxu0 0
    %1887 = vmatpush2.bf16.msra.mxu0 0
    %1888 = vmatprep.subr.bf16.mxu0 0
    %1889 = vmatpush2.bf16.msra.mxu0 0
    %1890 = vmatprep.subr.bf16.mxu0 0
    %1891 = vmatpush2.bf16.msra.mxu0 0
    %1892 = vmatprep.subr.bf16.mxu0 0
    %1893 = vmatpush2.bf16.msra.mxu0 0
    %1894 = vmatprep.subr.bf16.mxu0 0
    %1895 = vmatpush2.bf16.msra.mxu0 0
    %1896 = vmatprep.subr.bf16.mxu0 0
    %1897 = vmatpush2.bf16.msra.mxu0 0
    %1898 = vmatprep.mubr.bf16.mxu0 0
    %1899 = vmatmul.mubr.bf16.gmra.mxu0 %v1503
    %v1900 = vpop.f32.mrf.mxu0
    %v1901 = vadd.f32 0.0, %v1900
    %v1902 = vpop.f32.mrf.mxu0
    %v1903 = vadd.f32 0.0, %v1902
    %v1904 = vpop.f32.mrf.mxu0
    %v1905 = vpop.f32.mrf.mxu0
    %1906 = vdwg.mxu0
    %1907 = vmatprep.subr.bf16.mxu0 %v1758
    %1908 = vmatpush1.bf16.msra.mxu0 %v1757
    %1909 = vmatprep.subr.bf16.mxu0 %v1750
    %1910 = vmatpush1.bf16.msra.mxu0 %v1749
    %1911 = vmatprep.subr.bf16.mxu0 %v1742
    %1912 = vmatpush1.bf16.msra.mxu0 %v1741
    %1913 = vmatprep.subr.bf16.mxu0 %v1734
    %1914 = vmatpush1.bf16.msra.mxu0 %v1733
    %1915 = vmatprep.subr.bf16.mxu0 %v1726
    %1916 = vmatpush1.bf16.msra.mxu0 %v1725
    %1917 = vmatprep.subr.bf16.mxu0 %v1718
    %1918 = vmatpush1.bf16.msra.mxu0 %v1717
    %1919 = vmatprep.subr.bf16.mxu0 %v1710
    %1920 = vmatpush1.bf16.msra.mxu0 %v1709
    %1921 = vmatprep.subr.bf16.mxu0 %v1702
    %1922 = vmatpush1.bf16.msra.mxu0 %v1701
    %1923 = vmatprep.subr.bf16.mxu0 0
    %1924 = vmatpush2.bf16.msra.mxu0 0
    %1925 = vmatprep.subr.bf16.mxu0 0
    %1926 = vmatpush2.bf16.msra.mxu0 0
    %1927 = vmatprep.subr.bf16.mxu0 0
    %1928 = vmatpush2.bf16.msra.mxu0 0
    %1929 = vmatprep.subr.bf16.mxu0 0
    %1930 = vmatpush2.bf16.msra.mxu0 0
    %1931 = vmatprep.subr.bf16.mxu0 0
    %1932 = vmatpush2.bf16.msra.mxu0 0
    %1933 = vmatprep.subr.bf16.mxu0 0
    %1934 = vmatpush2.bf16.msra.mxu0 0
    %1935 = vmatprep.subr.bf16.mxu0 0
    %1936 = vmatpush2.bf16.msra.mxu0 0
    %1937 = vmatprep.subr.bf16.mxu0 0
    %1938 = vmatpush2.bf16.msra.mxu0 0
    %1939 = vmatprep.mubr.bf16.mxu0 0
    %1940 = vmatmul.mubr.bf16.gmra.mxu0 %v1503
    %v1941 = vpop.f32.mrf.mxu0
    %v1942 = vadd.f32 0.0, %v1941
    %v1943 = vpop.f32.mrf.mxu0
    %v1944 = vadd.f32 0.0, %v1943
    %v1945 = vpop.f32.mrf.mxu0
    %v1946 = vpop.f32.mrf.mxu0
    %1947 = vdwg.mxu0
    %1948 = vmatprep.subr.bf16.mxu0 %v1760
    %1949 = vmatpush1.bf16.msra.mxu0 %v1759
    %1950 = vmatprep.subr.bf16.mxu0 %v1752
    %1951 = vmatpush1.bf16.msra.mxu0 %v1751
    %1952 = vmatprep.subr.bf16.mxu0 %v1744
    %1953 = vmatpush1.bf16.msra.mxu0 %v1743
    %1954 = vmatprep.subr.bf16.mxu0 %v1736
    %1955 = vmatpush1.bf16.msra.mxu0 %v1735
    %1956 = vmatprep.subr.bf16.mxu0 %v1728
    %1957 = vmatpush1.bf16.msra.mxu0 %v1727
    %1958 = vmatprep.subr.bf16.mxu0 %v1720
    %1959 = vmatpush1.bf16.msra.mxu0 %v1719
    %1960 = vmatprep.subr.bf16.mxu0 %v1712
    %1961 = vmatpush1.bf16.msra.mxu0 %v1711
    %1962 = vmatprep.subr.bf16.mxu0 %v1704
    %1963 = vmatpush1.bf16.msra.mxu0 %v1703
    %1964 = vmatprep.subr.bf16.mxu0 0
    %1965 = vmatpush2.bf16.msra.mxu0 0
    %1966 = vmatprep.subr.bf16.mxu0 0
    %1967 = vmatpush2.bf16.msra.mxu0 0
    %1968 = vmatprep.subr.bf16.mxu0 0
    %1969 = vmatpush2.bf16.msra.mxu0 0
    %1970 = vmatprep.subr.bf16.mxu0 0
    %1971 = vmatpush2.bf16.msra.mxu0 0
    %1972 = vmatprep.subr.bf16.mxu0 0
    %1973 = vmatpush2.bf16.msra.mxu0 0
    %1974 = vmatprep.subr.bf16.mxu0 0
    %1975 = vmatpush2.bf16.msra.mxu0 0
    %1976 = vmatprep.subr.bf16.mxu0 0
    %1977 = vmatpush2.bf16.msra.mxu0 0
    %1978 = vmatprep.subr.bf16.mxu0 0
    %1979 = vmatpush2.bf16.msra.mxu0 0
    %1980 = vmatprep.mubr.bf16.mxu0 0
    %1981 = vmatmul.mubr.bf16.gmra.mxu0 %v1503
    %v1982 = vpop.f32.mrf.mxu0
    %v1983 = vadd.f32 0.0, %v1982
    %v1984 = vpop.f32.mrf.mxu0
    %v1985 = vadd.f32 0.0, %v1984
    %v1986 = vpop.f32.mrf.mxu0
    %v1987 = vpop.f32.mrf.mxu0
    %1988 = vdwg.mxu0
    %v1997 = vcombine.low %v1860, %v1862
    %v1998 = vcombine.low %v1901, %v1903
    %v1999 = vcombine.low %v1942, %v1944
    %v2000 = vcombine.low %v1983, %v1985
    %v2002 = vunpack.c.l.s4 1966171168
    %v2003 = vunpack.c.0.s8 %v2002
    %v2004 = vlaneseq
    %v2005 = vshrl.u32 %v2004, 7
    %v2006 = vsub.s32 %v2003, %v2005
    %v2007 = vrot.slane %v1997, %v2006
    %v2009 = vunpack.c.l.s4 1966171168
    %v2010 = vunpack.c.0.s8 %v2009
    %v2011 = vlaneseq
    %v2012 = vshrl.u32 %v2011, 7
    %v2013 = vsub.s32 %v2010, %v2012
    %v2014 = vrot.slane %v1998, %v2013
    %v2016 = vunpack.c.l.s4 1966171168
    %v2017 = vunpack.c.0.s8 %v2016
    %v2018 = vlaneseq
    %v2019 = vshrl.u32 %v2018, 7
    %v2020 = vsub.s32 %v2017, %v2019
    %v2021 = vrot.slane %v1999, %v2020
    %v2023 = vunpack.c.l.s4 1966171168
    %v2024 = vunpack.c.0.s8 %v2023
    %v2025 = vlaneseq
    %v2026 = vshrl.u32 %v2025, 7
    %v2027 = vsub.s32 %v2024, %v2026
    %v2028 = vrot.slane %v2000, %v2027
    %v2029 = vcombine.low %v2007, %v2014
    %v2030 = vcombine.low %v2021, %v2028
    %v2032 = vunpack.c.l.s4 1966171168
    %v2033 = vunpack.c.0.s8 %v2032
    %v2034 = vlaneseq
    %v2035 = vshrl.u32 %v2034, 7
    %v2036 = vsub.s32 %v2033, %v2035
    %v2037 = vrot.slane %v2029, %v2036
    %v2039 = vunpack.c.l.s4 1966171168
    %v2040 = vunpack.c.0.s8 %v2039
    %v2041 = vlaneseq
    %v2042 = vshrl.u32 %v2041, 7
    %v2043 = vsub.s32 %v2040, %v2042
    %v2044 = vrot.slane %v2030, %v2043
    %v2045 = vcombine.low %v2037, %v2044
    %v2047 = vadd.f32 %v1436, %v2045
    %s2048 = scalar_lea.vmem [#allocation6], 1536
    %v2049 = vld [vmem:[%s2048] sm:$0xff]
    %v2050 = vld [vmem:[%s2048 + $0x8] sm:$0xff]
    %v2051 = vld [vmem:[%s2048 + $0x10] sm:$0xff]
    %v2052 = vld [vmem:[%s2048 + $0x18] sm:$0xff]
    %v2053 = vld [vmem:[%s2048 + $0x20] sm:$0xff]
    %v2054 = vld [vmem:[%s2048 + $0x28] sm:$0xff]
    %v2055 = vld [vmem:[%s2048 + $0x30] sm:$0xff]
    %v2056 = vld [vmem:[%s2048 + $0x38] sm:$0xff]
    %v2057 = vld [vmem:[%s2048 + $0x40] sm:$0xff]
    %v2058 = vld [vmem:[%s2048 + $0x48] sm:$0xff]
    %v2059 = vld [vmem:[%s2048 + $0x50] sm:$0xff]
    %v2060 = vld [vmem:[%s2048 + $0x58] sm:$0xff]
    %v2061 = vld [vmem:[%s2048 + $0x60] sm:$0xff]
    %v2062 = vld [vmem:[%s2048 + $0x68] sm:$0xff]
    %v2063 = vld [vmem:[%s2048 + $0x70] sm:$0xff]
    %v2064 = vld [vmem:[%s2048 + $0x78] sm:$0xff]
    %v2065 = vld [vmem:[%s2048 + $0x80] sm:$0xff]
    %v2066 = vld [vmem:[%s2048 + $0x88] sm:$0xff]
    %v2067 = vld [vmem:[%s2048 + $0x90] sm:$0xff]
    %v2068 = vld [vmem:[%s2048 + $0x98] sm:$0xff]
    %v2069 = vld [vmem:[%s2048 + $0xa0] sm:$0xff]
    %v2070 = vld [vmem:[%s2048 + $0xa8] sm:$0xff]
    %v2071 = vld [vmem:[%s2048 + $0xb0] sm:$0xff]
    %v2072 = vld [vmem:[%s2048 + $0xb8] sm:$0xff]
    %v2073 = vld [vmem:[%s2048 + $0xc0] sm:$0xff]
    %v2074 = vld [vmem:[%s2048 + $0xc8] sm:$0xff]
    %v2075 = vld [vmem:[%s2048 + $0xd0] sm:$0xff]
    %v2076 = vld [vmem:[%s2048 + $0xd8] sm:$0xff]
    %v2077 = vld [vmem:[%s2048 + $0xe0] sm:$0xff]
    %v2078 = vld [vmem:[%s2048 + $0xe8] sm:$0xff]
    %v2079 = vld [vmem:[%s2048 + $0xf0] sm:$0xff]
    %v2080 = vld [vmem:[%s2048 + $0xf8] sm:$0xff]
    %v2081 = vld [vmem:[%s2048 + $0x100] sm:$0xff]
    %v2082 = vld [vmem:[%s2048 + $0x108] sm:$0xff]
    %v2083 = vld [vmem:[%s2048 + $0x110] sm:$0xff]
    %v2084 = vld [vmem:[%s2048 + $0x118] sm:$0xff]
    %v2085 = vld [vmem:[%s2048 + $0x120] sm:$0xff]
    %v2086 = vld [vmem:[%s2048 + $0x128] sm:$0xff]
    %v2087 = vld [vmem:[%s2048 + $0x130] sm:$0xff]
    %v2088 = vld [vmem:[%s2048 + $0x138] sm:$0xff]
    %v2089 = vld [vmem:[%s2048 + $0x140] sm:$0xff]
    %v2090 = vld [vmem:[%s2048 + $0x148] sm:$0xff]
    %v2091 = vld [vmem:[%s2048 + $0x150] sm:$0xff]
    %v2092 = vld [vmem:[%s2048 + $0x158] sm:$0xff]
    %v2093 = vld [vmem:[%s2048 + $0x160] sm:$0xff]
    %v2094 = vld [vmem:[%s2048 + $0x168] sm:$0xff]
    %v2095 = vld [vmem:[%s2048 + $0x170] sm:$0xff]
    %v2096 = vld [vmem:[%s2048 + $0x178] sm:$0xff]
    %v2097 = vld [vmem:[%s2048 + $0x180] sm:$0xff]
    %v2098 = vld [vmem:[%s2048 + $0x188] sm:$0xff]
    %v2099 = vld [vmem:[%s2048 + $0x190] sm:$0xff]
    %v2100 = vld [vmem:[%s2048 + $0x198] sm:$0xff]
    %v2101 = vld [vmem:[%s2048 + $0x1a0] sm:$0xff]
    %v2102 = vld [vmem:[%s2048 + $0x1a8] sm:$0xff]
    %v2103 = vld [vmem:[%s2048 + $0x1b0] sm:$0xff]
    %v2104 = vld [vmem:[%s2048 + $0x1b8] sm:$0xff]
    %v2105 = vld [vmem:[%s2048 + $0x1c0] sm:$0xff]
    %v2106 = vld [vmem:[%s2048 + $0x1c8] sm:$0xff]
    %v2107 = vld [vmem:[%s2048 + $0x1d0] sm:$0xff]
    %v2108 = vld [vmem:[%s2048 + $0x1d8] sm:$0xff]
    %v2109 = vld [vmem:[%s2048 + $0x1e0] sm:$0xff]
    %v2110 = vld [vmem:[%s2048 + $0x1e8] sm:$0xff]
    %v2111 = vld [vmem:[%s2048 + $0x1f0] sm:$0xff]
    %v2112 = vld [vmem:[%s2048 + $0x1f8] sm:$0xff]
    %v2113 = vrot.slane %v891, 1
    %v2179 = vunpack.c.l.b16 %v2049
    %v2180 = vunpack.c.h.b16 %v2049
    %v2181 = vunpack.c.l.b16 %v2050
    %v2182 = vunpack.c.h.b16 %v2050
    %v2183 = vunpack.c.l.b16 %v2051
    %v2184 = vunpack.c.h.b16 %v2051
    %v2185 = vunpack.c.l.b16 %v2052
    %v2186 = vunpack.c.h.b16 %v2052
    %v2187 = vunpack.c.l.b16 %v2053
    %v2188 = vunpack.c.h.b16 %v2053
    %v2189 = vunpack.c.l.b16 %v2054
    %v2190 = vunpack.c.h.b16 %v2054
    %v2191 = vunpack.c.l.b16 %v2055
    %v2192 = vunpack.c.h.b16 %v2055
    %v2193 = vunpack.c.l.b16 %v2056
    %v2194 = vunpack.c.h.b16 %v2056
    %v2195 = vunpack.c.l.b16 %v2057
    %v2196 = vunpack.c.h.b16 %v2057
    %v2197 = vunpack.c.l.b16 %v2058
    %v2198 = vunpack.c.h.b16 %v2058
    %v2199 = vunpack.c.l.b16 %v2059
    %v2200 = vunpack.c.h.b16 %v2059
    %v2201 = vunpack.c.l.b16 %v2060
    %v2202 = vunpack.c.h.b16 %v2060
    %v2203 = vunpack.c.l.b16 %v2061
    %v2204 = vunpack.c.h.b16 %v2061
    %v2205 = vunpack.c.l.b16 %v2062
    %v2206 = vunpack.c.h.b16 %v2062
    %v2207 = vunpack.c.l.b16 %v2063
    %v2208 = vunpack.c.h.b16 %v2063
    %v2209 = vunpack.c.l.b16 %v2064
    %v2210 = vunpack.c.h.b16 %v2064
    %v2211 = vunpack.c.l.b16 %v2065
    %v2212 = vunpack.c.h.b16 %v2065
    %v2213 = vunpack.c.l.b16 %v2066
    %v2214 = vunpack.c.h.b16 %v2066
    %v2215 = vunpack.c.l.b16 %v2067
    %v2216 = vunpack.c.h.b16 %v2067
    %v2217 = vunpack.c.l.b16 %v2068
    %v2218 = vunpack.c.h.b16 %v2068
    %v2219 = vunpack.c.l.b16 %v2069
    %v2220 = vunpack.c.h.b16 %v2069
    %v2221 = vunpack.c.l.b16 %v2070
    %v2222 = vunpack.c.h.b16 %v2070
    %v2223 = vunpack.c.l.b16 %v2071
    %v2224 = vunpack.c.h.b16 %v2071
    %v2225 = vunpack.c.l.b16 %v2072
    %v2226 = vunpack.c.h.b16 %v2072
    %v2227 = vunpack.c.l.b16 %v2073
    %v2228 = vunpack.c.h.b16 %v2073
    %v2229 = vunpack.c.l.b16 %v2074
    %v2230 = vunpack.c.h.b16 %v2074
    %v2231 = vunpack.c.l.b16 %v2075
    %v2232 = vunpack.c.h.b16 %v2075
    %v2233 = vunpack.c.l.b16 %v2076
    %v2234 = vunpack.c.h.b16 %v2076
    %v2235 = vunpack.c.l.b16 %v2077
    %v2236 = vunpack.c.h.b16 %v2077
    %v2237 = vunpack.c.l.b16 %v2078
    %v2238 = vunpack.c.h.b16 %v2078
    %v2239 = vunpack.c.l.b16 %v2079
    %v2240 = vunpack.c.h.b16 %v2079
    %v2241 = vunpack.c.l.b16 %v2080
    %v2242 = vunpack.c.h.b16 %v2080
    %v2243 = vunpack.c.l.b16 %v2081
    %v2244 = vunpack.c.h.b16 %v2081
    %v2245 = vunpack.c.l.b16 %v2082
    %v2246 = vunpack.c.h.b16 %v2082
    %v2247 = vunpack.c.l.b16 %v2083
    %v2248 = vunpack.c.h.b16 %v2083
    %v2249 = vunpack.c.l.b16 %v2084
    %v2250 = vunpack.c.h.b16 %v2084
    %v2251 = vunpack.c.l.b16 %v2085
    %v2252 = vunpack.c.h.b16 %v2085
    %v2253 = vunpack.c.l.b16 %v2086
    %v2254 = vunpack.c.h.b16 %v2086
    %v2255 = vunpack.c.l.b16 %v2087
    %v2256 = vunpack.c.h.b16 %v2087
    %v2257 = vunpack.c.l.b16 %v2088
    %v2258 = vunpack.c.h.b16 %v2088
    %v2259 = vunpack.c.l.b16 %v2089
    %v2260 = vunpack.c.h.b16 %v2089
    %v2261 = vunpack.c.l.b16 %v2090
    %v2262 = vunpack.c.h.b16 %v2090
    %v2263 = vunpack.c.l.b16 %v2091
    %v2264 = vunpack.c.h.b16 %v2091
    %v2265 = vunpack.c.l.b16 %v2092
    %v2266 = vunpack.c.h.b16 %v2092
    %v2267 = vunpack.c.l.b16 %v2093
    %v2268 = vunpack.c.h.b16 %v2093
    %v2269 = vunpack.c.l.b16 %v2094
    %v2270 = vunpack.c.h.b16 %v2094
    %v2271 = vunpack.c.l.b16 %v2095
    %v2272 = vunpack.c.h.b16 %v2095
    %v2273 = vunpack.c.l.b16 %v2096
    %v2274 = vunpack.c.h.b16 %v2096
    %v2275 = vunpack.c.l.b16 %v2097
    %v2276 = vunpack.c.h.b16 %v2097
    %v2277 = vunpack.c.l.b16 %v2098
    %v2278 = vunpack.c.h.b16 %v2098
    %v2279 = vunpack.c.l.b16 %v2099
    %v2280 = vunpack.c.h.b16 %v2099
    %v2281 = vunpack.c.l.b16 %v2100
    %v2282 = vunpack.c.h.b16 %v2100
    %v2283 = vunpack.c.l.b16 %v2101
    %v2284 = vunpack.c.h.b16 %v2101
    %v2285 = vunpack.c.l.b16 %v2102
    %v2286 = vunpack.c.h.b16 %v2102
    %v2287 = vunpack.c.l.b16 %v2103
    %v2288 = vunpack.c.h.b16 %v2103
    %v2289 = vunpack.c.l.b16 %v2104
    %v2290 = vunpack.c.h.b16 %v2104
    %v2291 = vunpack.c.l.b16 %v2105
    %v2292 = vunpack.c.h.b16 %v2105
    %v2293 = vunpack.c.l.b16 %v2106
    %v2294 = vunpack.c.h.b16 %v2106
    %v2295 = vunpack.c.l.b16 %v2107
    %v2296 = vunpack.c.h.b16 %v2107
    %v2297 = vunpack.c.l.b16 %v2108
    %v2298 = vunpack.c.h.b16 %v2108
    %v2299 = vunpack.c.l.b16 %v2109
    %v2300 = vunpack.c.h.b16 %v2109
    %v2301 = vunpack.c.l.b16 %v2110
    %v2302 = vunpack.c.h.b16 %v2110
    %v2303 = vunpack.c.l.b16 %v2111
    %v2304 = vunpack.c.h.b16 %v2111
    %v2305 = vunpack.c.l.b16 %v2112
    %v2306 = vunpack.c.h.b16 %v2112
    %v2307 = vpack.c.b16 %v2187, %v2179
    %v2308 = vpack.c.b16 %v2188, %v2180
    %v2309 = vpack.c.b16 %v2189, %v2181
    %v2310 = vpack.c.b16 %v2190, %v2182
    %v2311 = vpack.c.b16 %v2191, %v2183
    %v2312 = vpack.c.b16 %v2192, %v2184
    %v2313 = vpack.c.b16 %v2193, %v2185
    %v2314 = vpack.c.b16 %v2194, %v2186
    %v2315 = vpack.c.b16 %v2203, %v2195
    %v2316 = vpack.c.b16 %v2204, %v2196
    %v2317 = vpack.c.b16 %v2205, %v2197
    %v2318 = vpack.c.b16 %v2206, %v2198
    %v2319 = vpack.c.b16 %v2207, %v2199
    %v2320 = vpack.c.b16 %v2208, %v2200
    %v2321 = vpack.c.b16 %v2209, %v2201
    %v2322 = vpack.c.b16 %v2210, %v2202
    %v2323 = vpack.c.b16 %v2219, %v2211
    %v2324 = vpack.c.b16 %v2220, %v2212
    %v2325 = vpack.c.b16 %v2221, %v2213
    %v2326 = vpack.c.b16 %v2222, %v2214
    %v2327 = vpack.c.b16 %v2223, %v2215
    %v2328 = vpack.c.b16 %v2224, %v2216
    %v2329 = vpack.c.b16 %v2225, %v2217
    %v2330 = vpack.c.b16 %v2226, %v2218
    %v2331 = vpack.c.b16 %v2235, %v2227
    %v2332 = vpack.c.b16 %v2236, %v2228
    %v2333 = vpack.c.b16 %v2237, %v2229
    %v2334 = vpack.c.b16 %v2238, %v2230
    %v2335 = vpack.c.b16 %v2239, %v2231
    %v2336 = vpack.c.b16 %v2240, %v2232
    %v2337 = vpack.c.b16 %v2241, %v2233
    %v2338 = vpack.c.b16 %v2242, %v2234
    %v2339 = vpack.c.b16 %v2251, %v2243
    %v2340 = vpack.c.b16 %v2252, %v2244
    %v2341 = vpack.c.b16 %v2253, %v2245
    %v2342 = vpack.c.b16 %v2254, %v2246
    %v2343 = vpack.c.b16 %v2255, %v2247
    %v2344 = vpack.c.b16 %v2256, %v2248
    %v2345 = vpack.c.b16 %v2257, %v2249
    %v2346 = vpack.c.b16 %v2258, %v2250
    %v2347 = vpack.c.b16 %v2267, %v2259
    %v2348 = vpack.c.b16 %v2268, %v2260
    %v2349 = vpack.c.b16 %v2269, %v2261
    %v2350 = vpack.c.b16 %v2270, %v2262
    %v2351 = vpack.c.b16 %v2271, %v2263
    %v2352 = vpack.c.b16 %v2272, %v2264
    %v2353 = vpack.c.b16 %v2273, %v2265
    %v2354 = vpack.c.b16 %v2274, %v2266
    %v2355 = vpack.c.b16 %v2283, %v2275
    %v2356 = vpack.c.b16 %v2284, %v2276
    %v2357 = vpack.c.b16 %v2285, %v2277
    %v2358 = vpack.c.b16 %v2286, %v2278
    %v2359 = vpack.c.b16 %v2287, %v2279
    %v2360 = vpack.c.b16 %v2288, %v2280
    %v2361 = vpack.c.b16 %v2289, %v2281
    %v2362 = vpack.c.b16 %v2290, %v2282
    %v2363 = vpack.c.b16 %v2299, %v2291
    %v2364 = vpack.c.b16 %v2300, %v2292
    %v2365 = vpack.c.b16 %v2301, %v2293
    %v2366 = vpack.c.b16 %v2302, %v2294
    %v2367 = vpack.c.b16 %v2303, %v2295
    %v2368 = vpack.c.b16 %v2304, %v2296
    %v2369 = vpack.c.b16 %v2305, %v2297
    %v2370 = vpack.c.b16 %v2306, %v2298
    %2435 = vmatprep.subr.bf16.mxu0 %v2364
    %2436 = vmatpush1.bf16.msra.mxu0 %v2363
    %2437 = vmatprep.subr.bf16.mxu0 %v2356
    %2438 = vmatpush1.bf16.msra.mxu0 %v2355
    %2439 = vmatprep.subr.bf16.mxu0 %v2348
    %2440 = vmatpush1.bf16.msra.mxu0 %v2347
    %2441 = vmatprep.subr.bf16.mxu0 %v2340
    %2442 = vmatpush1.bf16.msra.mxu0 %v2339
    %2443 = vmatprep.subr.bf16.mxu0 %v2332
    %2444 = vmatpush1.bf16.msra.mxu0 %v2331
    %2445 = vmatprep.subr.bf16.mxu0 %v2324
    %2446 = vmatpush1.bf16.msra.mxu0 %v2323
    %2447 = vmatprep.subr.bf16.mxu0 %v2316
    %2448 = vmatpush1.bf16.msra.mxu0 %v2315
    %2449 = vmatprep.subr.bf16.mxu0 %v2308
    %2450 = vmatpush1.bf16.msra.mxu0 %v2307
    %2451 = vmatprep.subr.bf16.mxu0 0
    %2452 = vmatpush2.bf16.msra.mxu0 0
    %2453 = vmatprep.subr.bf16.mxu0 0
    %2454 = vmatpush2.bf16.msra.mxu0 0
    %2455 = vmatprep.subr.bf16.mxu0 0
    %2456 = vmatpush2.bf16.msra.mxu0 0
    %2457 = vmatprep.subr.bf16.mxu0 0
    %2458 = vmatpush2.bf16.msra.mxu0 0
    %2459 = vmatprep.subr.bf16.mxu0 0
    %2460 = vmatpush2.bf16.msra.mxu0 0
    %2461 = vmatprep.subr.bf16.mxu0 0
    %2462 = vmatpush2.bf16.msra.mxu0 0
    %2463 = vmatprep.subr.bf16.mxu0 0
    %2464 = vmatpush2.bf16.msra.mxu0 0
    %2465 = vmatprep.subr.bf16.mxu0 0
    %2466 = vmatpush2.bf16.msra.mxu0 0
    %2467 = vmatprep.mubr.bf16.mxu0 0
    %2468 = vmatmul.mubr.bf16.gmra.mxu0 %v2113
    %v2469 = vpop.f32.mrf.mxu0
    %v2470 = vadd.f32 0.0, %v2469
    %v2471 = vpop.f32.mrf.mxu0
    %v2472 = vadd.f32 0.0, %v2471
    %v2473 = vpop.f32.mrf.mxu0
    %v2474 = vpop.f32.mrf.mxu0
    %2475 = vdwg.mxu0
    %2476 = vmatprep.subr.bf16.mxu0 %v2366
    %2477 = vmatpush1.bf16.msra.mxu0 %v2365
    %2478 = vmatprep.subr.bf16.mxu0 %v2358
    %2479 = vmatpush1.bf16.msra.mxu0 %v2357
    %2480 = vmatprep.subr.bf16.mxu0 %v2350
    %2481 = vmatpush1.bf16.msra.mxu0 %v2349
    %2482 = vmatprep.subr.bf16.mxu0 %v2342
    %2483 = vmatpush1.bf16.msra.mxu0 %v2341
    %2484 = vmatprep.subr.bf16.mxu0 %v2334
    %2485 = vmatpush1.bf16.msra.mxu0 %v2333
    %2486 = vmatprep.subr.bf16.mxu0 %v2326
    %2487 = vmatpush1.bf16.msra.mxu0 %v2325
    %2488 = vmatprep.subr.bf16.mxu0 %v2318
    %2489 = vmatpush1.bf16.msra.mxu0 %v2317
    %2490 = vmatprep.subr.bf16.mxu0 %v2310
    %2491 = vmatpush1.bf16.msra.mxu0 %v2309
    %2492 = vmatprep.subr.bf16.mxu0 0
    %2493 = vmatpush2.bf16.msra.mxu0 0
    %2494 = vmatprep.subr.bf16.mxu0 0
    %2495 = vmatpush2.bf16.msra.mxu0 0
    %2496 = vmatprep.subr.bf16.mxu0 0
    %2497 = vmatpush2.bf16.msra.mxu0 0
    %2498 = vmatprep.subr.bf16.mxu0 0
    %2499 = vmatpush2.bf16.msra.mxu0 0
    %2500 = vmatprep.subr.bf16.mxu0 0
    %2501 = vmatpush2.bf16.msra.mxu0 0
    %2502 = vmatprep.subr.bf16.mxu0 0
    %2503 = vmatpush2.bf16.msra.mxu0 0
    %2504 = vmatprep.subr.bf16.mxu0 0
    %2505 = vmatpush2.bf16.msra.mxu0 0
    %2506 = vmatprep.subr.bf16.mxu0 0
    %2507 = vmatpush2.bf16.msra.mxu0 0
    %2508 = vmatprep.mubr.bf16.mxu0 0
    %2509 = vmatmul.mubr.bf16.gmra.mxu0 %v2113
    %v2510 = vpop.f32.mrf.mxu0
    %v2511 = vadd.f32 0.0, %v2510
    %v2512 = vpop.f32.mrf.mxu0
    %v2513 = vadd.f32 0.0, %v2512
    %v2514 = vpop.f32.mrf.mxu0
    %v2515 = vpop.f32.mrf.mxu0
    %2516 = vdwg.mxu0
    %2517 = vmatprep.subr.bf16.mxu0 %v2368
    %2518 = vmatpush1.bf16.msra.mxu0 %v2367
    %2519 = vmatprep.subr.bf16.mxu0 %v2360
    %2520 = vmatpush1.bf16.msra.mxu0 %v2359
    %2521 = vmatprep.subr.bf16.mxu0 %v2352
    %2522 = vmatpush1.bf16.msra.mxu0 %v2351
    %2523 = vmatprep.subr.bf16.mxu0 %v2344
    %2524 = vmatpush1.bf16.msra.mxu0 %v2343
    %2525 = vmatprep.subr.bf16.mxu0 %v2336
    %2526 = vmatpush1.bf16.msra.mxu0 %v2335
    %2527 = vmatprep.subr.bf16.mxu0 %v2328
    %2528 = vmatpush1.bf16.msra.mxu0 %v2327
    %2529 = vmatprep.subr.bf16.mxu0 %v2320
    %2530 = vmatpush1.bf16.msra.mxu0 %v2319
    %2531 = vmatprep.subr.bf16.mxu0 %v2312
    %2532 = vmatpush1.bf16.msra.mxu0 %v2311
    %2533 = vmatprep.subr.bf16.mxu0 0
    %2534 = vmatpush2.bf16.msra.mxu0 0
    %2535 = vmatprep.subr.bf16.mxu0 0
    %2536 = vmatpush2.bf16.msra.mxu0 0
    %2537 = vmatprep.subr.bf16.mxu0 0
    %2538 = vmatpush2.bf16.msra.mxu0 0
    %2539 = vmatprep.subr.bf16.mxu0 0
    %2540 = vmatpush2.bf16.msra.mxu0 0
    %2541 = vmatprep.subr.bf16.mxu0 0
    %2542 = vmatpush2.bf16.msra.mxu0 0
    %2543 = vmatprep.subr.bf16.mxu0 0
    %2544 = vmatpush2.bf16.msra.mxu0 0
    %2545 = vmatprep.subr.bf16.mxu0 0
    %2546 = vmatpush2.bf16.msra.mxu0 0
    %2547 = vmatprep.subr.bf16.mxu0 0
    %2548 = vmatpush2.bf16.msra.mxu0 0
    %2549 = vmatprep.mubr.bf16.mxu0 0
    %2550 = vmatmul.mubr.bf16.gmra.mxu0 %v2113
    %v2551 = vpop.f32.mrf.mxu0
    %v2552 = vadd.f32 0.0, %v2551
    %v2553 = vpop.f32.mrf.mxu0
    %v2554 = vadd.f32 0.0, %v2553
    %v2555 = vpop.f32.mrf.mxu0
    %v2556 = vpop.f32.mrf.mxu0
    %2557 = vdwg.mxu0
    %2558 = vmatprep.subr.bf16.mxu0 %v2370
    %2559 = vmatpush1.bf16.msra.mxu0 %v2369
    %2560 = vmatprep.subr.bf16.mxu0 %v2362
    %2561 = vmatpush1.bf16.msra.mxu0 %v2361
    %2562 = vmatprep.subr.bf16.mxu0 %v2354
    %2563 = vmatpush1.bf16.msra.mxu0 %v2353
    %2564 = vmatprep.subr.bf16.mxu0 %v2346
    %2565 = vmatpush1.bf16.msra.mxu0 %v2345
    %2566 = vmatprep.subr.bf16.mxu0 %v2338
    %2567 = vmatpush1.bf16.msra.mxu0 %v2337
    %2568 = vmatprep.subr.bf16.mxu0 %v2330
    %2569 = vmatpush1.bf16.msra.mxu0 %v2329
    %2570 = vmatprep.subr.bf16.mxu0 %v2322
    %2571 = vmatpush1.bf16.msra.mxu0 %v2321
    %2572 = vmatprep.subr.bf16.mxu0 %v2314
    %2573 = vmatpush1.bf16.msra.mxu0 %v2313
    %2574 = vmatprep.subr.bf16.mxu0 0
    %2575 = vmatpush2.bf16.msra.mxu0 0
    %2576 = vmatprep.subr.bf16.mxu0 0
    %2577 = vmatpush2.bf16.msra.mxu0 0
    %2578 = vmatprep.subr.bf16.mxu0 0
    %2579 = vmatpush2.bf16.msra.mxu0 0
    %2580 = vmatprep.subr.bf16.mxu0 0
    %2581 = vmatpush2.bf16.msra.mxu0 0
    %2582 = vmatprep.subr.bf16.mxu0 0
    %2583 = vmatpush2.bf16.msra.mxu0 0
    %2584 = vmatprep.subr.bf16.mxu0 0
    %2585 = vmatpush2.bf16.msra.mxu0 0
    %2586 = vmatprep.subr.bf16.mxu0 0
    %2587 = vmatpush2.bf16.msra.mxu0 0
    %2588 = vmatprep.subr.bf16.mxu0 0
    %2589 = vmatpush2.bf16.msra.mxu0 0
    %2590 = vmatprep.mubr.bf16.mxu0 0
    %2591 = vmatmul.mubr.bf16.gmra.mxu0 %v2113
    %v2592 = vpop.f32.mrf.mxu0
    %v2593 = vadd.f32 0.0, %v2592
    %v2594 = vpop.f32.mrf.mxu0
    %v2595 = vadd.f32 0.0, %v2594
    %v2596 = vpop.f32.mrf.mxu0
    %v2597 = vpop.f32.mrf.mxu0
    %2598 = vdwg.mxu0
    %v2607 = vcombine.low %v2470, %v2472
    %v2608 = vcombine.low %v2511, %v2513
    %v2609 = vcombine.low %v2552, %v2554
    %v2610 = vcombine.low %v2593, %v2595
    %v2612 = vunpack.c.l.s4 1966171168
    %v2613 = vunpack.c.0.s8 %v2612
    %v2614 = vlaneseq
    %v2615 = vshrl.u32 %v2614, 7
    %v2616 = vsub.s32 %v2613, %v2615
    %v2617 = vrot.slane %v2607, %v2616
    %v2619 = vunpack.c.l.s4 1966171168
    %v2620 = vunpack.c.0.s8 %v2619
    %v2621 = vlaneseq
    %v2622 = vshrl.u32 %v2621, 7
    %v2623 = vsub.s32 %v2620, %v2622
    %v2624 = vrot.slane %v2608, %v2623
    %v2626 = vunpack.c.l.s4 1966171168
    %v2627 = vunpack.c.0.s8 %v2626
    %v2628 = vlaneseq
    %v2629 = vshrl.u32 %v2628, 7
    %v2630 = vsub.s32 %v2627, %v2629
    %v2631 = vrot.slane %v2609, %v2630
    %v2633 = vunpack.c.l.s4 1966171168
    %v2634 = vunpack.c.0.s8 %v2633
    %v2635 = vlaneseq
    %v2636 = vshrl.u32 %v2635, 7
    %v2637 = vsub.s32 %v2634, %v2636
    %v2638 = vrot.slane %v2610, %v2637
    %v2639 = vcombine.low %v2617, %v2624
    %v2640 = vcombine.low %v2631, %v2638
    %v2642 = vunpack.c.l.s4 1966171168
    %v2643 = vunpack.c.0.s8 %v2642
    %v2644 = vlaneseq
    %v2645 = vshrl.u32 %v2644, 7
    %v2646 = vsub.s32 %v2643, %v2645
    %v2647 = vrot.slane %v2639, %v2646
    %v2649 = vunpack.c.l.s4 1966171168
    %v2650 = vunpack.c.0.s8 %v2649
    %v2651 = vlaneseq
    %v2652 = vshrl.u32 %v2651, 7
    %v2653 = vsub.s32 %v2650, %v2652
    %v2654 = vrot.slane %v2640, %v2653
    %v2655 = vcombine.low %v2647, %v2654
    %v2657 = vadd.f32 %v2047, %v2655
    %s2658 = scalar_lea.vmem [#allocation6], 2048
    %v2659 = vld [vmem:[%s2658] sm:$0xff]
    %v2660 = vld [vmem:[%s2658 + $0x8] sm:$0xff]
    %v2661 = vld [vmem:[%s2658 + $0x10] sm:$0xff]
    %v2662 = vld [vmem:[%s2658 + $0x18] sm:$0xff]
    %v2663 = vld [vmem:[%s2658 + $0x20] sm:$0xff]
    %v2664 = vld [vmem:[%s2658 + $0x28] sm:$0xff]
    %v2665 = vld [vmem:[%s2658 + $0x30] sm:$0xff]
    %v2666 = vld [vmem:[%s2658 + $0x38] sm:$0xff]
    %v2667 = vld [vmem:[%s2658 + $0x40] sm:$0xff]
    %v2668 = vld [vmem:[%s2658 + $0x48] sm:$0xff]
    %v2669 = vld [vmem:[%s2658 + $0x50] sm:$0xff]
    %v2670 = vld [vmem:[%s2658 + $0x58] sm:$0xff]
    %v2671 = vld [vmem:[%s2658 + $0x60] sm:$0xff]
    %v2672 = vld [vmem:[%s2658 + $0x68] sm:$0xff]
    %v2673 = vld [vmem:[%s2658 + $0x70] sm:$0xff]
    %v2674 = vld [vmem:[%s2658 + $0x78] sm:$0xff]
    %v2675 = vld [vmem:[%s2658 + $0x80] sm:$0xff]
    %v2676 = vld [vmem:[%s2658 + $0x88] sm:$0xff]
    %v2677 = vld [vmem:[%s2658 + $0x90] sm:$0xff]
    %v2678 = vld [vmem:[%s2658 + $0x98] sm:$0xff]
    %v2679 = vld [vmem:[%s2658 + $0xa0] sm:$0xff]
    %v2680 = vld [vmem:[%s2658 + $0xa8] sm:$0xff]
    %v2681 = vld [vmem:[%s2658 + $0xb0] sm:$0xff]
    %v2682 = vld [vmem:[%s2658 + $0xb8] sm:$0xff]
    %v2683 = vld [vmem:[%s2658 + $0xc0] sm:$0xff]
    %v2684 = vld [vmem:[%s2658 + $0xc8] sm:$0xff]
    %v2685 = vld [vmem:[%s2658 + $0xd0] sm:$0xff]
    %v2686 = vld [vmem:[%s2658 + $0xd8] sm:$0xff]
    %v2687 = vld [vmem:[%s2658 + $0xe0] sm:$0xff]
    %v2688 = vld [vmem:[%s2658 + $0xe8] sm:$0xff]
    %v2689 = vld [vmem:[%s2658 + $0xf0] sm:$0xff]
    %v2690 = vld [vmem:[%s2658 + $0xf8] sm:$0xff]
    %v2691 = vld [vmem:[%s2658 + $0x100] sm:$0xff]
    %v2692 = vld [vmem:[%s2658 + $0x108] sm:$0xff]
    %v2693 = vld [vmem:[%s2658 + $0x110] sm:$0xff]
    %v2694 = vld [vmem:[%s2658 + $0x118] sm:$0xff]
    %v2695 = vld [vmem:[%s2658 + $0x120] sm:$0xff]
    %v2696 = vld [vmem:[%s2658 + $0x128] sm:$0xff]
    %v2697 = vld [vmem:[%s2658 + $0x130] sm:$0xff]
    %v2698 = vld [vmem:[%s2658 + $0x138] sm:$0xff]
    %v2699 = vld [vmem:[%s2658 + $0x140] sm:$0xff]
    %v2700 = vld [vmem:[%s2658 + $0x148] sm:$0xff]
    %v2701 = vld [vmem:[%s2658 + $0x150] sm:$0xff]
    %v2702 = vld [vmem:[%s2658 + $0x158] sm:$0xff]
    %v2703 = vld [vmem:[%s2658 + $0x160] sm:$0xff]
    %v2704 = vld [vmem:[%s2658 + $0x168] sm:$0xff]
    %v2705 = vld [vmem:[%s2658 + $0x170] sm:$0xff]
    %v2706 = vld [vmem:[%s2658 + $0x178] sm:$0xff]
    %v2707 = vld [vmem:[%s2658 + $0x180] sm:$0xff]
    %v2708 = vld [vmem:[%s2658 + $0x188] sm:$0xff]
    %v2709 = vld [vmem:[%s2658 + $0x190] sm:$0xff]
    %v2710 = vld [vmem:[%s2658 + $0x198] sm:$0xff]
    %v2711 = vld [vmem:[%s2658 + $0x1a0] sm:$0xff]
    %v2712 = vld [vmem:[%s2658 + $0x1a8] sm:$0xff]
    %v2713 = vld [vmem:[%s2658 + $0x1b0] sm:$0xff]
    %v2714 = vld [vmem:[%s2658 + $0x1b8] sm:$0xff]
    %v2715 = vld [vmem:[%s2658 + $0x1c0] sm:$0xff]
    %v2716 = vld [vmem:[%s2658 + $0x1c8] sm:$0xff]
    %v2717 = vld [vmem:[%s2658 + $0x1d0] sm:$0xff]
    %v2718 = vld [vmem:[%s2658 + $0x1d8] sm:$0xff]
    %v2719 = vld [vmem:[%s2658 + $0x1e0] sm:$0xff]
    %v2720 = vld [vmem:[%s2658 + $0x1e8] sm:$0xff]
    %v2721 = vld [vmem:[%s2658 + $0x1f0] sm:$0xff]
    %v2722 = vld [vmem:[%s2658 + $0x1f8] sm:$0xff]
    %v2723 = vrot.slane %v216, 2
    %v2789 = vunpack.c.l.b16 %v2659
    %v2790 = vunpack.c.h.b16 %v2659
    %v2791 = vunpack.c.l.b16 %v2660
    %v2792 = vunpack.c.h.b16 %v2660
    %v2793 = vunpack.c.l.b16 %v2661
    %v2794 = vunpack.c.h.b16 %v2661
    %v2795 = vunpack.c.l.b16 %v2662
    %v2796 = vunpack.c.h.b16 %v2662
    %v2797 = vunpack.c.l.b16 %v2663
    %v2798 = vunpack.c.h.b16 %v2663
    %v2799 = vunpack.c.l.b16 %v2664
    %v2800 = vunpack.c.h.b16 %v2664
    %v2801 = vunpack.c.l.b16 %v2665
    %v2802 = vunpack.c.h.b16 %v2665
    %v2803 = vunpack.c.l.b16 %v2666
    %v2804 = vunpack.c.h.b16 %v2666
    %v2805 = vunpack.c.l.b16 %v2667
    %v2806 = vunpack.c.h.b16 %v2667
    %v2807 = vunpack.c.l.b16 %v2668
    %v2808 = vunpack.c.h.b16 %v2668
    %v2809 = vunpack.c.l.b16 %v2669
    %v2810 = vunpack.c.h.b16 %v2669
    %v2811 = vunpack.c.l.b16 %v2670
    %v2812 = vunpack.c.h.b16 %v2670
    %v2813 = vunpack.c.l.b16 %v2671
    %v2814 = vunpack.c.h.b16 %v2671
    %v2815 = vunpack.c.l.b16 %v2672
    %v2816 = vunpack.c.h.b16 %v2672
    %v2817 = vunpack.c.l.b16 %v2673
    %v2818 = vunpack.c.h.b16 %v2673
    %v2819 = vunpack.c.l.b16 %v2674
    %v2820 = vunpack.c.h.b16 %v2674
    %v2821 = vunpack.c.l.b16 %v2675
    %v2822 = vunpack.c.h.b16 %v2675
    %v2823 = vunpack.c.l.b16 %v2676
    %v2824 = vunpack.c.h.b16 %v2676
    %v2825 = vunpack.c.l.b16 %v2677
    %v2826 = vunpack.c.h.b16 %v2677
    %v2827 = vunpack.c.l.b16 %v2678
    %v2828 = vunpack.c.h.b16 %v2678
    %v2829 = vunpack.c.l.b16 %v2679
    %v2830 = vunpack.c.h.b16 %v2679
    %v2831 = vunpack.c.l.b16 %v2680
    %v2832 = vunpack.c.h.b16 %v2680
    %v2833 = vunpack.c.l.b16 %v2681
    %v2834 = vunpack.c.h.b16 %v2681
    %v2835 = vunpack.c.l.b16 %v2682
    %v2836 = vunpack.c.h.b16 %v2682
    %v2837 = vunpack.c.l.b16 %v2683
    %v2838 = vunpack.c.h.b16 %v2683
    %v2839 = vunpack.c.l.b16 %v2684
    %v2840 = vunpack.c.h.b16 %v2684
    %v2841 = vunpack.c.l.b16 %v2685
    %v2842 = vunpack.c.h.b16 %v2685
    %v2843 = vunpack.c.l.b16 %v2686
    %v2844 = vunpack.c.h.b16 %v2686
    %v2845 = vunpack.c.l.b16 %v2687
    %v2846 = vunpack.c.h.b16 %v2687
    %v2847 = vunpack.c.l.b16 %v2688
    %v2848 = vunpack.c.h.b16 %v2688
    %v2849 = vunpack.c.l.b16 %v2689
    %v2850 = vunpack.c.h.b16 %v2689
    %v2851 = vunpack.c.l.b16 %v2690
    %v2852 = vunpack.c.h.b16 %v2690
    %v2853 = vunpack.c.l.b16 %v2691
    %v2854 = vunpack.c.h.b16 %v2691
    %v2855 = vunpack.c.l.b16 %v2692
    %v2856 = vunpack.c.h.b16 %v2692
    %v2857 = vunpack.c.l.b16 %v2693
    %v2858 = vunpack.c.h.b16 %v2693
    %v2859 = vunpack.c.l.b16 %v2694
    %v2860 = vunpack.c.h.b16 %v2694
    %v2861 = vunpack.c.l.b16 %v2695
    %v2862 = vunpack.c.h.b16 %v2695
    %v2863 = vunpack.c.l.b16 %v2696
    %v2864 = vunpack.c.h.b16 %v2696
    %v2865 = vunpack.c.l.b16 %v2697
    %v2866 = vunpack.c.h.b16 %v2697
    %v2867 = vunpack.c.l.b16 %v2698
    %v2868 = vunpack.c.h.b16 %v2698
    %v2869 = vunpack.c.l.b16 %v2699
    %v2870 = vunpack.c.h.b16 %v2699
    %v2871 = vunpack.c.l.b16 %v2700
    %v2872 = vunpack.c.h.b16 %v2700
    %v2873 = vunpack.c.l.b16 %v2701
    %v2874 = vunpack.c.h.b16 %v2701
    %v2875 = vunpack.c.l.b16 %v2702
    %v2876 = vunpack.c.h.b16 %v2702
    %v2877 = vunpack.c.l.b16 %v2703
    %v2878 = vunpack.c.h.b16 %v2703
    %v2879 = vunpack.c.l.b16 %v2704
    %v2880 = vunpack.c.h.b16 %v2704
    %v2881 = vunpack.c.l.b16 %v2705
    %v2882 = vunpack.c.h.b16 %v2705
    %v2883 = vunpack.c.l.b16 %v2706
    %v2884 = vunpack.c.h.b16 %v2706
    %v2885 = vunpack.c.l.b16 %v2707
    %v2886 = vunpack.c.h.b16 %v2707
    %v2887 = vunpack.c.l.b16 %v2708
    %v2888 = vunpack.c.h.b16 %v2708
    %v2889 = vunpack.c.l.b16 %v2709
    %v2890 = vunpack.c.h.b16 %v2709
    %v2891 = vunpack.c.l.b16 %v2710
    %v2892 = vunpack.c.h.b16 %v2710
    %v2893 = vunpack.c.l.b16 %v2711
    %v2894 = vunpack.c.h.b16 %v2711
    %v2895 = vunpack.c.l.b16 %v2712
    %v2896 = vunpack.c.h.b16 %v2712
    %v2897 = vunpack.c.l.b16 %v2713
    %v2898 = vunpack.c.h.b16 %v2713
    %v2899 = vunpack.c.l.b16 %v2714
    %v2900 = vunpack.c.h.b16 %v2714
    %v2901 = vunpack.c.l.b16 %v2715
    %v2902 = vunpack.c.h.b16 %v2715
    %v2903 = vunpack.c.l.b16 %v2716
    %v2904 = vunpack.c.h.b16 %v2716
    %v2905 = vunpack.c.l.b16 %v2717
    %v2906 = vunpack.c.h.b16 %v2717
    %v2907 = vunpack.c.l.b16 %v2718
    %v2908 = vunpack.c.h.b16 %v2718
    %v2909 = vunpack.c.l.b16 %v2719
    %v2910 = vunpack.c.h.b16 %v2719
    %v2911 = vunpack.c.l.b16 %v2720
    %v2912 = vunpack.c.h.b16 %v2720
    %v2913 = vunpack.c.l.b16 %v2721
    %v2914 = vunpack.c.h.b16 %v2721
    %v2915 = vunpack.c.l.b16 %v2722
    %v2916 = vunpack.c.h.b16 %v2722
    %v2917 = vpack.c.b16 %v2797, %v2789
    %v2918 = vpack.c.b16 %v2798, %v2790
    %v2919 = vpack.c.b16 %v2799, %v2791
    %v2920 = vpack.c.b16 %v2800, %v2792
    %v2921 = vpack.c.b16 %v2801, %v2793
    %v2922 = vpack.c.b16 %v2802, %v2794
    %v2923 = vpack.c.b16 %v2803, %v2795
    %v2924 = vpack.c.b16 %v2804, %v2796
    %v2925 = vpack.c.b16 %v2813, %v2805
    %v2926 = vpack.c.b16 %v2814, %v2806
    %v2927 = vpack.c.b16 %v2815, %v2807
    %v2928 = vpack.c.b16 %v2816, %v2808
    %v2929 = vpack.c.b16 %v2817, %v2809
    %v2930 = vpack.c.b16 %v2818, %v2810
    %v2931 = vpack.c.b16 %v2819, %v2811
    %v2932 = vpack.c.b16 %v2820, %v2812
    %v2933 = vpack.c.b16 %v2829, %v2821
    %v2934 = vpack.c.b16 %v2830, %v2822
    %v2935 = vpack.c.b16 %v2831, %v2823
    %v2936 = vpack.c.b16 %v2832, %v2824
    %v2937 = vpack.c.b16 %v2833, %v2825
    %v2938 = vpack.c.b16 %v2834, %v2826
    %v2939 = vpack.c.b16 %v2835, %v2827
    %v2940 = vpack.c.b16 %v2836, %v2828
    %v2941 = vpack.c.b16 %v2845, %v2837
    %v2942 = vpack.c.b16 %v2846, %v2838
    %v2943 = vpack.c.b16 %v2847, %v2839
    %v2944 = vpack.c.b16 %v2848, %v2840
    %v2945 = vpack.c.b16 %v2849, %v2841
    %v2946 = vpack.c.b16 %v2850, %v2842
    %v2947 = vpack.c.b16 %v2851, %v2843
    %v2948 = vpack.c.b16 %v2852, %v2844
    %v2949 = vpack.c.b16 %v2861, %v2853
    %v2950 = vpack.c.b16 %v2862, %v2854
    %v2951 = vpack.c.b16 %v2863, %v2855
    %v2952 = vpack.c.b16 %v2864, %v2856
    %v2953 = vpack.c.b16 %v2865, %v2857
    %v2954 = vpack.c.b16 %v2866, %v2858
    %v2955 = vpack.c.b16 %v2867, %v2859
    %v2956 = vpack.c.b16 %v2868, %v2860
    %v2957 = vpack.c.b16 %v2877, %v2869
    %v2958 = vpack.c.b16 %v2878, %v2870
    %v2959 = vpack.c.b16 %v2879, %v2871
    %v2960 = vpack.c.b16 %v2880, %v2872
    %v2961 = vpack.c.b16 %v2881, %v2873
    %v2962 = vpack.c.b16 %v2882, %v2874
    %v2963 = vpack.c.b16 %v2883, %v2875
    %v2964 = vpack.c.b16 %v2884, %v2876
    %v2965 = vpack.c.b16 %v2893, %v2885
    %v2966 = vpack.c.b16 %v2894, %v2886
    %v2967 = vpack.c.b16 %v2895, %v2887
    %v2968 = vpack.c.b16 %v2896, %v2888
    %v2969 = vpack.c.b16 %v2897, %v2889
    %v2970 = vpack.c.b16 %v2898, %v2890
    %v2971 = vpack.c.b16 %v2899, %v2891
    %v2972 = vpack.c.b16 %v2900, %v2892
    %v2973 = vpack.c.b16 %v2909, %v2901
    %v2974 = vpack.c.b16 %v2910, %v2902
    %v2975 = vpack.c.b16 %v2911, %v2903
    %v2976 = vpack.c.b16 %v2912, %v2904
    %v2977 = vpack.c.b16 %v2913, %v2905
    %v2978 = vpack.c.b16 %v2914, %v2906
    %v2979 = vpack.c.b16 %v2915, %v2907
    %v2980 = vpack.c.b16 %v2916, %v2908
    %3045 = vmatprep.subr.bf16.mxu0 %v2974
    %3046 = vmatpush1.bf16.msra.mxu0 %v2973
    %3047 = vmatprep.subr.bf16.mxu0 %v2966
    %3048 = vmatpush1.bf16.msra.mxu0 %v2965
    %3049 = vmatprep.subr.bf16.mxu0 %v2958
    %3050 = vmatpush1.bf16.msra.mxu0 %v2957
    %3051 = vmatprep.subr.bf16.mxu0 %v2950
    %3052 = vmatpush1.bf16.msra.mxu0 %v2949
    %3053 = vmatprep.subr.bf16.mxu0 %v2942
    %3054 = vmatpush1.bf16.msra.mxu0 %v2941
    %3055 = vmatprep.subr.bf16.mxu0 %v2934
    %3056 = vmatpush1.bf16.msra.mxu0 %v2933
    %3057 = vmatprep.subr.bf16.mxu0 %v2926
    %3058 = vmatpush1.bf16.msra.mxu0 %v2925
    %3059 = vmatprep.subr.bf16.mxu0 %v2918
    %3060 = vmatpush1.bf16.msra.mxu0 %v2917
    %3061 = vmatprep.subr.bf16.mxu0 0
    %3062 = vmatpush2.bf16.msra.mxu0 0
    %3063 = vmatprep.subr.bf16.mxu0 0
    %3064 = vmatpush2.bf16.msra.mxu0 0
    %3065 = vmatprep.subr.bf16.mxu0 0
    %3066 = vmatpush2.bf16.msra.mxu0 0
    %3067 = vmatprep.subr.bf16.mxu0 0
    %3068 = vmatpush2.bf16.msra.mxu0 0
    %3069 = vmatprep.subr.bf16.mxu0 0
    %3070 = vmatpush2.bf16.msra.mxu0 0
    %3071 = vmatprep.subr.bf16.mxu0 0
    %3072 = vmatpush2.bf16.msra.mxu0 0
    %3073 = vmatprep.subr.bf16.mxu0 0
    %3074 = vmatpush2.bf16.msra.mxu0 0
    %3075 = vmatprep.subr.bf16.mxu0 0
    %3076 = vmatpush2.bf16.msra.mxu0 0
    %3077 = vmatprep.mubr.bf16.mxu0 0
    %3078 = vmatmul.mubr.bf16.gmra.mxu0 %v2723
    %v3079 = vpop.f32.mrf.mxu0
    %v3080 = vadd.f32 0.0, %v3079
    %v3081 = vpop.f32.mrf.mxu0
    %v3082 = vadd.f32 0.0, %v3081
    %v3083 = vpop.f32.mrf.mxu0
    %v3084 = vpop.f32.mrf.mxu0
    %3085 = vdwg.mxu0
    %3086 = vmatprep.subr.bf16.mxu0 %v2976
    %3087 = vmatpush1.bf16.msra.mxu0 %v2975
    %3088 = vmatprep.subr.bf16.mxu0 %v2968
    %3089 = vmatpush1.bf16.msra.mxu0 %v2967
    %3090 = vmatprep.subr.bf16.mxu0 %v2960
    %3091 = vmatpush1.bf16.msra.mxu0 %v2959
    %3092 = vmatprep.subr.bf16.mxu0 %v2952
    %3093 = vmatpush1.bf16.msra.mxu0 %v2951
    %3094 = vmatprep.subr.bf16.mxu0 %v2944
    %3095 = vmatpush1.bf16.msra.mxu0 %v2943
    %3096 = vmatprep.subr.bf16.mxu0 %v2936
    %3097 = vmatpush1.bf16.msra.mxu0 %v2935
    %3098 = vmatprep.subr.bf16.mxu0 %v2928
    %3099 = vmatpush1.bf16.msra.mxu0 %v2927
    %3100 = vmatprep.subr.bf16.mxu0 %v2920
    %3101 = vmatpush1.bf16.msra.mxu0 %v2919
    %3102 = vmatprep.subr.bf16.mxu0 0
    %3103 = vmatpush2.bf16.msra.mxu0 0
    %3104 = vmatprep.subr.bf16.mxu0 0
    %3105 = vmatpush2.bf16.msra.mxu0 0
    %3106 = vmatprep.subr.bf16.mxu0 0
    %3107 = vmatpush2.bf16.msra.mxu0 0
    %3108 = vmatprep.subr.bf16.mxu0 0
    %3109 = vmatpush2.bf16.msra.mxu0 0
    %3110 = vmatprep.subr.bf16.mxu0 0
    %3111 = vmatpush2.bf16.msra.mxu0 0
    %3112 = vmatprep.subr.bf16.mxu0 0
    %3113 = vmatpush2.bf16.msra.mxu0 0
    %3114 = vmatprep.subr.bf16.mxu0 0
    %3115 = vmatpush2.bf16.msra.mxu0 0
    %3116 = vmatprep.subr.bf16.mxu0 0
    %3117 = vmatpush2.bf16.msra.mxu0 0
    %3118 = vmatprep.mubr.bf16.mxu0 0
    %3119 = vmatmul.mubr.bf16.gmra.mxu0 %v2723
    %v3120 = vpop.f32.mrf.mxu0
    %v3121 = vadd.f32 0.0, %v3120
    %v3122 = vpop.f32.mrf.mxu0
    %v3123 = vadd.f32 0.0, %v3122
    %v3124 = vpop.f32.mrf.mxu0
    %v3125 = vpop.f32.mrf.mxu0
    %3126 = vdwg.mxu0
    %3127 = vmatprep.subr.bf16.mxu0 %v2978
    %3128 = vmatpush1.bf16.msra.mxu0 %v2977
    %3129 = vmatprep.subr.bf16.mxu0 %v2970
    %3130 = vmatpush1.bf16.msra.mxu0 %v2969
    %3131 = vmatprep.subr.bf16.mxu0 %v2962
    %3132 = vmatpush1.bf16.msra.mxu0 %v2961
    %3133 = vmatprep.subr.bf16.mxu0 %v2954
    %3134 = vmatpush1.bf16.msra.mxu0 %v2953
    %3135 = vmatprep.subr.bf16.mxu0 %v2946
    %3136 = vmatpush1.bf16.msra.mxu0 %v2945
    %3137 = vmatprep.subr.bf16.mxu0 %v2938
    %3138 = vmatpush1.bf16.msra.mxu0 %v2937
    %3139 = vmatprep.subr.bf16.mxu0 %v2930
    %3140 = vmatpush1.bf16.msra.mxu0 %v2929
    %3141 = vmatprep.subr.bf16.mxu0 %v2922
    %3142 = vmatpush1.bf16.msra.mxu0 %v2921
    %3143 = vmatprep.subr.bf16.mxu0 0
    %3144 = vmatpush2.bf16.msra.mxu0 0
    %3145 = vmatprep.subr.bf16.mxu0 0
    %3146 = vmatpush2.bf16.msra.mxu0 0
    %3147 = vmatprep.subr.bf16.mxu0 0
    %3148 = vmatpush2.bf16.msra.mxu0 0
    %3149 = vmatprep.subr.bf16.mxu0 0
    %3150 = vmatpush2.bf16.msra.mxu0 0
    %3151 = vmatprep.subr.bf16.mxu0 0
    %3152 = vmatpush2.bf16.msra.mxu0 0
    %3153 = vmatprep.subr.bf16.mxu0 0
    %3154 = vmatpush2.bf16.msra.mxu0 0
    %3155 = vmatprep.subr.bf16.mxu0 0
    %3156 = vmatpush2.bf16.msra.mxu0 0
    %3157 = vmatprep.subr.bf16.mxu0 0
    %3158 = vmatpush2.bf16.msra.mxu0 0
    %3159 = vmatprep.mubr.bf16.mxu0 0
    %3160 = vmatmul.mubr.bf16.gmra.mxu0 %v2723
    %v3161 = vpop.f32.mrf.mxu0
    %v3162 = vadd.f32 0.0, %v3161
    %v3163 = vpop.f32.mrf.mxu0
    %v3164 = vadd.f32 0.0, %v3163
    %v3165 = vpop.f32.mrf.mxu0
    %v3166 = vpop.f32.mrf.mxu0
    %3167 = vdwg.mxu0
    %3168 = vmatprep.subr.bf16.mxu0 %v2980
    %3169 = vmatpush1.bf16.msra.mxu0 %v2979
    %3170 = vmatprep.subr.bf16.mxu0 %v2972
    %3171 = vmatpush1.bf16.msra.mxu0 %v2971
    %3172 = vmatprep.subr.bf16.mxu0 %v2964
    %3173 = vmatpush1.bf16.msra.mxu0 %v2963
    %3174 = vmatprep.subr.bf16.mxu0 %v2956
    %3175 = vmatpush1.bf16.msra.mxu0 %v2955
    %3176 = vmatprep.subr.bf16.mxu0 %v2948
    %3177 = vmatpush1.bf16.msra.mxu0 %v2947
    %3178 = vmatprep.subr.bf16.mxu0 %v2940
    %3179 = vmatpush1.bf16.msra.mxu0 %v2939
    %3180 = vmatprep.subr.bf16.mxu0 %v2932
    %3181 = vmatpush1.bf16.msra.mxu0 %v2931
    %3182 = vmatprep.subr.bf16.mxu0 %v2924
    %3183 = vmatpush1.bf16.msra.mxu0 %v2923
    %3184 = vmatprep.subr.bf16.mxu0 0
    %3185 = vmatpush2.bf16.msra.mxu0 0
    %3186 = vmatprep.subr.bf16.mxu0 0
    %3187 = vmatpush2.bf16.msra.mxu0 0
    %3188 = vmatprep.subr.bf16.mxu0 0
    %3189 = vmatpush2.bf16.msra.mxu0 0
    %3190 = vmatprep.subr.bf16.mxu0 0
    %3191 = vmatpush2.bf16.msra.mxu0 0
    %3192 = vmatprep.subr.bf16.mxu0 0
    %3193 = vmatpush2.bf16.msra.mxu0 0
    %3194 = vmatprep.subr.bf16.mxu0 0
    %3195 = vmatpush2.bf16.msra.mxu0 0
    %3196 = vmatprep.subr.bf16.mxu0 0
    %3197 = vmatpush2.bf16.msra.mxu0 0
    %3198 = vmatprep.subr.bf16.mxu0 0
    %3199 = vmatpush2.bf16.msra.mxu0 0
    %3200 = vmatprep.mubr.bf16.mxu0 0
    %3201 = vmatmul.mubr.bf16.gmra.mxu0 %v2723
    %v3202 = vpop.f32.mrf.mxu0
    %v3203 = vadd.f32 0.0, %v3202
    %v3204 = vpop.f32.mrf.mxu0
    %v3205 = vadd.f32 0.0, %v3204
    %v3206 = vpop.f32.mrf.mxu0
    %v3207 = vpop.f32.mrf.mxu0
    %3208 = vdwg.mxu0
    %v3217 = vcombine.low %v3080, %v3082
    %v3218 = vcombine.low %v3121, %v3123
    %v3219 = vcombine.low %v3162, %v3164
    %v3220 = vcombine.low %v3203, %v3205
    %v3222 = vunpack.c.l.s4 1966171168
    %v3223 = vunpack.c.0.s8 %v3222
    %v3224 = vlaneseq
    %v3225 = vshrl.u32 %v3224, 7
    %v3226 = vsub.s32 %v3223, %v3225
    %v3227 = vrot.slane %v3217, %v3226
    %v3229 = vunpack.c.l.s4 1966171168
    %v3230 = vunpack.c.0.s8 %v3229
    %v3231 = vlaneseq
    %v3232 = vshrl.u32 %v3231, 7
    %v3233 = vsub.s32 %v3230, %v3232
    %v3234 = vrot.slane %v3218, %v3233
    %v3236 = vunpack.c.l.s4 1966171168
    %v3237 = vunpack.c.0.s8 %v3236
    %v3238 = vlaneseq
    %v3239 = vshrl.u32 %v3238, 7
    %v3240 = vsub.s32 %v3237, %v3239
    %v3241 = vrot.slane %v3219, %v3240
    %v3243 = vunpack.c.l.s4 1966171168
    %v3244 = vunpack.c.0.s8 %v3243
    %v3245 = vlaneseq
    %v3246 = vshrl.u32 %v3245, 7
    %v3247 = vsub.s32 %v3244, %v3246
    %v3248 = vrot.slane %v3220, %v3247
    %v3249 = vcombine.low %v3227, %v3234
    %v3250 = vcombine.low %v3241, %v3248
    %v3252 = vunpack.c.l.s4 1966171168
    %v3253 = vunpack.c.0.s8 %v3252
    %v3254 = vlaneseq
    %v3255 = vshrl.u32 %v3254, 7
    %v3256 = vsub.s32 %v3253, %v3255
    %v3257 = vrot.slane %v3249, %v3256
    %v3259 = vunpack.c.l.s4 1966171168
    %v3260 = vunpack.c.0.s8 %v3259
    %v3261 = vlaneseq
    %v3262 = vshrl.u32 %v3261, 7
    %v3263 = vsub.s32 %v3260, %v3262
    %v3264 = vrot.slane %v3250, %v3263
    %v3265 = vcombine.low %v3257, %v3264
    %v3267 = vadd.f32 %v2657, %v3265
    %s3268 = scalar_lea.vmem [#allocation6], 2560
    %v3269 = vld [vmem:[%s3268] sm:$0xff]
    %v3270 = vld [vmem:[%s3268 + $0x8] sm:$0xff]
    %v3271 = vld [vmem:[%s3268 + $0x10] sm:$0xff]
    %v3272 = vld [vmem:[%s3268 + $0x18] sm:$0xff]
    %v3273 = vld [vmem:[%s3268 + $0x20] sm:$0xff]
    %v3274 = vld [vmem:[%s3268 + $0x28] sm:$0xff]
    %v3275 = vld [vmem:[%s3268 + $0x30] sm:$0xff]
    %v3276 = vld [vmem:[%s3268 + $0x38] sm:$0xff]
    %v3277 = vld [vmem:[%s3268 + $0x40] sm:$0xff]
    %v3278 = vld [vmem:[%s3268 + $0x48] sm:$0xff]
    %v3279 = vld [vmem:[%s3268 + $0x50] sm:$0xff]
    %v3280 = vld [vmem:[%s3268 + $0x58] sm:$0xff]
    %v3281 = vld [vmem:[%s3268 + $0x60] sm:$0xff]
    %v3282 = vld [vmem:[%s3268 + $0x68] sm:$0xff]
    %v3283 = vld [vmem:[%s3268 + $0x70] sm:$0xff]
    %v3284 = vld [vmem:[%s3268 + $0x78] sm:$0xff]
    %v3285 = vld [vmem:[%s3268 + $0x80] sm:$0xff]
    %v3286 = vld [vmem:[%s3268 + $0x88] sm:$0xff]
    %v3287 = vld [vmem:[%s3268 + $0x90] sm:$0xff]
    %v3288 = vld [vmem:[%s3268 + $0x98] sm:$0xff]
    %v3289 = vld [vmem:[%s3268 + $0xa0] sm:$0xff]
    %v3290 = vld [vmem:[%s3268 + $0xa8] sm:$0xff]
    %v3291 = vld [vmem:[%s3268 + $0xb0] sm:$0xff]
    %v3292 = vld [vmem:[%s3268 + $0xb8] sm:$0xff]
    %v3293 = vld [vmem:[%s3268 + $0xc0] sm:$0xff]
    %v3294 = vld [vmem:[%s3268 + $0xc8] sm:$0xff]
    %v3295 = vld [vmem:[%s3268 + $0xd0] sm:$0xff]
    %v3296 = vld [vmem:[%s3268 + $0xd8] sm:$0xff]
    %v3297 = vld [vmem:[%s3268 + $0xe0] sm:$0xff]
    %v3298 = vld [vmem:[%s3268 + $0xe8] sm:$0xff]
    %v3299 = vld [vmem:[%s3268 + $0xf0] sm:$0xff]
    %v3300 = vld [vmem:[%s3268 + $0xf8] sm:$0xff]
    %v3301 = vld [vmem:[%s3268 + $0x100] sm:$0xff]
    %v3302 = vld [vmem:[%s3268 + $0x108] sm:$0xff]
    %v3303 = vld [vmem:[%s3268 + $0x110] sm:$0xff]
    %v3304 = vld [vmem:[%s3268 + $0x118] sm:$0xff]
    %v3305 = vld [vmem:[%s3268 + $0x120] sm:$0xff]
    %v3306 = vld [vmem:[%s3268 + $0x128] sm:$0xff]
    %v3307 = vld [vmem:[%s3268 + $0x130] sm:$0xff]
    %v3308 = vld [vmem:[%s3268 + $0x138] sm:$0xff]
    %v3309 = vld [vmem:[%s3268 + $0x140] sm:$0xff]
    %v3310 = vld [vmem:[%s3268 + $0x148] sm:$0xff]
    %v3311 = vld [vmem:[%s3268 + $0x150] sm:$0xff]
    %v3312 = vld [vmem:[%s3268 + $0x158] sm:$0xff]
    %v3313 = vld [vmem:[%s3268 + $0x160] sm:$0xff]
    %v3314 = vld [vmem:[%s3268 + $0x168] sm:$0xff]
    %v3315 = vld [vmem:[%s3268 + $0x170] sm:$0xff]
    %v3316 = vld [vmem:[%s3268 + $0x178] sm:$0xff]
    %v3317 = vld [vmem:[%s3268 + $0x180] sm:$0xff]
    %v3318 = vld [vmem:[%s3268 + $0x188] sm:$0xff]
    %v3319 = vld [vmem:[%s3268 + $0x190] sm:$0xff]
    %v3320 = vld [vmem:[%s3268 + $0x198] sm:$0xff]
    %v3321 = vld [vmem:[%s3268 + $0x1a0] sm:$0xff]
    %v3322 = vld [vmem:[%s3268 + $0x1a8] sm:$0xff]
    %v3323 = vld [vmem:[%s3268 + $0x1b0] sm:$0xff]
    %v3324 = vld [vmem:[%s3268 + $0x1b8] sm:$0xff]
    %v3325 = vld [vmem:[%s3268 + $0x1c0] sm:$0xff]
    %v3326 = vld [vmem:[%s3268 + $0x1c8] sm:$0xff]
    %v3327 = vld [vmem:[%s3268 + $0x1d0] sm:$0xff]
    %v3328 = vld [vmem:[%s3268 + $0x1d8] sm:$0xff]
    %v3329 = vld [vmem:[%s3268 + $0x1e0] sm:$0xff]
    %v3330 = vld [vmem:[%s3268 + $0x1e8] sm:$0xff]
    %v3331 = vld [vmem:[%s3268 + $0x1f0] sm:$0xff]
    %v3332 = vld [vmem:[%s3268 + $0x1f8] sm:$0xff]
    %v3333 = vrot.slane %v891, 2
    %v3399 = vunpack.c.l.b16 %v3269
    %v3400 = vunpack.c.h.b16 %v3269
    %v3401 = vunpack.c.l.b16 %v3270
    %v3402 = vunpack.c.h.b16 %v3270
    %v3403 = vunpack.c.l.b16 %v3271
    %v3404 = vunpack.c.h.b16 %v3271
    %v3405 = vunpack.c.l.b16 %v3272
    %v3406 = vunpack.c.h.b16 %v3272
    %v3407 = vunpack.c.l.b16 %v3273
    %v3408 = vunpack.c.h.b16 %v3273
    %v3409 = vunpack.c.l.b16 %v3274
    %v3410 = vunpack.c.h.b16 %v3274
    %v3411 = vunpack.c.l.b16 %v3275
    %v3412 = vunpack.c.h.b16 %v3275
    %v3413 = vunpack.c.l.b16 %v3276
    %v3414 = vunpack.c.h.b16 %v3276
    %v3415 = vunpack.c.l.b16 %v3277
    %v3416 = vunpack.c.h.b16 %v3277
    %v3417 = vunpack.c.l.b16 %v3278
    %v3418 = vunpack.c.h.b16 %v3278
    %v3419 = vunpack.c.l.b16 %v3279
    %v3420 = vunpack.c.h.b16 %v3279
    %v3421 = vunpack.c.l.b16 %v3280
    %v3422 = vunpack.c.h.b16 %v3280
    %v3423 = vunpack.c.l.b16 %v3281
    %v3424 = vunpack.c.h.b16 %v3281
    %v3425 = vunpack.c.l.b16 %v3282
    %v3426 = vunpack.c.h.b16 %v3282
    %v3427 = vunpack.c.l.b16 %v3283
    %v3428 = vunpack.c.h.b16 %v3283
    %v3429 = vunpack.c.l.b16 %v3284
    %v3430 = vunpack.c.h.b16 %v3284
    %v3431 = vunpack.c.l.b16 %v3285
    %v3432 = vunpack.c.h.b16 %v3285
    %v3433 = vunpack.c.l.b16 %v3286
    %v3434 = vunpack.c.h.b16 %v3286
    %v3435 = vunpack.c.l.b16 %v3287
    %v3436 = vunpack.c.h.b16 %v3287
    %v3437 = vunpack.c.l.b16 %v3288
    %v3438 = vunpack.c.h.b16 %v3288
    %v3439 = vunpack.c.l.b16 %v3289
    %v3440 = vunpack.c.h.b16 %v3289
    %v3441 = vunpack.c.l.b16 %v3290
    %v3442 = vunpack.c.h.b16 %v3290
    %v3443 = vunpack.c.l.b16 %v3291
    %v3444 = vunpack.c.h.b16 %v3291
    %v3445 = vunpack.c.l.b16 %v3292
    %v3446 = vunpack.c.h.b16 %v3292
    %v3447 = vunpack.c.l.b16 %v3293
    %v3448 = vunpack.c.h.b16 %v3293
    %v3449 = vunpack.c.l.b16 %v3294
    %v3450 = vunpack.c.h.b16 %v3294
    %v3451 = vunpack.c.l.b16 %v3295
    %v3452 = vunpack.c.h.b16 %v3295
    %v3453 = vunpack.c.l.b16 %v3296
    %v3454 = vunpack.c.h.b16 %v3296
    %v3455 = vunpack.c.l.b16 %v3297
    %v3456 = vunpack.c.h.b16 %v3297
    %v3457 = vunpack.c.l.b16 %v3298
    %v3458 = vunpack.c.h.b16 %v3298
    %v3459 = vunpack.c.l.b16 %v3299
    %v3460 = vunpack.c.h.b16 %v3299
    %v3461 = vunpack.c.l.b16 %v3300
    %v3462 = vunpack.c.h.b16 %v3300
    %v3463 = vunpack.c.l.b16 %v3301
    %v3464 = vunpack.c.h.b16 %v3301
    %v3465 = vunpack.c.l.b16 %v3302
    %v3466 = vunpack.c.h.b16 %v3302
    %v3467 = vunpack.c.l.b16 %v3303
    %v3468 = vunpack.c.h.b16 %v3303
    %v3469 = vunpack.c.l.b16 %v3304
    %v3470 = vunpack.c.h.b16 %v3304
    %v3471 = vunpack.c.l.b16 %v3305
    %v3472 = vunpack.c.h.b16 %v3305
    %v3473 = vunpack.c.l.b16 %v3306
    %v3474 = vunpack.c.h.b16 %v3306
    %v3475 = vunpack.c.l.b16 %v3307
    %v3476 = vunpack.c.h.b16 %v3307
    %v3477 = vunpack.c.l.b16 %v3308
    %v3478 = vunpack.c.h.b16 %v3308
    %v3479 = vunpack.c.l.b16 %v3309
    %v3480 = vunpack.c.h.b16 %v3309
    %v3481 = vunpack.c.l.b16 %v3310
    %v3482 = vunpack.c.h.b16 %v3310
    %v3483 = vunpack.c.l.b16 %v3311
    %v3484 = vunpack.c.h.b16 %v3311
    %v3485 = vunpack.c.l.b16 %v3312
    %v3486 = vunpack.c.h.b16 %v3312
    %v3487 = vunpack.c.l.b16 %v3313
    %v3488 = vunpack.c.h.b16 %v3313
    %v3489 = vunpack.c.l.b16 %v3314
    %v3490 = vunpack.c.h.b16 %v3314
    %v3491 = vunpack.c.l.b16 %v3315
    %v3492 = vunpack.c.h.b16 %v3315
    %v3493 = vunpack.c.l.b16 %v3316
    %v3494 = vunpack.c.h.b16 %v3316
    %v3495 = vunpack.c.l.b16 %v3317
    %v3496 = vunpack.c.h.b16 %v3317
    %v3497 = vunpack.c.l.b16 %v3318
    %v3498 = vunpack.c.h.b16 %v3318
    %v3499 = vunpack.c.l.b16 %v3319
    %v3500 = vunpack.c.h.b16 %v3319
    %v3501 = vunpack.c.l.b16 %v3320
    %v3502 = vunpack.c.h.b16 %v3320
    %v3503 = vunpack.c.l.b16 %v3321
    %v3504 = vunpack.c.h.b16 %v3321
    %v3505 = vunpack.c.l.b16 %v3322
    %v3506 = vunpack.c.h.b16 %v3322
    %v3507 = vunpack.c.l.b16 %v3323
    %v3508 = vunpack.c.h.b16 %v3323
    %v3509 = vunpack.c.l.b16 %v3324
    %v3510 = vunpack.c.h.b16 %v3324
    %v3511 = vunpack.c.l.b16 %v3325
    %v3512 = vunpack.c.h.b16 %v3325
    %v3513 = vunpack.c.l.b16 %v3326
    %v3514 = vunpack.c.h.b16 %v3326
    %v3515 = vunpack.c.l.b16 %v3327
    %v3516 = vunpack.c.h.b16 %v3327
    %v3517 = vunpack.c.l.b16 %v3328
    %v3518 = vunpack.c.h.b16 %v3328
    %v3519 = vunpack.c.l.b16 %v3329
    %v3520 = vunpack.c.h.b16 %v3329
    %v3521 = vunpack.c.l.b16 %v3330
    %v3522 = vunpack.c.h.b16 %v3330
    %v3523 = vunpack.c.l.b16 %v3331
    %v3524 = vunpack.c.h.b16 %v3331
    %v3525 = vunpack.c.l.b16 %v3332
    %v3526 = vunpack.c.h.b16 %v3332
    %v3527 = vpack.c.b16 %v3407, %v3399
    %v3528 = vpack.c.b16 %v3408, %v3400
    %v3529 = vpack.c.b16 %v3409, %v3401
    %v3530 = vpack.c.b16 %v3410, %v3402
    %v3531 = vpack.c.b16 %v3411, %v3403
    %v3532 = vpack.c.b16 %v3412, %v3404
    %v3533 = vpack.c.b16 %v3413, %v3405
    %v3534 = vpack.c.b16 %v3414, %v3406
    %v3535 = vpack.c.b16 %v3423, %v3415
    %v3536 = vpack.c.b16 %v3424, %v3416
    %v3537 = vpack.c.b16 %v3425, %v3417
    %v3538 = vpack.c.b16 %v3426, %v3418
    %v3539 = vpack.c.b16 %v3427, %v3419
    %v3540 = vpack.c.b16 %v3428, %v3420
    %v3541 = vpack.c.b16 %v3429, %v3421
    %v3542 = vpack.c.b16 %v3430, %v3422
    %v3543 = vpack.c.b16 %v3439, %v3431
    %v3544 = vpack.c.b16 %v3440, %v3432
    %v3545 = vpack.c.b16 %v3441, %v3433
    %v3546 = vpack.c.b16 %v3442, %v3434
    %v3547 = vpack.c.b16 %v3443, %v3435
    %v3548 = vpack.c.b16 %v3444, %v3436
    %v3549 = vpack.c.b16 %v3445, %v3437
    %v3550 = vpack.c.b16 %v3446, %v3438
    %v3551 = vpack.c.b16 %v3455, %v3447
    %v3552 = vpack.c.b16 %v3456, %v3448
    %v3553 = vpack.c.b16 %v3457, %v3449
    %v3554 = vpack.c.b16 %v3458, %v3450
    %v3555 = vpack.c.b16 %v3459, %v3451
    %v3556 = vpack.c.b16 %v3460, %v3452
    %v3557 = vpack.c.b16 %v3461, %v3453
    %v3558 = vpack.c.b16 %v3462, %v3454
    %v3559 = vpack.c.b16 %v3471, %v3463
    %v3560 = vpack.c.b16 %v3472, %v3464
    %v3561 = vpack.c.b16 %v3473, %v3465
    %v3562 = vpack.c.b16 %v3474, %v3466
    %v3563 = vpack.c.b16 %v3475, %v3467
    %v3564 = vpack.c.b16 %v3476, %v3468
    %v3565 = vpack.c.b16 %v3477, %v3469
    %v3566 = vpack.c.b16 %v3478, %v3470
    %v3567 = vpack.c.b16 %v3487, %v3479
    %v3568 = vpack.c.b16 %v3488, %v3480
    %v3569 = vpack.c.b16 %v3489, %v3481
    %v3570 = vpack.c.b16 %v3490, %v3482
    %v3571 = vpack.c.b16 %v3491, %v3483
    %v3572 = vpack.c.b16 %v3492, %v3484
    %v3573 = vpack.c.b16 %v3493, %v3485
    %v3574 = vpack.c.b16 %v3494, %v3486
    %v3575 = vpack.c.b16 %v3503, %v3495
    %v3576 = vpack.c.b16 %v3504, %v3496
    %v3577 = vpack.c.b16 %v3505, %v3497
    %v3578 = vpack.c.b16 %v3506, %v3498
    %v3579 = vpack.c.b16 %v3507, %v3499
    %v3580 = vpack.c.b16 %v3508, %v3500
    %v3581 = vpack.c.b16 %v3509, %v3501
    %v3582 = vpack.c.b16 %v3510, %v3502
    %v3583 = vpack.c.b16 %v3519, %v3511
    %v3584 = vpack.c.b16 %v3520, %v3512
    %v3585 = vpack.c.b16 %v3521, %v3513
    %v3586 = vpack.c.b16 %v3522, %v3514
    %v3587 = vpack.c.b16 %v3523, %v3515
    %v3588 = vpack.c.b16 %v3524, %v3516
    %v3589 = vpack.c.b16 %v3525, %v3517
    %v3590 = vpack.c.b16 %v3526, %v3518
    %3655 = vmatprep.subr.bf16.mxu0 %v3584
    %3656 = vmatpush1.bf16.msra.mxu0 %v3583
    %3657 = vmatprep.subr.bf16.mxu0 %v3576
    %3658 = vmatpush1.bf16.msra.mxu0 %v3575
    %3659 = vmatprep.subr.bf16.mxu0 %v3568
    %3660 = vmatpush1.bf16.msra.mxu0 %v3567
    %3661 = vmatprep.subr.bf16.mxu0 %v3560
    %3662 = vmatpush1.bf16.msra.mxu0 %v3559
    %3663 = vmatprep.subr.bf16.mxu0 %v3552
    %3664 = vmatpush1.bf16.msra.mxu0 %v3551
    %3665 = vmatprep.subr.bf16.mxu0 %v3544
    %3666 = vmatpush1.bf16.msra.mxu0 %v3543
    %3667 = vmatprep.subr.bf16.mxu0 %v3536
    %3668 = vmatpush1.bf16.msra.mxu0 %v3535
    %3669 = vmatprep.subr.bf16.mxu0 %v3528
    %3670 = vmatpush1.bf16.msra.mxu0 %v3527
    %3671 = vmatprep.subr.bf16.mxu0 0
    %3672 = vmatpush2.bf16.msra.mxu0 0
    %3673 = vmatprep.subr.bf16.mxu0 0
    %3674 = vmatpush2.bf16.msra.mxu0 0
    %3675 = vmatprep.subr.bf16.mxu0 0
    %3676 = vmatpush2.bf16.msra.mxu0 0
    %3677 = vmatprep.subr.bf16.mxu0 0
    %3678 = vmatpush2.bf16.msra.mxu0 0
    %3679 = vmatprep.subr.bf16.mxu0 0
    %3680 = vmatpush2.bf16.msra.mxu0 0
    %3681 = vmatprep.subr.bf16.mxu0 0
    %3682 = vmatpush2.bf16.msra.mxu0 0
    %3683 = vmatprep.subr.bf16.mxu0 0
    %3684 = vmatpush2.bf16.msra.mxu0 0
    %3685 = vmatprep.subr.bf16.mxu0 0
    %3686 = vmatpush2.bf16.msra.mxu0 0
    %3687 = vmatprep.mubr.bf16.mxu0 0
    %3688 = vmatmul.mubr.bf16.gmra.mxu0 %v3333
    %v3689 = vpop.f32.mrf.mxu0
    %v3690 = vadd.f32 0.0, %v3689
    %v3691 = vpop.f32.mrf.mxu0
    %v3692 = vadd.f32 0.0, %v3691
    %v3693 = vpop.f32.mrf.mxu0
    %v3694 = vpop.f32.mrf.mxu0
    %3695 = vdwg.mxu0
    %3696 = vmatprep.subr.bf16.mxu0 %v3586
    %3697 = vmatpush1.bf16.msra.mxu0 %v3585
    %3698 = vmatprep.subr.bf16.mxu0 %v3578
    %3699 = vmatpush1.bf16.msra.mxu0 %v3577
    %3700 = vmatprep.subr.bf16.mxu0 %v3570
    %3701 = vmatpush1.bf16.msra.mxu0 %v3569
    %3702 = vmatprep.subr.bf16.mxu0 %v3562
    %3703 = vmatpush1.bf16.msra.mxu0 %v3561
    %3704 = vmatprep.subr.bf16.mxu0 %v3554
    %3705 = vmatpush1.bf16.msra.mxu0 %v3553
    %3706 = vmatprep.subr.bf16.mxu0 %v3546
    %3707 = vmatpush1.bf16.msra.mxu0 %v3545
    %3708 = vmatprep.subr.bf16.mxu0 %v3538
    %3709 = vmatpush1.bf16.msra.mxu0 %v3537
    %3710 = vmatprep.subr.bf16.mxu0 %v3530
    %3711 = vmatpush1.bf16.msra.mxu0 %v3529
    %3712 = vmatprep.subr.bf16.mxu0 0
    %3713 = vmatpush2.bf16.msra.mxu0 0
    %3714 = vmatprep.subr.bf16.mxu0 0
    %3715 = vmatpush2.bf16.msra.mxu0 0
    %3716 = vmatprep.subr.bf16.mxu0 0
    %3717 = vmatpush2.bf16.msra.mxu0 0
    %3718 = vmatprep.subr.bf16.mxu0 0
    %3719 = vmatpush2.bf16.msra.mxu0 0
    %3720 = vmatprep.subr.bf16.mxu0 0
    %3721 = vmatpush2.bf16.msra.mxu0 0
    %3722 = vmatprep.subr.bf16.mxu0 0
    %3723 = vmatpush2.bf16.msra.mxu0 0
    %3724 = vmatprep.subr.bf16.mxu0 0
    %3725 = vmatpush2.bf16.msra.mxu0 0
    %3726 = vmatprep.subr.bf16.mxu0 0
    %3727 = vmatpush2.bf16.msra.mxu0 0
    %3728 = vmatprep.mubr.bf16.mxu0 0
    %3729 = vmatmul.mubr.bf16.gmra.mxu0 %v3333
    %v3730 = vpop.f32.mrf.mxu0
    %v3731 = vadd.f32 0.0, %v3730
    %v3732 = vpop.f32.mrf.mxu0
    %v3733 = vadd.f32 0.0, %v3732
    %v3734 = vpop.f32.mrf.mxu0
    %v3735 = vpop.f32.mrf.mxu0
    %3736 = vdwg.mxu0
    %3737 = vmatprep.subr.bf16.mxu0 %v3588
    %3738 = vmatpush1.bf16.msra.mxu0 %v3587
    %3739 = vmatprep.subr.bf16.mxu0 %v3580
    %3740 = vmatpush1.bf16.msra.mxu0 %v3579
    %3741 = vmatprep.subr.bf16.mxu0 %v3572
    %3742 = vmatpush1.bf16.msra.mxu0 %v3571
    %3743 = vmatprep.subr.bf16.mxu0 %v3564
    %3744 = vmatpush1.bf16.msra.mxu0 %v3563
    %3745 = vmatprep.subr.bf16.mxu0 %v3556
    %3746 = vmatpush1.bf16.msra.mxu0 %v3555
    %3747 = vmatprep.subr.bf16.mxu0 %v3548
    %3748 = vmatpush1.bf16.msra.mxu0 %v3547
    %3749 = vmatprep.subr.bf16.mxu0 %v3540
    %3750 = vmatpush1.bf16.msra.mxu0 %v3539
    %3751 = vmatprep.subr.bf16.mxu0 %v3532
    %3752 = vmatpush1.bf16.msra.mxu0 %v3531
    %3753 = vmatprep.subr.bf16.mxu0 0
    %3754 = vmatpush2.bf16.msra.mxu0 0
    %3755 = vmatprep.subr.bf16.mxu0 0
    %3756 = vmatpush2.bf16.msra.mxu0 0
    %3757 = vmatprep.subr.bf16.mxu0 0
    %3758 = vmatpush2.bf16.msra.mxu0 0
    %3759 = vmatprep.subr.bf16.mxu0 0
    %3760 = vmatpush2.bf16.msra.mxu0 0
    %3761 = vmatprep.subr.bf16.mxu0 0
    %3762 = vmatpush2.bf16.msra.mxu0 0
    %3763 = vmatprep.subr.bf16.mxu0 0
    %3764 = vmatpush2.bf16.msra.mxu0 0
    %3765 = vmatprep.subr.bf16.mxu0 0
    %3766 = vmatpush2.bf16.msra.mxu0 0
    %3767 = vmatprep.subr.bf16.mxu0 0
    %3768 = vmatpush2.bf16.msra.mxu0 0
    %3769 = vmatprep.mubr.bf16.mxu0 0
    %3770 = vmatmul.mubr.bf16.gmra.mxu0 %v3333
    %v3771 = vpop.f32.mrf.mxu0
    %v3772 = vadd.f32 0.0, %v3771
    %v3773 = vpop.f32.mrf.mxu0
    %v3774 = vadd.f32 0.0, %v3773
    %v3775 = vpop.f32.mrf.mxu0
    %v3776 = vpop.f32.mrf.mxu0
    %3777 = vdwg.mxu0
    %3778 = vmatprep.subr.bf16.mxu0 %v3590
    %3779 = vmatpush1.bf16.msra.mxu0 %v3589
    %3780 = vmatprep.subr.bf16.mxu0 %v3582
    %3781 = vmatpush1.bf16.msra.mxu0 %v3581
    %3782 = vmatprep.subr.bf16.mxu0 %v3574
    %3783 = vmatpush1.bf16.msra.mxu0 %v3573
    %3784 = vmatprep.subr.bf16.mxu0 %v3566
    %3785 = vmatpush1.bf16.msra.mxu0 %v3565
    %3786 = vmatprep.subr.bf16.mxu0 %v3558
    %3787 = vmatpush1.bf16.msra.mxu0 %v3557
    %3788 = vmatprep.subr.bf16.mxu0 %v3550
    %3789 = vmatpush1.bf16.msra.mxu0 %v3549
    %3790 = vmatprep.subr.bf16.mxu0 %v3542
    %3791 = vmatpush1.bf16.msra.mxu0 %v3541
    %3792 = vmatprep.subr.bf16.mxu0 %v3534
    %3793 = vmatpush1.bf16.msra.mxu0 %v3533
    %3794 = vmatprep.subr.bf16.mxu0 0
    %3795 = vmatpush2.bf16.msra.mxu0 0
    %3796 = vmatprep.subr.bf16.mxu0 0
    %3797 = vmatpush2.bf16.msra.mxu0 0
    %3798 = vmatprep.subr.bf16.mxu0 0
    %3799 = vmatpush2.bf16.msra.mxu0 0
    %3800 = vmatprep.subr.bf16.mxu0 0
    %3801 = vmatpush2.bf16.msra.mxu0 0
    %3802 = vmatprep.subr.bf16.mxu0 0
    %3803 = vmatpush2.bf16.msra.mxu0 0
    %3804 = vmatprep.subr.bf16.mxu0 0
    %3805 = vmatpush2.bf16.msra.mxu0 0
    %3806 = vmatprep.subr.bf16.mxu0 0
    %3807 = vmatpush2.bf16.msra.mxu0 0
    %3808 = vmatprep.subr.bf16.mxu0 0
    %3809 = vmatpush2.bf16.msra.mxu0 0
    %3810 = vmatprep.mubr.bf16.mxu0 0
    %3811 = vmatmul.mubr.bf16.gmra.mxu0 %v3333
    %v3812 = vpop.f32.mrf.mxu0
    %v3813 = vadd.f32 0.0, %v3812
    %v3814 = vpop.f32.mrf.mxu0
    %v3815 = vadd.f32 0.0, %v3814
    %v3816 = vpop.f32.mrf.mxu0
    %v3817 = vpop.f32.mrf.mxu0
    %3818 = vdwg.mxu0
    %v3827 = vcombine.low %v3690, %v3692
    %v3828 = vcombine.low %v3731, %v3733
    %v3829 = vcombine.low %v3772, %v3774
    %v3830 = vcombine.low %v3813, %v3815
    %v3832 = vunpack.c.l.s4 1966171168
    %v3833 = vunpack.c.0.s8 %v3832
    %v3834 = vlaneseq
    %v3835 = vshrl.u32 %v3834, 7
    %v3836 = vsub.s32 %v3833, %v3835
    %v3837 = vrot.slane %v3827, %v3836
    %v3839 = vunpack.c.l.s4 1966171168
    %v3840 = vunpack.c.0.s8 %v3839
    %v3841 = vlaneseq
    %v3842 = vshrl.u32 %v3841, 7
    %v3843 = vsub.s32 %v3840, %v3842
    %v3844 = vrot.slane %v3828, %v3843
    %v3846 = vunpack.c.l.s4 1966171168
    %v3847 = vunpack.c.0.s8 %v3846
    %v3848 = vlaneseq
    %v3849 = vshrl.u32 %v3848, 7
    %v3850 = vsub.s32 %v3847, %v3849
    %v3851 = vrot.slane %v3829, %v3850
    %v3853 = vunpack.c.l.s4 1966171168
    %v3854 = vunpack.c.0.s8 %v3853
    %v3855 = vlaneseq
    %v3856 = vshrl.u32 %v3855, 7
    %v3857 = vsub.s32 %v3854, %v3856
    %v3858 = vrot.slane %v3830, %v3857
    %v3859 = vcombine.low %v3837, %v3844
    %v3860 = vcombine.low %v3851, %v3858
    %v3862 = vunpack.c.l.s4 1966171168
    %v3863 = vunpack.c.0.s8 %v3862
    %v3864 = vlaneseq
    %v3865 = vshrl.u32 %v3864, 7
    %v3866 = vsub.s32 %v3863, %v3865
    %v3867 = vrot.slane %v3859, %v3866
    %v3869 = vunpack.c.l.s4 1966171168
    %v3870 = vunpack.c.0.s8 %v3869
    %v3871 = vlaneseq
    %v3872 = vshrl.u32 %v3871, 7
    %v3873 = vsub.s32 %v3870, %v3872
    %v3874 = vrot.slane %v3860, %v3873
    %v3875 = vcombine.low %v3867, %v3874
    %v3877 = vadd.f32 %v3267, %v3875
    %s3878 = scalar_lea.vmem [#allocation6], 3072
    %v3879 = vld [vmem:[%s3878] sm:$0xff]
    %v3880 = vld [vmem:[%s3878 + $0x8] sm:$0xff]
    %v3881 = vld [vmem:[%s3878 + $0x10] sm:$0xff]
    %v3882 = vld [vmem:[%s3878 + $0x18] sm:$0xff]
    %v3883 = vld [vmem:[%s3878 + $0x20] sm:$0xff]
    %v3884 = vld [vmem:[%s3878 + $0x28] sm:$0xff]
    %v3885 = vld [vmem:[%s3878 + $0x30] sm:$0xff]
    %v3886 = vld [vmem:[%s3878 + $0x38] sm:$0xff]
    %v3887 = vld [vmem:[%s3878 + $0x40] sm:$0xff]
    %v3888 = vld [vmem:[%s3878 + $0x48] sm:$0xff]
    %v3889 = vld [vmem:[%s3878 + $0x50] sm:$0xff]
    %v3890 = vld [vmem:[%s3878 + $0x58] sm:$0xff]
    %v3891 = vld [vmem:[%s3878 + $0x60] sm:$0xff]
    %v3892 = vld [vmem:[%s3878 + $0x68] sm:$0xff]
    %v3893 = vld [vmem:[%s3878 + $0x70] sm:$0xff]
    %v3894 = vld [vmem:[%s3878 + $0x78] sm:$0xff]
    %v3895 = vld [vmem:[%s3878 + $0x80] sm:$0xff]
    %v3896 = vld [vmem:[%s3878 + $0x88] sm:$0xff]
    %v3897 = vld [vmem:[%s3878 + $0x90] sm:$0xff]
    %v3898 = vld [vmem:[%s3878 + $0x98] sm:$0xff]
    %v3899 = vld [vmem:[%s3878 + $0xa0] sm:$0xff]
    %v3900 = vld [vmem:[%s3878 + $0xa8] sm:$0xff]
    %v3901 = vld [vmem:[%s3878 + $0xb0] sm:$0xff]
    %v3902 = vld [vmem:[%s3878 + $0xb8] sm:$0xff]
    %v3903 = vld [vmem:[%s3878 + $0xc0] sm:$0xff]
    %v3904 = vld [vmem:[%s3878 + $0xc8] sm:$0xff]
    %v3905 = vld [vmem:[%s3878 + $0xd0] sm:$0xff]
    %v3906 = vld [vmem:[%s3878 + $0xd8] sm:$0xff]
    %v3907 = vld [vmem:[%s3878 + $0xe0] sm:$0xff]
    %v3908 = vld [vmem:[%s3878 + $0xe8] sm:$0xff]
    %v3909 = vld [vmem:[%s3878 + $0xf0] sm:$0xff]
    %v3910 = vld [vmem:[%s3878 + $0xf8] sm:$0xff]
    %v3911 = vld [vmem:[%s3878 + $0x100] sm:$0xff]
    %v3912 = vld [vmem:[%s3878 + $0x108] sm:$0xff]
    %v3913 = vld [vmem:[%s3878 + $0x110] sm:$0xff]
    %v3914 = vld [vmem:[%s3878 + $0x118] sm:$0xff]
    %v3915 = vld [vmem:[%s3878 + $0x120] sm:$0xff]
    %v3916 = vld [vmem:[%s3878 + $0x128] sm:$0xff]
    %v3917 = vld [vmem:[%s3878 + $0x130] sm:$0xff]
    %v3918 = vld [vmem:[%s3878 + $0x138] sm:$0xff]
    %v3919 = vld [vmem:[%s3878 + $0x140] sm:$0xff]
    %v3920 = vld [vmem:[%s3878 + $0x148] sm:$0xff]
    %v3921 = vld [vmem:[%s3878 + $0x150] sm:$0xff]
    %v3922 = vld [vmem:[%s3878 + $0x158] sm:$0xff]
    %v3923 = vld [vmem:[%s3878 + $0x160] sm:$0xff]
    %v3924 = vld [vmem:[%s3878 + $0x168] sm:$0xff]
    %v3925 = vld [vmem:[%s3878 + $0x170] sm:$0xff]
    %v3926 = vld [vmem:[%s3878 + $0x178] sm:$0xff]
    %v3927 = vld [vmem:[%s3878 + $0x180] sm:$0xff]
    %v3928 = vld [vmem:[%s3878 + $0x188] sm:$0xff]
    %v3929 = vld [vmem:[%s3878 + $0x190] sm:$0xff]
    %v3930 = vld [vmem:[%s3878 + $0x198] sm:$0xff]
    %v3931 = vld [vmem:[%s3878 + $0x1a0] sm:$0xff]
    %v3932 = vld [vmem:[%s3878 + $0x1a8] sm:$0xff]
    %v3933 = vld [vmem:[%s3878 + $0x1b0] sm:$0xff]
    %v3934 = vld [vmem:[%s3878 + $0x1b8] sm:$0xff]
    %v3935 = vld [vmem:[%s3878 + $0x1c0] sm:$0xff]
    %v3936 = vld [vmem:[%s3878 + $0x1c8] sm:$0xff]
    %v3937 = vld [vmem:[%s3878 + $0x1d0] sm:$0xff]
    %v3938 = vld [vmem:[%s3878 + $0x1d8] sm:$0xff]
    %v3939 = vld [vmem:[%s3878 + $0x1e0] sm:$0xff]
    %v3940 = vld [vmem:[%s3878 + $0x1e8] sm:$0xff]
    %v3941 = vld [vmem:[%s3878 + $0x1f0] sm:$0xff]
    %v3942 = vld [vmem:[%s3878 + $0x1f8] sm:$0xff]
    %v3943 = vrot.slane %v216, 3
    %v4009 = vunpack.c.l.b16 %v3879
    %v4010 = vunpack.c.h.b16 %v3879
    %v4011 = vunpack.c.l.b16 %v3880
    %v4012 = vunpack.c.h.b16 %v3880
    %v4013 = vunpack.c.l.b16 %v3881
    %v4014 = vunpack.c.h.b16 %v3881
    %v4015 = vunpack.c.l.b16 %v3882
    %v4016 = vunpack.c.h.b16 %v3882
    %v4017 = vunpack.c.l.b16 %v3883
    %v4018 = vunpack.c.h.b16 %v3883
    %v4019 = vunpack.c.l.b16 %v3884
    %v4020 = vunpack.c.h.b16 %v3884
    %v4021 = vunpack.c.l.b16 %v3885
    %v4022 = vunpack.c.h.b16 %v3885
    %v4023 = vunpack.c.l.b16 %v3886
    %v4024 = vunpack.c.h.b16 %v3886
    %v4025 = vunpack.c.l.b16 %v3887
    %v4026 = vunpack.c.h.b16 %v3887
    %v4027 = vunpack.c.l.b16 %v3888
    %v4028 = vunpack.c.h.b16 %v3888
    %v4029 = vunpack.c.l.b16 %v3889
    %v4030 = vunpack.c.h.b16 %v3889
    %v4031 = vunpack.c.l.b16 %v3890
    %v4032 = vunpack.c.h.b16 %v3890
    %v4033 = vunpack.c.l.b16 %v3891
    %v4034 = vunpack.c.h.b16 %v3891
    %v4035 = vunpack.c.l.b16 %v3892
    %v4036 = vunpack.c.h.b16 %v3892
    %v4037 = vunpack.c.l.b16 %v3893
    %v4038 = vunpack.c.h.b16 %v3893
    %v4039 = vunpack.c.l.b16 %v3894
    %v4040 = vunpack.c.h.b16 %v3894
    %v4041 = vunpack.c.l.b16 %v3895
    %v4042 = vunpack.c.h.b16 %v3895
    %v4043 = vunpack.c.l.b16 %v3896
    %v4044 = vunpack.c.h.b16 %v3896
    %v4045 = vunpack.c.l.b16 %v3897
    %v4046 = vunpack.c.h.b16 %v3897
    %v4047 = vunpack.c.l.b16 %v3898
    %v4048 = vunpack.c.h.b16 %v3898
    %v4049 = vunpack.c.l.b16 %v3899
    %v4050 = vunpack.c.h.b16 %v3899
    %v4051 = vunpack.c.l.b16 %v3900
    %v4052 = vunpack.c.h.b16 %v3900
    %v4053 = vunpack.c.l.b16 %v3901
    %v4054 = vunpack.c.h.b16 %v3901
    %v4055 = vunpack.c.l.b16 %v3902
    %v4056 = vunpack.c.h.b16 %v3902
    %v4057 = vunpack.c.l.b16 %v3903
    %v4058 = vunpack.c.h.b16 %v3903
    %v4059 = vunpack.c.l.b16 %v3904
    %v4060 = vunpack.c.h.b16 %v3904
    %v4061 = vunpack.c.l.b16 %v3905
    %v4062 = vunpack.c.h.b16 %v3905
    %v4063 = vunpack.c.l.b16 %v3906
    %v4064 = vunpack.c.h.b16 %v3906
    %v4065 = vunpack.c.l.b16 %v3907
    %v4066 = vunpack.c.h.b16 %v3907
    %v4067 = vunpack.c.l.b16 %v3908
    %v4068 = vunpack.c.h.b16 %v3908
    %v4069 = vunpack.c.l.b16 %v3909
    %v4070 = vunpack.c.h.b16 %v3909
    %v4071 = vunpack.c.l.b16 %v3910
    %v4072 = vunpack.c.h.b16 %v3910
    %v4073 = vunpack.c.l.b16 %v3911
    %v4074 = vunpack.c.h.b16 %v3911
    %v4075 = vunpack.c.l.b16 %v3912
    %v4076 = vunpack.c.h.b16 %v3912
    %v4077 = vunpack.c.l.b16 %v3913
    %v4078 = vunpack.c.h.b16 %v3913
    %v4079 = vunpack.c.l.b16 %v3914
    %v4080 = vunpack.c.h.b16 %v3914
    %v4081 = vunpack.c.l.b16 %v3915
    %v4082 = vunpack.c.h.b16 %v3915
    %v4083 = vunpack.c.l.b16 %v3916
    %v4084 = vunpack.c.h.b16 %v3916
    %v4085 = vunpack.c.l.b16 %v3917
    %v4086 = vunpack.c.h.b16 %v3917
    %v4087 = vunpack.c.l.b16 %v3918
    %v4088 = vunpack.c.h.b16 %v3918
    %v4089 = vunpack.c.l.b16 %v3919
    %v4090 = vunpack.c.h.b16 %v3919
    %v4091 = vunpack.c.l.b16 %v3920
    %v4092 = vunpack.c.h.b16 %v3920
    %v4093 = vunpack.c.l.b16 %v3921
    %v4094 = vunpack.c.h.b16 %v3921
    %v4095 = vunpack.c.l.b16 %v3922
    %v4096 = vunpack.c.h.b16 %v3922
    %v4097 = vunpack.c.l.b16 %v3923
    %v4098 = vunpack.c.h.b16 %v3923
    %v4099 = vunpack.c.l.b16 %v3924
    %v4100 = vunpack.c.h.b16 %v3924
    %v4101 = vunpack.c.l.b16 %v3925
    %v4102 = vunpack.c.h.b16 %v3925
    %v4103 = vunpack.c.l.b16 %v3926
    %v4104 = vunpack.c.h.b16 %v3926
    %v4105 = vunpack.c.l.b16 %v3927
    %v4106 = vunpack.c.h.b16 %v3927
    %v4107 = vunpack.c.l.b16 %v3928
    %v4108 = vunpack.c.h.b16 %v3928
    %v4109 = vunpack.c.l.b16 %v3929
    %v4110 = vunpack.c.h.b16 %v3929
    %v4111 = vunpack.c.l.b16 %v3930
    %v4112 = vunpack.c.h.b16 %v3930
    %v4113 = vunpack.c.l.b16 %v3931
    %v4114 = vunpack.c.h.b16 %v3931
    %v4115 = vunpack.c.l.b16 %v3932
    %v4116 = vunpack.c.h.b16 %v3932
    %v4117 = vunpack.c.l.b16 %v3933
    %v4118 = vunpack.c.h.b16 %v3933
    %v4119 = vunpack.c.l.b16 %v3934
    %v4120 = vunpack.c.h.b16 %v3934
    %v4121 = vunpack.c.l.b16 %v3935
    %v4122 = vunpack.c.h.b16 %v3935
    %v4123 = vunpack.c.l.b16 %v3936
    %v4124 = vunpack.c.h.b16 %v3936
    %v4125 = vunpack.c.l.b16 %v3937
    %v4126 = vunpack.c.h.b16 %v3937
    %v4127 = vunpack.c.l.b16 %v3938
    %v4128 = vunpack.c.h.b16 %v3938
    %v4129 = vunpack.c.l.b16 %v3939
    %v4130 = vunpack.c.h.b16 %v3939
    %v4131 = vunpack.c.l.b16 %v3940
    %v4132 = vunpack.c.h.b16 %v3940
    %v4133 = vunpack.c.l.b16 %v3941
    %v4134 = vunpack.c.h.b16 %v3941
    %v4135 = vunpack.c.l.b16 %v3942
    %v4136 = vunpack.c.h.b16 %v3942
    %v4137 = vpack.c.b16 %v4017, %v4009
    %v4138 = vpack.c.b16 %v4018, %v4010
    %v4139 = vpack.c.b16 %v4019, %v4011
    %v4140 = vpack.c.b16 %v4020, %v4012
    %v4141 = vpack.c.b16 %v4021, %v4013
    %v4142 = vpack.c.b16 %v4022, %v4014
    %v4143 = vpack.c.b16 %v4023, %v4015
    %v4144 = vpack.c.b16 %v4024, %v4016
    %v4145 = vpack.c.b16 %v4033, %v4025
    %v4146 = vpack.c.b16 %v4034, %v4026
    %v4147 = vpack.c.b16 %v4035, %v4027
    %v4148 = vpack.c.b16 %v4036, %v4028
    %v4149 = vpack.c.b16 %v4037, %v4029
    %v4150 = vpack.c.b16 %v4038, %v4030
    %v4151 = vpack.c.b16 %v4039, %v4031
    %v4152 = vpack.c.b16 %v4040, %v4032
    %v4153 = vpack.c.b16 %v4049, %v4041
    %v4154 = vpack.c.b16 %v4050, %v4042
    %v4155 = vpack.c.b16 %v4051, %v4043
    %v4156 = vpack.c.b16 %v4052, %v4044
    %v4157 = vpack.c.b16 %v4053, %v4045
    %v4158 = vpack.c.b16 %v4054, %v4046
    %v4159 = vpack.c.b16 %v4055, %v4047
    %v4160 = vpack.c.b16 %v4056, %v4048
    %v4161 = vpack.c.b16 %v4065, %v4057
    %v4162 = vpack.c.b16 %v4066, %v4058
    %v4163 = vpack.c.b16 %v4067, %v4059
    %v4164 = vpack.c.b16 %v4068, %v4060
    %v4165 = vpack.c.b16 %v4069, %v4061
    %v4166 = vpack.c.b16 %v4070, %v4062
    %v4167 = vpack.c.b16 %v4071, %v4063
    %v4168 = vpack.c.b16 %v4072, %v4064
    %v4169 = vpack.c.b16 %v4081, %v4073
    %v4170 = vpack.c.b16 %v4082, %v4074
    %v4171 = vpack.c.b16 %v4083, %v4075
    %v4172 = vpack.c.b16 %v4084, %v4076
    %v4173 = vpack.c.b16 %v4085, %v4077
    %v4174 = vpack.c.b16 %v4086, %v4078
    %v4175 = vpack.c.b16 %v4087, %v4079
    %v4176 = vpack.c.b16 %v4088, %v4080
    %v4177 = vpack.c.b16 %v4097, %v4089
    %v4178 = vpack.c.b16 %v4098, %v4090
    %v4179 = vpack.c.b16 %v4099, %v4091
    %v4180 = vpack.c.b16 %v4100, %v4092
    %v4181 = vpack.c.b16 %v4101, %v4093
    %v4182 = vpack.c.b16 %v4102, %v4094
    %v4183 = vpack.c.b16 %v4103, %v4095
    %v4184 = vpack.c.b16 %v4104, %v4096
    %v4185 = vpack.c.b16 %v4113, %v4105
    %v4186 = vpack.c.b16 %v4114, %v4106
    %v4187 = vpack.c.b16 %v4115, %v4107
    %v4188 = vpack.c.b16 %v4116, %v4108
    %v4189 = vpack.c.b16 %v4117, %v4109
    %v4190 = vpack.c.b16 %v4118, %v4110
    %v4191 = vpack.c.b16 %v4119, %v4111
    %v4192 = vpack.c.b16 %v4120, %v4112
    %v4193 = vpack.c.b16 %v4129, %v4121
    %v4194 = vpack.c.b16 %v4130, %v4122
    %v4195 = vpack.c.b16 %v4131, %v4123
    %v4196 = vpack.c.b16 %v4132, %v4124
    %v4197 = vpack.c.b16 %v4133, %v4125
    %v4198 = vpack.c.b16 %v4134, %v4126
    %v4199 = vpack.c.b16 %v4135, %v4127
    %v4200 = vpack.c.b16 %v4136, %v4128
    %4265 = vmatprep.subr.bf16.mxu0 %v4194
    %4266 = vmatpush1.bf16.msra.mxu0 %v4193
    %4267 = vmatprep.subr.bf16.mxu0 %v4186
    %4268 = vmatpush1.bf16.msra.mxu0 %v4185
    %4269 = vmatprep.subr.bf16.mxu0 %v4178
    %4270 = vmatpush1.bf16.msra.mxu0 %v4177
    %4271 = vmatprep.subr.bf16.mxu0 %v4170
    %4272 = vmatpush1.bf16.msra.mxu0 %v4169
    %4273 = vmatprep.subr.bf16.mxu0 %v4162
    %4274 = vmatpush1.bf16.msra.mxu0 %v4161
    %4275 = vmatprep.subr.bf16.mxu0 %v4154
    %4276 = vmatpush1.bf16.msra.mxu0 %v4153
    %4277 = vmatprep.subr.bf16.mxu0 %v4146
    %4278 = vmatpush1.bf16.msra.mxu0 %v4145
    %4279 = vmatprep.subr.bf16.mxu0 %v4138
    %4280 = vmatpush1.bf16.msra.mxu0 %v4137
    %4281 = vmatprep.subr.bf16.mxu0 0
    %4282 = vmatpush2.bf16.msra.mxu0 0
    %4283 = vmatprep.subr.bf16.mxu0 0
    %4284 = vmatpush2.bf16.msra.mxu0 0
    %4285 = vmatprep.subr.bf16.mxu0 0
    %4286 = vmatpush2.bf16.msra.mxu0 0
    %4287 = vmatprep.subr.bf16.mxu0 0
    %4288 = vmatpush2.bf16.msra.mxu0 0
    %4289 = vmatprep.subr.bf16.mxu0 0
    %4290 = vmatpush2.bf16.msra.mxu0 0
    %4291 = vmatprep.subr.bf16.mxu0 0
    %4292 = vmatpush2.bf16.msra.mxu0 0
    %4293 = vmatprep.subr.bf16.mxu0 0
    %4294 = vmatpush2.bf16.msra.mxu0 0
    %4295 = vmatprep.subr.bf16.mxu0 0
    %4296 = vmatpush2.bf16.msra.mxu0 0
    %4297 = vmatprep.mubr.bf16.mxu0 0
    %4298 = vmatmul.mubr.bf16.gmra.mxu0 %v3943
    %v4299 = vpop.f32.mrf.mxu0
    %v4300 = vadd.f32 0.0, %v4299
    %v4301 = vpop.f32.mrf.mxu0
    %v4302 = vadd.f32 0.0, %v4301
    %v4303 = vpop.f32.mrf.mxu0
    %v4304 = vpop.f32.mrf.mxu0
    %4305 = vdwg.mxu0
    %4306 = vmatprep.subr.bf16.mxu0 %v4196
    %4307 = vmatpush1.bf16.msra.mxu0 %v4195
    %4308 = vmatprep.subr.bf16.mxu0 %v4188
    %4309 = vmatpush1.bf16.msra.mxu0 %v4187
    %4310 = vmatprep.subr.bf16.mxu0 %v4180
    %4311 = vmatpush1.bf16.msra.mxu0 %v4179
    %4312 = vmatprep.subr.bf16.mxu0 %v4172
    %4313 = vmatpush1.bf16.msra.mxu0 %v4171
    %4314 = vmatprep.subr.bf16.mxu0 %v4164
    %4315 = vmatpush1.bf16.msra.mxu0 %v4163
    %4316 = vmatprep.subr.bf16.mxu0 %v4156
    %4317 = vmatpush1.bf16.msra.mxu0 %v4155
    %4318 = vmatprep.subr.bf16.mxu0 %v4148
    %4319 = vmatpush1.bf16.msra.mxu0 %v4147
    %4320 = vmatprep.subr.bf16.mxu0 %v4140
    %4321 = vmatpush1.bf16.msra.mxu0 %v4139
    %4322 = vmatprep.subr.bf16.mxu0 0
    %4323 = vmatpush2.bf16.msra.mxu0 0
    %4324 = vmatprep.subr.bf16.mxu0 0
    %4325 = vmatpush2.bf16.msra.mxu0 0
    %4326 = vmatprep.subr.bf16.mxu0 0
    %4327 = vmatpush2.bf16.msra.mxu0 0
    %4328 = vmatprep.subr.bf16.mxu0 0
    %4329 = vmatpush2.bf16.msra.mxu0 0
    %4330 = vmatprep.subr.bf16.mxu0 0
    %4331 = vmatpush2.bf16.msra.mxu0 0
    %4332 = vmatprep.subr.bf16.mxu0 0
    %4333 = vmatpush2.bf16.msra.mxu0 0
    %4334 = vmatprep.subr.bf16.mxu0 0
    %4335 = vmatpush2.bf16.msra.mxu0 0
    %4336 = vmatprep.subr.bf16.mxu0 0
    %4337 = vmatpush2.bf16.msra.mxu0 0
    %4338 = vmatprep.mubr.bf16.mxu0 0
    %4339 = vmatmul.mubr.bf16.gmra.mxu0 %v3943
    %v4340 = vpop.f32.mrf.mxu0
    %v4341 = vadd.f32 0.0, %v4340
    %v4342 = vpop.f32.mrf.mxu0
    %v4343 = vadd.f32 0.0, %v4342
    %v4344 = vpop.f32.mrf.mxu0
    %v4345 = vpop.f32.mrf.mxu0
    %4346 = vdwg.mxu0
    %4347 = vmatprep.subr.bf16.mxu0 %v4198
    %4348 = vmatpush1.bf16.msra.mxu0 %v4197
    %4349 = vmatprep.subr.bf16.mxu0 %v4190
    %4350 = vmatpush1.bf16.msra.mxu0 %v4189
    %4351 = vmatprep.subr.bf16.mxu0 %v4182
    %4352 = vmatpush1.bf16.msra.mxu0 %v4181
    %4353 = vmatprep.subr.bf16.mxu0 %v4174
    %4354 = vmatpush1.bf16.msra.mxu0 %v4173
    %4355 = vmatprep.subr.bf16.mxu0 %v4166
    %4356 = vmatpush1.bf16.msra.mxu0 %v4165
    %4357 = vmatprep.subr.bf16.mxu0 %v4158
    %4358 = vmatpush1.bf16.msra.mxu0 %v4157
    %4359 = vmatprep.subr.bf16.mxu0 %v4150
    %4360 = vmatpush1.bf16.msra.mxu0 %v4149
    %4361 = vmatprep.subr.bf16.mxu0 %v4142
    %4362 = vmatpush1.bf16.msra.mxu0 %v4141
    %4363 = vmatprep.subr.bf16.mxu0 0
    %4364 = vmatpush2.bf16.msra.mxu0 0
    %4365 = vmatprep.subr.bf16.mxu0 0
    %4366 = vmatpush2.bf16.msra.mxu0 0
    %4367 = vmatprep.subr.bf16.mxu0 0
    %4368 = vmatpush2.bf16.msra.mxu0 0
    %4369 = vmatprep.subr.bf16.mxu0 0
    %4370 = vmatpush2.bf16.msra.mxu0 0
    %4371 = vmatprep.subr.bf16.mxu0 0
    %4372 = vmatpush2.bf16.msra.mxu0 0
    %4373 = vmatprep.subr.bf16.mxu0 0
    %4374 = vmatpush2.bf16.msra.mxu0 0
    %4375 = vmatprep.subr.bf16.mxu0 0
    %4376 = vmatpush2.bf16.msra.mxu0 0
    %4377 = vmatprep.subr.bf16.mxu0 0
    %4378 = vmatpush2.bf16.msra.mxu0 0
    %4379 = vmatprep.mubr.bf16.mxu0 0
    %4380 = vmatmul.mubr.bf16.gmra.mxu0 %v3943
    %v4381 = vpop.f32.mrf.mxu0
    %v4382 = vadd.f32 0.0, %v4381
    %v4383 = vpop.f32.mrf.mxu0
    %v4384 = vadd.f32 0.0, %v4383
    %v4385 = vpop.f32.mrf.mxu0
    %v4386 = vpop.f32.mrf.mxu0
    %4387 = vdwg.mxu0
    %4388 = vmatprep.subr.bf16.mxu0 %v4200
    %4389 = vmatpush1.bf16.msra.mxu0 %v4199
    %4390 = vmatprep.subr.bf16.mxu0 %v4192
    %4391 = vmatpush1.bf16.msra.mxu0 %v4191
    %4392 = vmatprep.subr.bf16.mxu0 %v4184
    %4393 = vmatpush1.bf16.msra.mxu0 %v4183
    %4394 = vmatprep.subr.bf16.mxu0 %v4176
    %4395 = vmatpush1.bf16.msra.mxu0 %v4175
    %4396 = vmatprep.subr.bf16.mxu0 %v4168
    %4397 = vmatpush1.bf16.msra.mxu0 %v4167
    %4398 = vmatprep.subr.bf16.mxu0 %v4160
    %4399 = vmatpush1.bf16.msra.mxu0 %v4159
    %4400 = vmatprep.subr.bf16.mxu0 %v4152
    %4401 = vmatpush1.bf16.msra.mxu0 %v4151
    %4402 = vmatprep.subr.bf16.mxu0 %v4144
    %4403 = vmatpush1.bf16.msra.mxu0 %v4143
    %4404 = vmatprep.subr.bf16.mxu0 0
    %4405 = vmatpush2.bf16.msra.mxu0 0
    %4406 = vmatprep.subr.bf16.mxu0 0
    %4407 = vmatpush2.bf16.msra.mxu0 0
    %4408 = vmatprep.subr.bf16.mxu0 0
    %4409 = vmatpush2.bf16.msra.mxu0 0
    %4410 = vmatprep.subr.bf16.mxu0 0
    %4411 = vmatpush2.bf16.msra.mxu0 0
    %4412 = vmatprep.subr.bf16.mxu0 0
    %4413 = vmatpush2.bf16.msra.mxu0 0
    %4414 = vmatprep.subr.bf16.mxu0 0
    %4415 = vmatpush2.bf16.msra.mxu0 0
    %4416 = vmatprep.subr.bf16.mxu0 0
    %4417 = vmatpush2.bf16.msra.mxu0 0
    %4418 = vmatprep.subr.bf16.mxu0 0
    %4419 = vmatpush2.bf16.msra.mxu0 0
    %4420 = vmatprep.mubr.bf16.mxu0 0
    %4421 = vmatmul.mubr.bf16.gmra.mxu0 %v3943
    %v4422 = vpop.f32.mrf.mxu0
    %v4423 = vadd.f32 0.0, %v4422
    %v4424 = vpop.f32.mrf.mxu0
    %v4425 = vadd.f32 0.0, %v4424
    %v4426 = vpop.f32.mrf.mxu0
    %v4427 = vpop.f32.mrf.mxu0
    %4428 = vdwg.mxu0
    %v4437 = vcombine.low %v4300, %v4302
    %v4438 = vcombine.low %v4341, %v4343
    %v4439 = vcombine.low %v4382, %v4384
    %v4440 = vcombine.low %v4423, %v4425
    %v4442 = vunpack.c.l.s4 1966171168
    %v4443 = vunpack.c.0.s8 %v4442
    %v4444 = vlaneseq
    %v4445 = vshrl.u32 %v4444, 7
    %v4446 = vsub.s32 %v4443, %v4445
    %v4447 = vrot.slane %v4437, %v4446
    %v4449 = vunpack.c.l.s4 1966171168
    %v4450 = vunpack.c.0.s8 %v4449
    %v4451 = vlaneseq
    %v4452 = vshrl.u32 %v4451, 7
    %v4453 = vsub.s32 %v4450, %v4452
    %v4454 = vrot.slane %v4438, %v4453
    %v4456 = vunpack.c.l.s4 1966171168
    %v4457 = vunpack.c.0.s8 %v4456
    %v4458 = vlaneseq
    %v4459 = vshrl.u32 %v4458, 7
    %v4460 = vsub.s32 %v4457, %v4459
    %v4461 = vrot.slane %v4439, %v4460
    %v4463 = vunpack.c.l.s4 1966171168
    %v4464 = vunpack.c.0.s8 %v4463
    %v4465 = vlaneseq
    %v4466 = vshrl.u32 %v4465, 7
    %v4467 = vsub.s32 %v4464, %v4466
    %v4468 = vrot.slane %v4440, %v4467
    %v4469 = vcombine.low %v4447, %v4454
    %v4470 = vcombine.low %v4461, %v4468
    %v4472 = vunpack.c.l.s4 1966171168
    %v4473 = vunpack.c.0.s8 %v4472
    %v4474 = vlaneseq
    %v4475 = vshrl.u32 %v4474, 7
    %v4476 = vsub.s32 %v4473, %v4475
    %v4477 = vrot.slane %v4469, %v4476
    %v4479 = vunpack.c.l.s4 1966171168
    %v4480 = vunpack.c.0.s8 %v4479
    %v4481 = vlaneseq
    %v4482 = vshrl.u32 %v4481, 7
    %v4483 = vsub.s32 %v4480, %v4482
    %v4484 = vrot.slane %v4470, %v4483
    %v4485 = vcombine.low %v4477, %v4484
    %v4487 = vadd.f32 %v3877, %v4485
    %s4488 = scalar_lea.vmem [#allocation6], 3584
    %v4489 = vld [vmem:[%s4488] sm:$0xff]
    %v4490 = vld [vmem:[%s4488 + $0x8] sm:$0xff]
    %v4491 = vld [vmem:[%s4488 + $0x10] sm:$0xff]
    %v4492 = vld [vmem:[%s4488 + $0x18] sm:$0xff]
    %v4493 = vld [vmem:[%s4488 + $0x20] sm:$0xff]
    %v4494 = vld [vmem:[%s4488 + $0x28] sm:$0xff]
    %v4495 = vld [vmem:[%s4488 + $0x30] sm:$0xff]
    %v4496 = vld [vmem:[%s4488 + $0x38] sm:$0xff]
    %v4497 = vld [vmem:[%s4488 + $0x40] sm:$0xff]
    %v4498 = vld [vmem:[%s4488 + $0x48] sm:$0xff]
    %v4499 = vld [vmem:[%s4488 + $0x50] sm:$0xff]
    %v4500 = vld [vmem:[%s4488 + $0x58] sm:$0xff]
    %v4501 = vld [vmem:[%s4488 + $0x60] sm:$0xff]
    %v4502 = vld [vmem:[%s4488 + $0x68] sm:$0xff]
    %v4503 = vld [vmem:[%s4488 + $0x70] sm:$0xff]
    %v4504 = vld [vmem:[%s4488 + $0x78] sm:$0xff]
    %v4505 = vld [vmem:[%s4488 + $0x80] sm:$0xff]
    %v4506 = vld [vmem:[%s4488 + $0x88] sm:$0xff]
    %v4507 = vld [vmem:[%s4488 + $0x90] sm:$0xff]
    %v4508 = vld [vmem:[%s4488 + $0x98] sm:$0xff]
    %v4509 = vld [vmem:[%s4488 + $0xa0] sm:$0xff]
    %v4510 = vld [vmem:[%s4488 + $0xa8] sm:$0xff]
    %v4511 = vld [vmem:[%s4488 + $0xb0] sm:$0xff]
    %v4512 = vld [vmem:[%s4488 + $0xb8] sm:$0xff]
    %v4513 = vld [vmem:[%s4488 + $0xc0] sm:$0xff]
    %v4514 = vld [vmem:[%s4488 + $0xc8] sm:$0xff]
    %v4515 = vld [vmem:[%s4488 + $0xd0] sm:$0xff]
    %v4516 = vld [vmem:[%s4488 + $0xd8] sm:$0xff]
    %v4517 = vld [vmem:[%s4488 + $0xe0] sm:$0xff]
    %v4518 = vld [vmem:[%s4488 + $0xe8] sm:$0xff]
    %v4519 = vld [vmem:[%s4488 + $0xf0] sm:$0xff]
    %v4520 = vld [vmem:[%s4488 + $0xf8] sm:$0xff]
    %v4521 = vld [vmem:[%s4488 + $0x100] sm:$0xff]
    %v4522 = vld [vmem:[%s4488 + $0x108] sm:$0xff]
    %v4523 = vld [vmem:[%s4488 + $0x110] sm:$0xff]
    %v4524 = vld [vmem:[%s4488 + $0x118] sm:$0xff]
    %v4525 = vld [vmem:[%s4488 + $0x120] sm:$0xff]
    %v4526 = vld [vmem:[%s4488 + $0x128] sm:$0xff]
    %v4527 = vld [vmem:[%s4488 + $0x130] sm:$0xff]
    %v4528 = vld [vmem:[%s4488 + $0x138] sm:$0xff]
    %v4529 = vld [vmem:[%s4488 + $0x140] sm:$0xff]
    %v4530 = vld [vmem:[%s4488 + $0x148] sm:$0xff]
    %v4531 = vld [vmem:[%s4488 + $0x150] sm:$0xff]
    %v4532 = vld [vmem:[%s4488 + $0x158] sm:$0xff]
    %v4533 = vld [vmem:[%s4488 + $0x160] sm:$0xff]
    %v4534 = vld [vmem:[%s4488 + $0x168] sm:$0xff]
    %v4535 = vld [vmem:[%s4488 + $0x170] sm:$0xff]
    %v4536 = vld [vmem:[%s4488 + $0x178] sm:$0xff]
    %v4537 = vld [vmem:[%s4488 + $0x180] sm:$0xff]
    %v4538 = vld [vmem:[%s4488 + $0x188] sm:$0xff]
    %v4539 = vld [vmem:[%s4488 + $0x190] sm:$0xff]
    %v4540 = vld [vmem:[%s4488 + $0x198] sm:$0xff]
    %v4541 = vld [vmem:[%s4488 + $0x1a0] sm:$0xff]
    %v4542 = vld [vmem:[%s4488 + $0x1a8] sm:$0xff]
    %v4543 = vld [vmem:[%s4488 + $0x1b0] sm:$0xff]
    %v4544 = vld [vmem:[%s4488 + $0x1b8] sm:$0xff]
    %v4545 = vld [vmem:[%s4488 + $0x1c0] sm:$0xff]
    %v4546 = vld [vmem:[%s4488 + $0x1c8] sm:$0xff]
    %v4547 = vld [vmem:[%s4488 + $0x1d0] sm:$0xff]
    %v4548 = vld [vmem:[%s4488 + $0x1d8] sm:$0xff]
    %v4549 = vld [vmem:[%s4488 + $0x1e0] sm:$0xff]
    %v4550 = vld [vmem:[%s4488 + $0x1e8] sm:$0xff]
    %v4551 = vld [vmem:[%s4488 + $0x1f0] sm:$0xff]
    %v4552 = vld [vmem:[%s4488 + $0x1f8] sm:$0xff]
    %v4553 = vrot.slane %v891, 3
    %v4619 = vunpack.c.l.b16 %v4489
    %v4620 = vunpack.c.h.b16 %v4489
    %v4621 = vunpack.c.l.b16 %v4490
    %v4622 = vunpack.c.h.b16 %v4490
    %v4623 = vunpack.c.l.b16 %v4491
    %v4624 = vunpack.c.h.b16 %v4491
    %v4625 = vunpack.c.l.b16 %v4492
    %v4626 = vunpack.c.h.b16 %v4492
    %v4627 = vunpack.c.l.b16 %v4493
    %v4628 = vunpack.c.h.b16 %v4493
    %v4629 = vunpack.c.l.b16 %v4494
    %v4630 = vunpack.c.h.b16 %v4494
    %v4631 = vunpack.c.l.b16 %v4495
    %v4632 = vunpack.c.h.b16 %v4495
    %v4633 = vunpack.c.l.b16 %v4496
    %v4634 = vunpack.c.h.b16 %v4496
    %v4635 = vunpack.c.l.b16 %v4497
    %v4636 = vunpack.c.h.b16 %v4497
    %v4637 = vunpack.c.l.b16 %v4498
    %v4638 = vunpack.c.h.b16 %v4498
    %v4639 = vunpack.c.l.b16 %v4499
    %v4640 = vunpack.c.h.b16 %v4499
    %v4641 = vunpack.c.l.b16 %v4500
    %v4642 = vunpack.c.h.b16 %v4500
    %v4643 = vunpack.c.l.b16 %v4501
    %v4644 = vunpack.c.h.b16 %v4501
    %v4645 = vunpack.c.l.b16 %v4502
    %v4646 = vunpack.c.h.b16 %v4502
    %v4647 = vunpack.c.l.b16 %v4503
    %v4648 = vunpack.c.h.b16 %v4503
    %v4649 = vunpack.c.l.b16 %v4504
    %v4650 = vunpack.c.h.b16 %v4504
    %v4651 = vunpack.c.l.b16 %v4505
    %v4652 = vunpack.c.h.b16 %v4505
    %v4653 = vunpack.c.l.b16 %v4506
    %v4654 = vunpack.c.h.b16 %v4506
    %v4655 = vunpack.c.l.b16 %v4507
    %v4656 = vunpack.c.h.b16 %v4507
    %v4657 = vunpack.c.l.b16 %v4508
    %v4658 = vunpack.c.h.b16 %v4508
    %v4659 = vunpack.c.l.b16 %v4509
    %v4660 = vunpack.c.h.b16 %v4509
    %v4661 = vunpack.c.l.b16 %v4510
    %v4662 = vunpack.c.h.b16 %v4510
    %v4663 = vunpack.c.l.b16 %v4511
    %v4664 = vunpack.c.h.b16 %v4511
    %v4665 = vunpack.c.l.b16 %v4512
    %v4666 = vunpack.c.h.b16 %v4512
    %v4667 = vunpack.c.l.b16 %v4513
    %v4668 = vunpack.c.h.b16 %v4513
    %v4669 = vunpack.c.l.b16 %v4514
    %v4670 = vunpack.c.h.b16 %v4514
    %v4671 = vunpack.c.l.b16 %v4515
    %v4672 = vunpack.c.h.b16 %v4515
    %v4673 = vunpack.c.l.b16 %v4516
    %v4674 = vunpack.c.h.b16 %v4516
    %v4675 = vunpack.c.l.b16 %v4517
    %v4676 = vunpack.c.h.b16 %v4517
    %v4677 = vunpack.c.l.b16 %v4518
    %v4678 = vunpack.c.h.b16 %v4518
    %v4679 = vunpack.c.l.b16 %v4519
    %v4680 = vunpack.c.h.b16 %v4519
    %v4681 = vunpack.c.l.b16 %v4520
    %v4682 = vunpack.c.h.b16 %v4520
    %v4683 = vunpack.c.l.b16 %v4521
    %v4684 = vunpack.c.h.b16 %v4521
    %v4685 = vunpack.c.l.b16 %v4522
    %v4686 = vunpack.c.h.b16 %v4522
    %v4687 = vunpack.c.l.b16 %v4523
    %v4688 = vunpack.c.h.b16 %v4523
    %v4689 = vunpack.c.l.b16 %v4524
    %v4690 = vunpack.c.h.b16 %v4524
    %v4691 = vunpack.c.l.b16 %v4525
    %v4692 = vunpack.c.h.b16 %v4525
    %v4693 = vunpack.c.l.b16 %v4526
    %v4694 = vunpack.c.h.b16 %v4526
    %v4695 = vunpack.c.l.b16 %v4527
    %v4696 = vunpack.c.h.b16 %v4527
    %v4697 = vunpack.c.l.b16 %v4528
    %v4698 = vunpack.c.h.b16 %v4528
    %v4699 = vunpack.c.l.b16 %v4529
    %v4700 = vunpack.c.h.b16 %v4529
    %v4701 = vunpack.c.l.b16 %v4530
    %v4702 = vunpack.c.h.b16 %v4530
    %v4703 = vunpack.c.l.b16 %v4531
    %v4704 = vunpack.c.h.b16 %v4531
    %v4705 = vunpack.c.l.b16 %v4532
    %v4706 = vunpack.c.h.b16 %v4532
    %v4707 = vunpack.c.l.b16 %v4533
    %v4708 = vunpack.c.h.b16 %v4533
    %v4709 = vunpack.c.l.b16 %v4534
    %v4710 = vunpack.c.h.b16 %v4534
    %v4711 = vunpack.c.l.b16 %v4535
    %v4712 = vunpack.c.h.b16 %v4535
    %v4713 = vunpack.c.l.b16 %v4536
    %v4714 = vunpack.c.h.b16 %v4536
    %v4715 = vunpack.c.l.b16 %v4537
    %v4716 = vunpack.c.h.b16 %v4537
    %v4717 = vunpack.c.l.b16 %v4538
    %v4718 = vunpack.c.h.b16 %v4538
    %v4719 = vunpack.c.l.b16 %v4539
    %v4720 = vunpack.c.h.b16 %v4539
    %v4721 = vunpack.c.l.b16 %v4540
    %v4722 = vunpack.c.h.b16 %v4540
    %v4723 = vunpack.c.l.b16 %v4541
    %v4724 = vunpack.c.h.b16 %v4541
    %v4725 = vunpack.c.l.b16 %v4542
    %v4726 = vunpack.c.h.b16 %v4542
    %v4727 = vunpack.c.l.b16 %v4543
    %v4728 = vunpack.c.h.b16 %v4543
    %v4729 = vunpack.c.l.b16 %v4544
    %v4730 = vunpack.c.h.b16 %v4544
    %v4731 = vunpack.c.l.b16 %v4545
    %v4732 = vunpack.c.h.b16 %v4545
    %v4733 = vunpack.c.l.b16 %v4546
    %v4734 = vunpack.c.h.b16 %v4546
    %v4735 = vunpack.c.l.b16 %v4547
    %v4736 = vunpack.c.h.b16 %v4547
    %v4737 = vunpack.c.l.b16 %v4548
    %v4738 = vunpack.c.h.b16 %v4548
    %v4739 = vunpack.c.l.b16 %v4549
    %v4740 = vunpack.c.h.b16 %v4549
    %v4741 = vunpack.c.l.b16 %v4550
    %v4742 = vunpack.c.h.b16 %v4550
    %v4743 = vunpack.c.l.b16 %v4551
    %v4744 = vunpack.c.h.b16 %v4551
    %v4745 = vunpack.c.l.b16 %v4552
    %v4746 = vunpack.c.h.b16 %v4552
    %v4747 = vpack.c.b16 %v4627, %v4619
    %v4748 = vpack.c.b16 %v4628, %v4620
    %v4749 = vpack.c.b16 %v4629, %v4621
    %v4750 = vpack.c.b16 %v4630, %v4622
    %v4751 = vpack.c.b16 %v4631, %v4623
    %v4752 = vpack.c.b16 %v4632, %v4624
    %v4753 = vpack.c.b16 %v4633, %v4625
    %v4754 = vpack.c.b16 %v4634, %v4626
    %v4755 = vpack.c.b16 %v4643, %v4635
    %v4756 = vpack.c.b16 %v4644, %v4636
    %v4757 = vpack.c.b16 %v4645, %v4637
    %v4758 = vpack.c.b16 %v4646, %v4638
    %v4759 = vpack.c.b16 %v4647, %v4639
    %v4760 = vpack.c.b16 %v4648, %v4640
    %v4761 = vpack.c.b16 %v4649, %v4641
    %v4762 = vpack.c.b16 %v4650, %v4642
    %v4763 = vpack.c.b16 %v4659, %v4651
    %v4764 = vpack.c.b16 %v4660, %v4652
    %v4765 = vpack.c.b16 %v4661, %v4653
    %v4766 = vpack.c.b16 %v4662, %v4654
    %v4767 = vpack.c.b16 %v4663, %v4655
    %v4768 = vpack.c.b16 %v4664, %v4656
    %v4769 = vpack.c.b16 %v4665, %v4657
    %v4770 = vpack.c.b16 %v4666, %v4658
    %v4771 = vpack.c.b16 %v4675, %v4667
    %v4772 = vpack.c.b16 %v4676, %v4668
    %v4773 = vpack.c.b16 %v4677, %v4669
    %v4774 = vpack.c.b16 %v4678, %v4670
    %v4775 = vpack.c.b16 %v4679, %v4671
    %v4776 = vpack.c.b16 %v4680, %v4672
    %v4777 = vpack.c.b16 %v4681, %v4673
    %v4778 = vpack.c.b16 %v4682, %v4674
    %v4779 = vpack.c.b16 %v4691, %v4683
    %v4780 = vpack.c.b16 %v4692, %v4684
    %v4781 = vpack.c.b16 %v4693, %v4685
    %v4782 = vpack.c.b16 %v4694, %v4686
    %v4783 = vpack.c.b16 %v4695, %v4687
    %v4784 = vpack.c.b16 %v4696, %v4688
    %v4785 = vpack.c.b16 %v4697, %v4689
    %v4786 = vpack.c.b16 %v4698, %v4690
    %v4787 = vpack.c.b16 %v4707, %v4699
    %v4788 = vpack.c.b16 %v4708, %v4700
    %v4789 = vpack.c.b16 %v4709, %v4701
    %v4790 = vpack.c.b16 %v4710, %v4702
    %v4791 = vpack.c.b16 %v4711, %v4703
    %v4792 = vpack.c.b16 %v4712, %v4704
    %v4793 = vpack.c.b16 %v4713, %v4705
    %v4794 = vpack.c.b16 %v4714, %v4706
    %v4795 = vpack.c.b16 %v4723, %v4715
    %v4796 = vpack.c.b16 %v4724, %v4716
    %v4797 = vpack.c.b16 %v4725, %v4717
    %v4798 = vpack.c.b16 %v4726, %v4718
    %v4799 = vpack.c.b16 %v4727, %v4719
    %v4800 = vpack.c.b16 %v4728, %v4720
    %v4801 = vpack.c.b16 %v4729, %v4721
    %v4802 = vpack.c.b16 %v4730, %v4722
    %v4803 = vpack.c.b16 %v4739, %v4731
    %v4804 = vpack.c.b16 %v4740, %v4732
    %v4805 = vpack.c.b16 %v4741, %v4733
    %v4806 = vpack.c.b16 %v4742, %v4734
    %v4807 = vpack.c.b16 %v4743, %v4735
    %v4808 = vpack.c.b16 %v4744, %v4736
    %v4809 = vpack.c.b16 %v4745, %v4737
    %v4810 = vpack.c.b16 %v4746, %v4738
    %4875 = vmatprep.subr.bf16.mxu0 %v4804
    %4876 = vmatpush1.bf16.msra.mxu0 %v4803
    %4877 = vmatprep.subr.bf16.mxu0 %v4796
    %4878 = vmatpush1.bf16.msra.mxu0 %v4795
    %4879 = vmatprep.subr.bf16.mxu0 %v4788
    %4880 = vmatpush1.bf16.msra.mxu0 %v4787
    %4881 = vmatprep.subr.bf16.mxu0 %v4780
    %4882 = vmatpush1.bf16.msra.mxu0 %v4779
    %4883 = vmatprep.subr.bf16.mxu0 %v4772
    %4884 = vmatpush1.bf16.msra.mxu0 %v4771
    %4885 = vmatprep.subr.bf16.mxu0 %v4764
    %4886 = vmatpush1.bf16.msra.mxu0 %v4763
    %4887 = vmatprep.subr.bf16.mxu0 %v4756
    %4888 = vmatpush1.bf16.msra.mxu0 %v4755
    %4889 = vmatprep.subr.bf16.mxu0 %v4748
    %4890 = vmatpush1.bf16.msra.mxu0 %v4747
    %4891 = vmatprep.subr.bf16.mxu0 0
    %4892 = vmatpush2.bf16.msra.mxu0 0
    %4893 = vmatprep.subr.bf16.mxu0 0
    %4894 = vmatpush2.bf16.msra.mxu0 0
    %4895 = vmatprep.subr.bf16.mxu0 0
    %4896 = vmatpush2.bf16.msra.mxu0 0
    %4897 = vmatprep.subr.bf16.mxu0 0
    %4898 = vmatpush2.bf16.msra.mxu0 0
    %4899 = vmatprep.subr.bf16.mxu0 0
    %4900 = vmatpush2.bf16.msra.mxu0 0
    %4901 = vmatprep.subr.bf16.mxu0 0
    %4902 = vmatpush2.bf16.msra.mxu0 0
    %4903 = vmatprep.subr.bf16.mxu0 0
    %4904 = vmatpush2.bf16.msra.mxu0 0
    %4905 = vmatprep.subr.bf16.mxu0 0
    %4906 = vmatpush2.bf16.msra.mxu0 0
    %4907 = vmatprep.mubr.bf16.mxu0 0
    %4908 = vmatmul.mubr.bf16.gmra.mxu0 %v4553
    %v4909 = vpop.f32.mrf.mxu0
    %v4910 = vadd.f32 0.0, %v4909
    %v4911 = vpop.f32.mrf.mxu0
    %v4912 = vadd.f32 0.0, %v4911
    %v4913 = vpop.f32.mrf.mxu0
    %v4914 = vpop.f32.mrf.mxu0
    %4915 = vdwg.mxu0
    %4916 = vmatprep.subr.bf16.mxu0 %v4806
    %4917 = vmatpush1.bf16.msra.mxu0 %v4805
    %4918 = vmatprep.subr.bf16.mxu0 %v4798
    %4919 = vmatpush1.bf16.msra.mxu0 %v4797
    %4920 = vmatprep.subr.bf16.mxu0 %v4790
    %4921 = vmatpush1.bf16.msra.mxu0 %v4789
    %4922 = vmatprep.subr.bf16.mxu0 %v4782
    %4923 = vmatpush1.bf16.msra.mxu0 %v4781
    %4924 = vmatprep.subr.bf16.mxu0 %v4774
    %4925 = vmatpush1.bf16.msra.mxu0 %v4773
    %4926 = vmatprep.subr.bf16.mxu0 %v4766
    %4927 = vmatpush1.bf16.msra.mxu0 %v4765
    %4928 = vmatprep.subr.bf16.mxu0 %v4758
    %4929 = vmatpush1.bf16.msra.mxu0 %v4757
    %4930 = vmatprep.subr.bf16.mxu0 %v4750
    %4931 = vmatpush1.bf16.msra.mxu0 %v4749
    %4932 = vmatprep.subr.bf16.mxu0 0
    %4933 = vmatpush2.bf16.msra.mxu0 0
    %4934 = vmatprep.subr.bf16.mxu0 0
    %4935 = vmatpush2.bf16.msra.mxu0 0
    %4936 = vmatprep.subr.bf16.mxu0 0
    %4937 = vmatpush2.bf16.msra.mxu0 0
    %4938 = vmatprep.subr.bf16.mxu0 0
    %4939 = vmatpush2.bf16.msra.mxu0 0
    %4940 = vmatprep.subr.bf16.mxu0 0
    %4941 = vmatpush2.bf16.msra.mxu0 0
    %4942 = vmatprep.subr.bf16.mxu0 0
    %4943 = vmatpush2.bf16.msra.mxu0 0
    %4944 = vmatprep.subr.bf16.mxu0 0
    %4945 = vmatpush2.bf16.msra.mxu0 0
    %4946 = vmatprep.subr.bf16.mxu0 0
    %4947 = vmatpush2.bf16.msra.mxu0 0
    %4948 = vmatprep.mubr.bf16.mxu0 0
    %4949 = vmatmul.mubr.bf16.gmra.mxu0 %v4553
    %v4950 = vpop.f32.mrf.mxu0
    %v4951 = vadd.f32 0.0, %v4950
    %v4952 = vpop.f32.mrf.mxu0
    %v4953 = vadd.f32 0.0, %v4952
    %v4954 = vpop.f32.mrf.mxu0
    %v4955 = vpop.f32.mrf.mxu0
    %4956 = vdwg.mxu0
    %4957 = vmatprep.subr.bf16.mxu0 %v4808
    %4958 = vmatpush1.bf16.msra.mxu0 %v4807
    %4959 = vmatprep.subr.bf16.mxu0 %v4800
    %4960 = vmatpush1.bf16.msra.mxu0 %v4799
    %4961 = vmatprep.subr.bf16.mxu0 %v4792
    %4962 = vmatpush1.bf16.msra.mxu0 %v4791
    %4963 = vmatprep.subr.bf16.mxu0 %v4784
    %4964 = vmatpush1.bf16.msra.mxu0 %v4783
    %4965 = vmatprep.subr.bf16.mxu0 %v4776
    %4966 = vmatpush1.bf16.msra.mxu0 %v4775
    %4967 = vmatprep.subr.bf16.mxu0 %v4768
    %4968 = vmatpush1.bf16.msra.mxu0 %v4767
    %4969 = vmatprep.subr.bf16.mxu0 %v4760
    %4970 = vmatpush1.bf16.msra.mxu0 %v4759
    %4971 = vmatprep.subr.bf16.mxu0 %v4752
    %4972 = vmatpush1.bf16.msra.mxu0 %v4751
    %4973 = vmatprep.subr.bf16.mxu0 0
    %4974 = vmatpush2.bf16.msra.mxu0 0
    %4975 = vmatprep.subr.bf16.mxu0 0
    %4976 = vmatpush2.bf16.msra.mxu0 0
    %4977 = vmatprep.subr.bf16.mxu0 0
    %4978 = vmatpush2.bf16.msra.mxu0 0
    %4979 = vmatprep.subr.bf16.mxu0 0
    %4980 = vmatpush2.bf16.msra.mxu0 0
    %4981 = vmatprep.subr.bf16.mxu0 0
    %4982 = vmatpush2.bf16.msra.mxu0 0
    %4983 = vmatprep.subr.bf16.mxu0 0
    %4984 = vmatpush2.bf16.msra.mxu0 0
    %4985 = vmatprep.subr.bf16.mxu0 0
    %4986 = vmatpush2.bf16.msra.mxu0 0
    %4987 = vmatprep.subr.bf16.mxu0 0
    %4988 = vmatpush2.bf16.msra.mxu0 0
    %4989 = vmatprep.mubr.bf16.mxu0 0
    %4990 = vmatmul.mubr.bf16.gmra.mxu0 %v4553
    %v4991 = vpop.f32.mrf.mxu0
    %v4992 = vadd.f32 0.0, %v4991
    %v4993 = vpop.f32.mrf.mxu0
    %v4994 = vadd.f32 0.0, %v4993
    %v4995 = vpop.f32.mrf.mxu0
    %v4996 = vpop.f32.mrf.mxu0
    %4997 = vdwg.mxu0
    %4998 = vmatprep.subr.bf16.mxu0 %v4810
    %4999 = vmatpush1.bf16.msra.mxu0 %v4809
    %5000 = vmatprep.subr.bf16.mxu0 %v4802
    %5001 = vmatpush1.bf16.msra.mxu0 %v4801
    %5002 = vmatprep.subr.bf16.mxu0 %v4794
    %5003 = vmatpush1.bf16.msra.mxu0 %v4793
    %5004 = vmatprep.subr.bf16.mxu0 %v4786
    %5005 = vmatpush1.bf16.msra.mxu0 %v4785
    %5006 = vmatprep.subr.bf16.mxu0 %v4778
    %5007 = vmatpush1.bf16.msra.mxu0 %v4777
    %5008 = vmatprep.subr.bf16.mxu0 %v4770
    %5009 = vmatpush1.bf16.msra.mxu0 %v4769
    %5010 = vmatprep.subr.bf16.mxu0 %v4762
    %5011 = vmatpush1.bf16.msra.mxu0 %v4761
    %5012 = vmatprep.subr.bf16.mxu0 %v4754
    %5013 = vmatpush1.bf16.msra.mxu0 %v4753
    %5014 = vmatprep.subr.bf16.mxu0 0
    %5015 = vmatpush2.bf16.msra.mxu0 0
    %5016 = vmatprep.subr.bf16.mxu0 0
    %5017 = vmatpush2.bf16.msra.mxu0 0
    %5018 = vmatprep.subr.bf16.mxu0 0
    %5019 = vmatpush2.bf16.msra.mxu0 0
    %5020 = vmatprep.subr.bf16.mxu0 0
    %5021 = vmatpush2.bf16.msra.mxu0 0
    %5022 = vmatprep.subr.bf16.mxu0 0
    %5023 = vmatpush2.bf16.msra.mxu0 0
    %5024 = vmatprep.subr.bf16.mxu0 0
    %5025 = vmatpush2.bf16.msra.mxu0 0
    %5026 = vmatprep.subr.bf16.mxu0 0
    %5027 = vmatpush2.bf16.msra.mxu0 0
    %5028 = vmatprep.subr.bf16.mxu0 0
    %5029 = vmatpush2.bf16.msra.mxu0 0
    %5030 = vmatprep.mubr.bf16.mxu0 0
    %5031 = vmatmul.mubr.bf16.gmra.mxu0 %v4553
    %v5032 = vpop.f32.mrf.mxu0
    %v5033 = vadd.f32 0.0, %v5032
    %v5034 = vpop.f32.mrf.mxu0
    %v5035 = vadd.f32 0.0, %v5034
    %v5036 = vpop.f32.mrf.mxu0
    %v5037 = vpop.f32.mrf.mxu0
    %5038 = vdwg.mxu0
    %v5047 = vcombine.low %v4910, %v4912
    %v5048 = vcombine.low %v4951, %v4953
    %v5049 = vcombine.low %v4992, %v4994
    %v5050 = vcombine.low %v5033, %v5035
    %v5052 = vunpack.c.l.s4 1966171168
    %v5053 = vunpack.c.0.s8 %v5052
    %v5054 = vlaneseq
    %v5055 = vshrl.u32 %v5054, 7
    %v5056 = vsub.s32 %v5053, %v5055
    %v5057 = vrot.slane %v5047, %v5056
    %v5059 = vunpack.c.l.s4 1966171168
    %v5060 = vunpack.c.0.s8 %v5059
    %v5061 = vlaneseq
    %v5062 = vshrl.u32 %v5061, 7
    %v5063 = vsub.s32 %v5060, %v5062
    %v5064 = vrot.slane %v5048, %v5063
    %v5066 = vunpack.c.l.s4 1966171168
    %v5067 = vunpack.c.0.s8 %v5066
    %v5068 = vlaneseq
    %v5069 = vshrl.u32 %v5068, 7
    %v5070 = vsub.s32 %v5067, %v5069
    %v5071 = vrot.slane %v5049, %v5070
    %v5073 = vunpack.c.l.s4 1966171168
    %v5074 = vunpack.c.0.s8 %v5073
    %v5075 = vlaneseq
    %v5076 = vshrl.u32 %v5075, 7
    %v5077 = vsub.s32 %v5074, %v5076
    %v5078 = vrot.slane %v5050, %v5077
    %v5079 = vcombine.low %v5057, %v5064
    %v5080 = vcombine.low %v5071, %v5078
    %v5082 = vunpack.c.l.s4 1966171168
    %v5083 = vunpack.c.0.s8 %v5082
    %v5084 = vlaneseq
    %v5085 = vshrl.u32 %v5084, 7
    %v5086 = vsub.s32 %v5083, %v5085
    %v5087 = vrot.slane %v5079, %v5086
    %v5089 = vunpack.c.l.s4 1966171168
    %v5090 = vunpack.c.0.s8 %v5089
    %v5091 = vlaneseq
    %v5092 = vshrl.u32 %v5091, 7
    %v5093 = vsub.s32 %v5090, %v5092
    %v5094 = vrot.slane %v5080, %v5093
    %v5095 = vcombine.low %v5087, %v5094
    %v5097 = vadd.f32 %v4487, %v5095
    %v5098 = vmax.f32 %v5097, 0.0
    %v5100 = vlaneseq
    %v5101 = vshrl.u32 %v5100, 7
    %v5102 = vsub.s32 0, %v5101
    %v5103 = vrot.slane %v5098, %v5102
    %v5104 = vlaneseq
    %v5105 = vshrl.u32 %v5104, 7
    %v5106 = vsub.s32 1, %v5105
    %v5107 = vrot.slane %v5098, %v5106
    %v5108 = vlaneseq
    %v5109 = vshrl.u32 %v5108, 7
    %v5110 = vsub.s32 2, %v5109
    %v5111 = vrot.slane %v5098, %v5110
    %v5112 = vlaneseq
    %v5113 = vshrl.u32 %v5112, 7
    %v5114 = vsub.s32 3, %v5113
    %v5115 = vrot.slane %v5098, %v5114
    %v5116 = vlaneseq
    %v5117 = vshrl.u32 %v5116, 7
    %v5118 = vsub.s32 4, %v5117
    %v5119 = vrot.slane %v5098, %v5118
    %v5120 = vlaneseq
    %v5121 = vshrl.u32 %v5120, 7
    %v5122 = vsub.s32 5, %v5121
    %v5123 = vrot.slane %v5098, %v5122
    %v5124 = vlaneseq
    %v5125 = vshrl.u32 %v5124, 7
    %v5126 = vsub.s32 6, %v5125
    %v5127 = vrot.slane %v5098, %v5126
    %v5128 = vlaneseq
    %v5129 = vshrl.u32 %v5128, 7
    %v5130 = vsub.s32 7, %v5129
    %v5131 = vrot.slane %v5098, %v5130
    %v5140 = vpack.c.bf16 %v5103, %v5103
    %v5141 = vpack.c.bf16 %v5107, %v5107
    %v5142 = vpack.c.bf16 %v5111, %v5111
    %v5143 = vpack.c.bf16 %v5115, %v5115
    %v5144 = vpack.c.bf16 %v5119, %v5119
    %v5145 = vpack.c.bf16 %v5123, %v5123
    %v5146 = vpack.c.bf16 %v5127, %v5127
    %v5147 = vpack.c.bf16 %v5131, %v5131
    %v5148 = vld [vmem:[#allocation9] sm:$0xf]
    %v5149 = vld [vmem:[#allocation9 + $0x4] sm:$0xf]
    %v5150 = vld [vmem:[#allocation9 + $0x8] sm:$0xf]
    %v5151 = vld [vmem:[#allocation9 + $0xc] sm:$0xf]
    %v5152 = vld [vmem:[#allocation9 + $0x10] sm:$0xf]
    %v5153 = vld [vmem:[#allocation9 + $0x14] sm:$0xf]
    %v5154 = vld [vmem:[#allocation9 + $0x18] sm:$0xf]
    %v5155 = vld [vmem:[#allocation9 + $0x1c] sm:$0xf]
    %v5156 = vld [vmem:[#allocation9 + $0x20] sm:$0xf]
    %v5157 = vld [vmem:[#allocation9 + $0x24] sm:$0xf]
    %v5158 = vld [vmem:[#allocation9 + $0x28] sm:$0xf]
    %v5159 = vld [vmem:[#allocation9 + $0x2c] sm:$0xf]
    %v5160 = vld [vmem:[#allocation9 + $0x30] sm:$0xf]
    %v5161 = vld [vmem:[#allocation9 + $0x34] sm:$0xf]
    %v5162 = vld [vmem:[#allocation9 + $0x38] sm:$0xf]
    %v5163 = vld [vmem:[#allocation9 + $0x3c] sm:$0xf]
    %v5164 = vld [vmem:[#allocation9 + $0x40] sm:$0xf]
    %v5165 = vld [vmem:[#allocation9 + $0x44] sm:$0xf]
    %v5166 = vld [vmem:[#allocation9 + $0x48] sm:$0xf]
    %v5167 = vld [vmem:[#allocation9 + $0x4c] sm:$0xf]
    %v5168 = vld [vmem:[#allocation9 + $0x50] sm:$0xf]
    %v5169 = vld [vmem:[#allocation9 + $0x54] sm:$0xf]
    %v5170 = vld [vmem:[#allocation9 + $0x58] sm:$0xf]
    %v5171 = vld [vmem:[#allocation9 + $0x5c] sm:$0xf]
    %v5172 = vld [vmem:[#allocation9 + $0x60] sm:$0xf]
    %v5173 = vld [vmem:[#allocation9 + $0x64] sm:$0xf]
    %v5174 = vld [vmem:[#allocation9 + $0x68] sm:$0xf]
    %v5175 = vld [vmem:[#allocation9 + $0x6c] sm:$0xf]
    %v5176 = vld [vmem:[#allocation9 + $0x70] sm:$0xf]
    %v5177 = vld [vmem:[#allocation9 + $0x74] sm:$0xf]
    %v5178 = vld [vmem:[#allocation9 + $0x78] sm:$0xf]
    %v5179 = vld [vmem:[#allocation9 + $0x7c] sm:$0xf]
    %v5180 = vld [vmem:[#allocation9 + $0x80] sm:$0xf]
    %v5181 = vld [vmem:[#allocation9 + $0x84] sm:$0xf]
    %v5182 = vld [vmem:[#allocation9 + $0x88] sm:$0xf]
    %v5183 = vld [vmem:[#allocation9 + $0x8c] sm:$0xf]
    %v5184 = vld [vmem:[#allocation9 + $0x90] sm:$0xf]
    %v5185 = vld [vmem:[#allocation9 + $0x94] sm:$0xf]
    %v5186 = vld [vmem:[#allocation9 + $0x98] sm:$0xf]
    %v5187 = vld [vmem:[#allocation9 + $0x9c] sm:$0xf]
    %v5188 = vld [vmem:[#allocation9 + $0xa0] sm:$0xf]
    %v5189 = vld [vmem:[#allocation9 + $0xa4] sm:$0xf]
    %v5190 = vld [vmem:[#allocation9 + $0xa8] sm:$0xf]
    %v5191 = vld [vmem:[#allocation9 + $0xac] sm:$0xf]
    %v5192 = vld [vmem:[#allocation9 + $0xb0] sm:$0xf]
    %v5193 = vld [vmem:[#allocation9 + $0xb4] sm:$0xf]
    %v5194 = vld [vmem:[#allocation9 + $0xb8] sm:$0xf]
    %v5195 = vld [vmem:[#allocation9 + $0xbc] sm:$0xf]
    %v5196 = vld [vmem:[#allocation9 + $0xc0] sm:$0xf]
    %v5197 = vld [vmem:[#allocation9 + $0xc4] sm:$0xf]
    %v5198 = vld [vmem:[#allocation9 + $0xc8] sm:$0xf]
    %v5199 = vld [vmem:[#allocation9 + $0xcc] sm:$0xf]
    %v5200 = vld [vmem:[#allocation9 + $0xd0] sm:$0xf]
    %v5201 = vld [vmem:[#allocation9 + $0xd4] sm:$0xf]
    %v5202 = vld [vmem:[#allocation9 + $0xd8] sm:$0xf]
    %v5203 = vld [vmem:[#allocation9 + $0xdc] sm:$0xf]
    %v5204 = vld [vmem:[#allocation9 + $0xe0] sm:$0xf]
    %v5205 = vld [vmem:[#allocation9 + $0xe4] sm:$0xf]
    %v5206 = vld [vmem:[#allocation9 + $0xe8] sm:$0xf]
    %v5207 = vld [vmem:[#allocation9 + $0xec] sm:$0xf]
    %v5208 = vld [vmem:[#allocation9 + $0xf0] sm:$0xf]
    %v5209 = vld [vmem:[#allocation9 + $0xf4] sm:$0xf]
    %v5210 = vld [vmem:[#allocation9 + $0xf8] sm:$0xf]
    %v5211 = vld [vmem:[#allocation9 + $0xfc] sm:$0xf]
    %v5212 = vld [vmem:[#allocation9 + $0x100] sm:$0xf]
    %v5213 = vld [vmem:[#allocation9 + $0x104] sm:$0xf]
    %v5214 = vld [vmem:[#allocation9 + $0x108] sm:$0xf]
    %v5215 = vld [vmem:[#allocation9 + $0x10c] sm:$0xf]
    %v5216 = vld [vmem:[#allocation9 + $0x110] sm:$0xf]
    %v5217 = vld [vmem:[#allocation9 + $0x114] sm:$0xf]
    %v5218 = vld [vmem:[#allocation9 + $0x118] sm:$0xf]
    %v5219 = vld [vmem:[#allocation9 + $0x11c] sm:$0xf]
    %v5220 = vld [vmem:[#allocation9 + $0x120] sm:$0xf]
    %v5221 = vld [vmem:[#allocation9 + $0x124] sm:$0xf]
    %v5222 = vld [vmem:[#allocation9 + $0x128] sm:$0xf]
    %v5223 = vld [vmem:[#allocation9 + $0x12c] sm:$0xf]
    %v5224 = vld [vmem:[#allocation9 + $0x130] sm:$0xf]
    %v5225 = vld [vmem:[#allocation9 + $0x134] sm:$0xf]
    %v5226 = vld [vmem:[#allocation9 + $0x138] sm:$0xf]
    %v5227 = vld [vmem:[#allocation9 + $0x13c] sm:$0xf]
    %v5228 = vld [vmem:[#allocation9 + $0x140] sm:$0xf]
    %v5229 = vld [vmem:[#allocation9 + $0x144] sm:$0xf]
    %v5230 = vld [vmem:[#allocation9 + $0x148] sm:$0xf]
    %v5231 = vld [vmem:[#allocation9 + $0x14c] sm:$0xf]
    %v5232 = vld [vmem:[#allocation9 + $0x150] sm:$0xf]
    %v5233 = vld [vmem:[#allocation9 + $0x154] sm:$0xf]
    %v5234 = vld [vmem:[#allocation9 + $0x158] sm:$0xf]
    %v5235 = vld [vmem:[#allocation9 + $0x15c] sm:$0xf]
    %v5236 = vld [vmem:[#allocation9 + $0x160] sm:$0xf]
    %v5237 = vld [vmem:[#allocation9 + $0x164] sm:$0xf]
    %v5238 = vld [vmem:[#allocation9 + $0x168] sm:$0xf]
    %v5239 = vld [vmem:[#allocation9 + $0x16c] sm:$0xf]
    %v5240 = vld [vmem:[#allocation9 + $0x170] sm:$0xf]
    %v5241 = vld [vmem:[#allocation9 + $0x174] sm:$0xf]
    %v5242 = vld [vmem:[#allocation9 + $0x178] sm:$0xf]
    %v5243 = vld [vmem:[#allocation9 + $0x17c] sm:$0xf]
    %v5244 = vld [vmem:[#allocation9 + $0x180] sm:$0xf]
    %v5245 = vld [vmem:[#allocation9 + $0x184] sm:$0xf]
    %v5246 = vld [vmem:[#allocation9 + $0x188] sm:$0xf]
    %v5247 = vld [vmem:[#allocation9 + $0x18c] sm:$0xf]
    %v5248 = vld [vmem:[#allocation9 + $0x190] sm:$0xf]
    %v5249 = vld [vmem:[#allocation9 + $0x194] sm:$0xf]
    %v5250 = vld [vmem:[#allocation9 + $0x198] sm:$0xf]
    %v5251 = vld [vmem:[#allocation9 + $0x19c] sm:$0xf]
    %v5252 = vld [vmem:[#allocation9 + $0x1a0] sm:$0xf]
    %v5253 = vld [vmem:[#allocation9 + $0x1a4] sm:$0xf]
    %v5254 = vld [vmem:[#allocation9 + $0x1a8] sm:$0xf]
    %v5255 = vld [vmem:[#allocation9 + $0x1ac] sm:$0xf]
    %v5256 = vld [vmem:[#allocation9 + $0x1b0] sm:$0xf]
    %v5257 = vld [vmem:[#allocation9 + $0x1b4] sm:$0xf]
    %v5258 = vld [vmem:[#allocation9 + $0x1b8] sm:$0xf]
    %v5259 = vld [vmem:[#allocation9 + $0x1bc] sm:$0xf]
    %v5260 = vld [vmem:[#allocation9 + $0x1c0] sm:$0xf]
    %v5261 = vld [vmem:[#allocation9 + $0x1c4] sm:$0xf]
    %v5262 = vld [vmem:[#allocation9 + $0x1c8] sm:$0xf]
    %v5263 = vld [vmem:[#allocation9 + $0x1cc] sm:$0xf]
    %v5264 = vld [vmem:[#allocation9 + $0x1d0] sm:$0xf]
    %v5265 = vld [vmem:[#allocation9 + $0x1d4] sm:$0xf]
    %v5266 = vld [vmem:[#allocation9 + $0x1d8] sm:$0xf]
    %v5267 = vld [vmem:[#allocation9 + $0x1dc] sm:$0xf]
    %v5268 = vld [vmem:[#allocation9 + $0x1e0] sm:$0xf]
    %v5269 = vld [vmem:[#allocation9 + $0x1e4] sm:$0xf]
    %v5270 = vld [vmem:[#allocation9 + $0x1e8] sm:$0xf]
    %v5271 = vld [vmem:[#allocation9 + $0x1ec] sm:$0xf]
    %v5272 = vld [vmem:[#allocation9 + $0x1f0] sm:$0xf]
    %v5273 = vld [vmem:[#allocation9 + $0x1f4] sm:$0xf]
    %v5274 = vld [vmem:[#allocation9 + $0x1f8] sm:$0xf]
    %v5275 = vld [vmem:[#allocation9 + $0x1fc] sm:$0xf]
    %v5276 = vld [vmem:[#allocation10] sm:$0x1]
    %v5405 = vunpack.c.l.b16 %v5148
    %v5406 = vunpack.c.l.b16 %v5149
    %v5407 = vunpack.c.l.b16 %v5150
    %v5408 = vunpack.c.l.b16 %v5151
    %v5409 = vunpack.c.l.b16 %v5152
    %v5410 = vunpack.c.l.b16 %v5153
    %v5411 = vunpack.c.l.b16 %v5154
    %v5412 = vunpack.c.l.b16 %v5155
    %v5413 = vunpack.c.l.b16 %v5156
    %v5414 = vunpack.c.l.b16 %v5157
    %v5415 = vunpack.c.l.b16 %v5158
    %v5416 = vunpack.c.l.b16 %v5159
    %v5417 = vunpack.c.l.b16 %v5160
    %v5418 = vunpack.c.l.b16 %v5161
    %v5419 = vunpack.c.l.b16 %v5162
    %v5420 = vunpack.c.l.b16 %v5163
    %v5421 = vunpack.c.l.b16 %v5164
    %v5422 = vunpack.c.l.b16 %v5165
    %v5423 = vunpack.c.l.b16 %v5166
    %v5424 = vunpack.c.l.b16 %v5167
    %v5425 = vunpack.c.l.b16 %v5168
    %v5426 = vunpack.c.l.b16 %v5169
    %v5427 = vunpack.c.l.b16 %v5170
    %v5428 = vunpack.c.l.b16 %v5171
    %v5429 = vunpack.c.l.b16 %v5172
    %v5430 = vunpack.c.l.b16 %v5173
    %v5431 = vunpack.c.l.b16 %v5174
    %v5432 = vunpack.c.l.b16 %v5175
    %v5433 = vunpack.c.l.b16 %v5176
    %v5434 = vunpack.c.l.b16 %v5177
    %v5435 = vunpack.c.l.b16 %v5178
    %v5436 = vunpack.c.l.b16 %v5179
    %v5437 = vunpack.c.l.b16 %v5180
    %v5438 = vunpack.c.l.b16 %v5181
    %v5439 = vunpack.c.l.b16 %v5182
    %v5440 = vunpack.c.l.b16 %v5183
    %v5441 = vunpack.c.l.b16 %v5184
    %v5442 = vunpack.c.l.b16 %v5185
    %v5443 = vunpack.c.l.b16 %v5186
    %v5444 = vunpack.c.l.b16 %v5187
    %v5445 = vunpack.c.l.b16 %v5188
    %v5446 = vunpack.c.l.b16 %v5189
    %v5447 = vunpack.c.l.b16 %v5190
    %v5448 = vunpack.c.l.b16 %v5191
    %v5449 = vunpack.c.l.b16 %v5192
    %v5450 = vunpack.c.l.b16 %v5193
    %v5451 = vunpack.c.l.b16 %v5194
    %v5452 = vunpack.c.l.b16 %v5195
    %v5453 = vunpack.c.l.b16 %v5196
    %v5454 = vunpack.c.l.b16 %v5197
    %v5455 = vunpack.c.l.b16 %v5198
    %v5456 = vunpack.c.l.b16 %v5199
    %v5457 = vunpack.c.l.b16 %v5200
    %v5458 = vunpack.c.l.b16 %v5201
    %v5459 = vunpack.c.l.b16 %v5202
    %v5460 = vunpack.c.l.b16 %v5203
    %v5461 = vunpack.c.l.b16 %v5204
    %v5462 = vunpack.c.l.b16 %v5205
    %v5463 = vunpack.c.l.b16 %v5206
    %v5464 = vunpack.c.l.b16 %v5207
    %v5465 = vunpack.c.l.b16 %v5208
    %v5466 = vunpack.c.l.b16 %v5209
    %v5467 = vunpack.c.l.b16 %v5210
    %v5468 = vunpack.c.l.b16 %v5211
    %v5469 = vunpack.c.l.b16 %v5212
    %v5470 = vunpack.c.l.b16 %v5213
    %v5471 = vunpack.c.l.b16 %v5214
    %v5472 = vunpack.c.l.b16 %v5215
    %v5473 = vunpack.c.l.b16 %v5216
    %v5474 = vunpack.c.l.b16 %v5217
    %v5475 = vunpack.c.l.b16 %v5218
    %v5476 = vunpack.c.l.b16 %v5219
    %v5477 = vunpack.c.l.b16 %v5220
    %v5478 = vunpack.c.l.b16 %v5221
    %v5479 = vunpack.c.l.b16 %v5222
    %v5480 = vunpack.c.l.b16 %v5223
    %v5481 = vunpack.c.l.b16 %v5224
    %v5482 = vunpack.c.l.b16 %v5225
    %v5483 = vunpack.c.l.b16 %v5226
    %v5484 = vunpack.c.l.b16 %v5227
    %v5485 = vunpack.c.l.b16 %v5228
    %v5486 = vunpack.c.l.b16 %v5229
    %v5487 = vunpack.c.l.b16 %v5230
    %v5488 = vunpack.c.l.b16 %v5231
    %v5489 = vunpack.c.l.b16 %v5232
    %v5490 = vunpack.c.l.b16 %v5233
    %v5491 = vunpack.c.l.b16 %v5234
    %v5492 = vunpack.c.l.b16 %v5235
    %v5493 = vunpack.c.l.b16 %v5236
    %v5494 = vunpack.c.l.b16 %v5237
    %v5495 = vunpack.c.l.b16 %v5238
    %v5496 = vunpack.c.l.b16 %v5239
    %v5497 = vunpack.c.l.b16 %v5240
    %v5498 = vunpack.c.l.b16 %v5241
    %v5499 = vunpack.c.l.b16 %v5242
    %v5500 = vunpack.c.l.b16 %v5243
    %v5501 = vunpack.c.l.b16 %v5244
    %v5502 = vunpack.c.l.b16 %v5245
    %v5503 = vunpack.c.l.b16 %v5246
    %v5504 = vunpack.c.l.b16 %v5247
    %v5505 = vunpack.c.l.b16 %v5248
    %v5506 = vunpack.c.l.b16 %v5249
    %v5507 = vunpack.c.l.b16 %v5250
    %v5508 = vunpack.c.l.b16 %v5251
    %v5509 = vunpack.c.l.b16 %v5252
    %v5510 = vunpack.c.l.b16 %v5253
    %v5511 = vunpack.c.l.b16 %v5254
    %v5512 = vunpack.c.l.b16 %v5255
    %v5513 = vunpack.c.l.b16 %v5256
    %v5514 = vunpack.c.l.b16 %v5257
    %v5515 = vunpack.c.l.b16 %v5258
    %v5516 = vunpack.c.l.b16 %v5259
    %v5517 = vunpack.c.l.b16 %v5260
    %v5518 = vunpack.c.l.b16 %v5261
    %v5519 = vunpack.c.l.b16 %v5262
    %v5520 = vunpack.c.l.b16 %v5263
    %v5521 = vunpack.c.l.b16 %v5264
    %v5522 = vunpack.c.l.b16 %v5265
    %v5523 = vunpack.c.l.b16 %v5266
    %v5524 = vunpack.c.l.b16 %v5267
    %v5525 = vunpack.c.l.b16 %v5268
    %v5526 = vunpack.c.l.b16 %v5269
    %v5527 = vunpack.c.l.b16 %v5270
    %v5528 = vunpack.c.l.b16 %v5271
    %v5529 = vunpack.c.l.b16 %v5272
    %v5530 = vunpack.c.l.b16 %v5273
    %v5531 = vunpack.c.l.b16 %v5274
    %v5532 = vunpack.c.l.b16 %v5275
    %v5533 = vpack.c.b16 %v5406, %v5405
    %v5534 = vpack.c.b16 %v5408, %v5407
    %v5535 = vpack.c.b16 %v5410, %v5409
    %v5536 = vpack.c.b16 %v5412, %v5411
    %v5537 = vpack.c.b16 %v5414, %v5413
    %v5538 = vpack.c.b16 %v5416, %v5415
    %v5539 = vpack.c.b16 %v5418, %v5417
    %v5540 = vpack.c.b16 %v5420, %v5419
    %v5541 = vpack.c.b16 %v5422, %v5421
    %v5542 = vpack.c.b16 %v5424, %v5423
    %v5543 = vpack.c.b16 %v5426, %v5425
    %v5544 = vpack.c.b16 %v5428, %v5427
    %v5545 = vpack.c.b16 %v5430, %v5429
    %v5546 = vpack.c.b16 %v5432, %v5431
    %v5547 = vpack.c.b16 %v5434, %v5433
    %v5548 = vpack.c.b16 %v5436, %v5435
    %v5549 = vpack.c.b16 %v5438, %v5437
    %v5550 = vpack.c.b16 %v5440, %v5439
    %v5551 = vpack.c.b16 %v5442, %v5441
    %v5552 = vpack.c.b16 %v5444, %v5443
    %v5553 = vpack.c.b16 %v5446, %v5445
    %v5554 = vpack.c.b16 %v5448, %v5447
    %v5555 = vpack.c.b16 %v5450, %v5449
    %v5556 = vpack.c.b16 %v5452, %v5451
    %v5557 = vpack.c.b16 %v5454, %v5453
    %v5558 = vpack.c.b16 %v5456, %v5455
    %v5559 = vpack.c.b16 %v5458, %v5457
    %v5560 = vpack.c.b16 %v5460, %v5459
    %v5561 = vpack.c.b16 %v5462, %v5461
    %v5562 = vpack.c.b16 %v5464, %v5463
    %v5563 = vpack.c.b16 %v5466, %v5465
    %v5564 = vpack.c.b16 %v5468, %v5467
    %v5565 = vpack.c.b16 %v5470, %v5469
    %v5566 = vpack.c.b16 %v5472, %v5471
    %v5567 = vpack.c.b16 %v5474, %v5473
    %v5568 = vpack.c.b16 %v5476, %v5475
    %v5569 = vpack.c.b16 %v5478, %v5477
    %v5570 = vpack.c.b16 %v5480, %v5479
    %v5571 = vpack.c.b16 %v5482, %v5481
    %v5572 = vpack.c.b16 %v5484, %v5483
    %v5573 = vpack.c.b16 %v5486, %v5485
    %v5574 = vpack.c.b16 %v5488, %v5487
    %v5575 = vpack.c.b16 %v5490, %v5489
    %v5576 = vpack.c.b16 %v5492, %v5491
    %v5577 = vpack.c.b16 %v5494, %v5493
    %v5578 = vpack.c.b16 %v5496, %v5495
    %v5579 = vpack.c.b16 %v5498, %v5497
    %v5580 = vpack.c.b16 %v5500, %v5499
    %v5581 = vpack.c.b16 %v5502, %v5501
    %v5582 = vpack.c.b16 %v5504, %v5503
    %v5583 = vpack.c.b16 %v5506, %v5505
    %v5584 = vpack.c.b16 %v5508, %v5507
    %v5585 = vpack.c.b16 %v5510, %v5509
    %v5586 = vpack.c.b16 %v5512, %v5511
    %v5587 = vpack.c.b16 %v5514, %v5513
    %v5588 = vpack.c.b16 %v5516, %v5515
    %v5589 = vpack.c.b16 %v5518, %v5517
    %v5590 = vpack.c.b16 %v5520, %v5519
    %v5591 = vpack.c.b16 %v5522, %v5521
    %v5592 = vpack.c.b16 %v5524, %v5523
    %v5593 = vpack.c.b16 %v5526, %v5525
    %v5594 = vpack.c.b16 %v5528, %v5527
    %v5595 = vpack.c.b16 %v5530, %v5529
    %v5596 = vpack.c.b16 %v5532, %v5531
    %5661 = vmatprep.subr.bf16.mxu0 0
    %5662 = vmatpush1.bf16.msra.mxu0 %v5540
    %5663 = vmatprep.subr.bf16.mxu0 0
    %5664 = vmatpush1.bf16.msra.mxu0 %v5539
    %5665 = vmatprep.subr.bf16.mxu0 0
    %5666 = vmatpush1.bf16.msra.mxu0 %v5538
    %5667 = vmatprep.subr.bf16.mxu0 0
    %5668 = vmatpush1.bf16.msra.mxu0 %v5537
    %5669 = vmatprep.subr.bf16.mxu0 0
    %5670 = vmatpush1.bf16.msra.mxu0 %v5536
    %5671 = vmatprep.subr.bf16.mxu0 0
    %5672 = vmatpush1.bf16.msra.mxu0 %v5535
    %5673 = vmatprep.subr.bf16.mxu0 0
    %5674 = vmatpush1.bf16.msra.mxu0 %v5534
    %5675 = vmatprep.subr.bf16.mxu0 0
    %5676 = vmatpush1.bf16.msra.mxu0 %v5533
    %5677 = vmatprep.subr.bf16.mxu0 0
    %5678 = vmatpush2.bf16.msra.mxu0 %v5548
    %5679 = vmatprep.subr.bf16.mxu0 0
    %5680 = vmatpush2.bf16.msra.mxu0 %v5547
    %5681 = vmatprep.subr.bf16.mxu0 0
    %5682 = vmatpush2.bf16.msra.mxu0 %v5546
    %5683 = vmatprep.subr.bf16.mxu0 0
    %5684 = vmatpush2.bf16.msra.mxu0 %v5545
    %5685 = vmatprep.subr.bf16.mxu0 0
    %5686 = vmatpush2.bf16.msra.mxu0 %v5544
    %5687 = vmatprep.subr.bf16.mxu0 0
    %5688 = vmatpush2.bf16.msra.mxu0 %v5543
    %5689 = vmatprep.subr.bf16.mxu0 0
    %5690 = vmatpush2.bf16.msra.mxu0 %v5542
    %5691 = vmatprep.subr.bf16.mxu0 0
    %5692 = vmatpush2.bf16.msra.mxu0 %v5541
    %5693 = vmatprep.mubr.bf16.mxu0 %v5141
    %5694 = vmatmul.mubr.bf16.gmra.mxu0 %v5140
    %v5695 = vpop.f32.mrf.mxu0
    %v5696 = vadd.f32 %v5276, %v5695
    %v5697 = vpop.f32.mrf.mxu0
    %v5698 = vpop.f32.mrf.mxu0
    %v5699 = vpop.f32.mrf.mxu0
    %5700 = vdwg.mxu0
    %5701 = vmatprep.subr.bf16.mxu0 0
    %5702 = vmatpush1.bf16.msra.mxu0 %v5556
    %5703 = vmatprep.subr.bf16.mxu0 0
    %5704 = vmatpush1.bf16.msra.mxu0 %v5555
    %5705 = vmatprep.subr.bf16.mxu0 0
    %5706 = vmatpush1.bf16.msra.mxu0 %v5554
    %5707 = vmatprep.subr.bf16.mxu0 0
    %5708 = vmatpush1.bf16.msra.mxu0 %v5553
    %5709 = vmatprep.subr.bf16.mxu0 0
    %5710 = vmatpush1.bf16.msra.mxu0 %v5552
    %5711 = vmatprep.subr.bf16.mxu0 0
    %5712 = vmatpush1.bf16.msra.mxu0 %v5551
    %5713 = vmatprep.subr.bf16.mxu0 0
    %5714 = vmatpush1.bf16.msra.mxu0 %v5550
    %5715 = vmatprep.subr.bf16.mxu0 0
    %5716 = vmatpush1.bf16.msra.mxu0 %v5549
    %5717 = vmatprep.subr.bf16.mxu0 0
    %5718 = vmatpush2.bf16.msra.mxu0 %v5564
    %5719 = vmatprep.subr.bf16.mxu0 0
    %5720 = vmatpush2.bf16.msra.mxu0 %v5563
    %5721 = vmatprep.subr.bf16.mxu0 0
    %5722 = vmatpush2.bf16.msra.mxu0 %v5562
    %5723 = vmatprep.subr.bf16.mxu0 0
    %5724 = vmatpush2.bf16.msra.mxu0 %v5561
    %5725 = vmatprep.subr.bf16.mxu0 0
    %5726 = vmatpush2.bf16.msra.mxu0 %v5560
    %5727 = vmatprep.subr.bf16.mxu0 0
    %5728 = vmatpush2.bf16.msra.mxu0 %v5559
    %5729 = vmatprep.subr.bf16.mxu0 0
    %5730 = vmatpush2.bf16.msra.mxu0 %v5558
    %5731 = vmatprep.subr.bf16.mxu0 0
    %5732 = vmatpush2.bf16.msra.mxu0 %v5557
    %5733 = vmatprep.mubr.bf16.mxu0 %v5143
    %5734 = vmatmul.mubr.bf16.gmra.mxu0 %v5142
    %v5735 = vpop.f32.mrf.mxu0
    %v5736 = vadd.f32 %v5696, %v5735
    %v5737 = vpop.f32.mrf.mxu0
    %v5738 = vpop.f32.mrf.mxu0
    %v5739 = vpop.f32.mrf.mxu0
    %5740 = vdwg.mxu0
    %5741 = vmatprep.subr.bf16.mxu0 0
    %5742 = vmatpush1.bf16.msra.mxu0 %v5572
    %5743 = vmatprep.subr.bf16.mxu0 0
    %5744 = vmatpush1.bf16.msra.mxu0 %v5571
    %5745 = vmatprep.subr.bf16.mxu0 0
    %5746 = vmatpush1.bf16.msra.mxu0 %v5570
    %5747 = vmatprep.subr.bf16.mxu0 0
    %5748 = vmatpush1.bf16.msra.mxu0 %v5569
    %5749 = vmatprep.subr.bf16.mxu0 0
    %5750 = vmatpush1.bf16.msra.mxu0 %v5568
    %5751 = vmatprep.subr.bf16.mxu0 0
    %5752 = vmatpush1.bf16.msra.mxu0 %v5567
    %5753 = vmatprep.subr.bf16.mxu0 0
    %5754 = vmatpush1.bf16.msra.mxu0 %v5566
    %5755 = vmatprep.subr.bf16.mxu0 0
    %5756 = vmatpush1.bf16.msra.mxu0 %v5565
    %5757 = vmatprep.subr.bf16.mxu0 0
    %5758 = vmatpush2.bf16.msra.mxu0 %v5580
    %5759 = vmatprep.subr.bf16.mxu0 0
    %5760 = vmatpush2.bf16.msra.mxu0 %v5579
    %5761 = vmatprep.subr.bf16.mxu0 0
    %5762 = vmatpush2.bf16.msra.mxu0 %v5578
    %5763 = vmatprep.subr.bf16.mxu0 0
    %5764 = vmatpush2.bf16.msra.mxu0 %v5577
    %5765 = vmatprep.subr.bf16.mxu0 0
    %5766 = vmatpush2.bf16.msra.mxu0 %v5576
    %5767 = vmatprep.subr.bf16.mxu0 0
    %5768 = vmatpush2.bf16.msra.mxu0 %v5575
    %5769 = vmatprep.subr.bf16.mxu0 0
    %5770 = vmatpush2.bf16.msra.mxu0 %v5574
    %5771 = vmatprep.subr.bf16.mxu0 0
    %5772 = vmatpush2.bf16.msra.mxu0 %v5573
    %5773 = vmatprep.mubr.bf16.mxu0 %v5145
    %5774 = vmatmul.mubr.bf16.gmra.mxu0 %v5144
    %v5775 = vpop.f32.mrf.mxu0
    %v5776 = vadd.f32 %v5736, %v5775
    %v5777 = vpop.f32.mrf.mxu0
    %v5778 = vpop.f32.mrf.mxu0
    %v5779 = vpop.f32.mrf.mxu0
    %5780 = vdwg.mxu0
    %5781 = vmatprep.subr.bf16.mxu0 0
    %5782 = vmatpush1.bf16.msra.mxu0 %v5588
    %5783 = vmatprep.subr.bf16.mxu0 0
    %5784 = vmatpush1.bf16.msra.mxu0 %v5587
    %5785 = vmatprep.subr.bf16.mxu0 0
    %5786 = vmatpush1.bf16.msra.mxu0 %v5586
    %5787 = vmatprep.subr.bf16.mxu0 0
    %5788 = vmatpush1.bf16.msra.mxu0 %v5585
    %5789 = vmatprep.subr.bf16.mxu0 0
    %5790 = vmatpush1.bf16.msra.mxu0 %v5584
    %5791 = vmatprep.subr.bf16.mxu0 0
    %5792 = vmatpush1.bf16.msra.mxu0 %v5583
    %5793 = vmatprep.subr.bf16.mxu0 0
    %5794 = vmatpush1.bf16.msra.mxu0 %v5582
    %5795 = vmatprep.subr.bf16.mxu0 0
    %5796 = vmatpush1.bf16.msra.mxu0 %v5581
    %5797 = vmatprep.subr.bf16.mxu0 0
    %5798 = vmatpush2.bf16.msra.mxu0 %v5596
    %5799 = vmatprep.subr.bf16.mxu0 0
    %5800 = vmatpush2.bf16.msra.mxu0 %v5595
    %5801 = vmatprep.subr.bf16.mxu0 0
    %5802 = vmatpush2.bf16.msra.mxu0 %v5594
    %5803 = vmatprep.subr.bf16.mxu0 0
    %5804 = vmatpush2.bf16.msra.mxu0 %v5593
    %5805 = vmatprep.subr.bf16.mxu0 0
    %5806 = vmatpush2.bf16.msra.mxu0 %v5592
    %5807 = vmatprep.subr.bf16.mxu0 0
    %5808 = vmatpush2.bf16.msra.mxu0 %v5591
    %5809 = vmatprep.subr.bf16.mxu0 0
    %5810 = vmatpush2.bf16.msra.mxu0 %v5590
    %5811 = vmatprep.subr.bf16.mxu0 0
    %5812 = vmatpush2.bf16.msra.mxu0 %v5589
    %5813 = vmatprep.mubr.bf16.mxu0 %v5147
    %5814 = vmatmul.mubr.bf16.gmra.mxu0 %v5146
    %v5815 = vpop.f32.mrf.mxu0
    %v5816 = vadd.f32 %v5776, %v5815
    %v5817 = vpop.f32.mrf.mxu0
    %v5818 = vpop.f32.mrf.mxu0
    %v5819 = vpop.f32.mrf.mxu0
    %5820 = vdwg.mxu0
    %v5821 = vmax.f32 %v5816, 0.0
    %v5822 = vpack.c.bf16 %v5821, %v5821
    %v5823 = vld [vmem:[#allocation12] sm:$0xf]
    %v5824 = vld [vmem:[#allocation12 + $0x4] sm:$0xf]
    %v5825 = vld [vmem:[#allocation12 + $0x8] sm:$0xf]
    %v5826 = vld [vmem:[#allocation12 + $0xc] sm:$0xf]
    %v5827 = vld [vmem:[#allocation12 + $0x10] sm:$0xf]
    %v5828 = vld [vmem:[#allocation12 + $0x14] sm:$0xf]
    %v5829 = vld [vmem:[#allocation12 + $0x18] sm:$0xf]
    %v5830 = vld [vmem:[#allocation12 + $0x1c] sm:$0xf]
    %v5831 = vld [vmem:[#allocation12 + $0x20] sm:$0xf]
    %v5832 = vld [vmem:[#allocation12 + $0x24] sm:$0xf]
    %v5833 = vld [vmem:[#allocation12 + $0x28] sm:$0xf]
    %v5834 = vld [vmem:[#allocation12 + $0x2c] sm:$0xf]
    %v5835 = vld [vmem:[#allocation12 + $0x30] sm:$0xf]
    %v5836 = vld [vmem:[#allocation12 + $0x34] sm:$0xf]
    %v5837 = vld [vmem:[#allocation12 + $0x38] sm:$0xf]
    %v5838 = vld [vmem:[#allocation12 + $0x3c] sm:$0xf]
    %v5839 = vld [vmem:[#allocation13] sm:$0x1]
    %v5856 = vunpack.c.l.b16 %v5823
    %v5857 = vunpack.c.l.b16 %v5824
    %v5858 = vunpack.c.l.b16 %v5825
    %v5859 = vunpack.c.l.b16 %v5826
    %v5860 = vunpack.c.l.b16 %v5827
    %v5861 = vunpack.c.l.b16 %v5828
    %v5862 = vunpack.c.l.b16 %v5829
    %v5863 = vunpack.c.l.b16 %v5830
    %v5864 = vunpack.c.l.b16 %v5831
    %v5865 = vunpack.c.l.b16 %v5832
    %v5866 = vunpack.c.l.b16 %v5833
    %v5867 = vunpack.c.l.b16 %v5834
    %v5868 = vunpack.c.l.b16 %v5835
    %v5869 = vunpack.c.l.b16 %v5836
    %v5870 = vunpack.c.l.b16 %v5837
    %v5871 = vunpack.c.l.b16 %v5838
    %v5872 = vpack.c.b16 %v5857, %v5856
    %v5873 = vpack.c.b16 %v5859, %v5858
    %v5874 = vpack.c.b16 %v5861, %v5860
    %v5875 = vpack.c.b16 %v5863, %v5862
    %v5876 = vpack.c.b16 %v5865, %v5864
    %v5877 = vpack.c.b16 %v5867, %v5866
    %v5878 = vpack.c.b16 %v5869, %v5868
    %v5879 = vpack.c.b16 %v5871, %v5870
    %5888 = vmatprep.subr.bf16.mxu0 0
    %5889 = vmatpush1.bf16.msra.mxu0 %v5879
    %5890 = vmatprep.subr.bf16.mxu0 0
    %5891 = vmatpush1.bf16.msra.mxu0 %v5878
    %5892 = vmatprep.subr.bf16.mxu0 0
    %5893 = vmatpush1.bf16.msra.mxu0 %v5877
    %5894 = vmatprep.subr.bf16.mxu0 0
    %5895 = vmatpush1.bf16.msra.mxu0 %v5876
    %5896 = vmatprep.subr.bf16.mxu0 0
    %5897 = vmatpush1.bf16.msra.mxu0 %v5875
    %5898 = vmatprep.subr.bf16.mxu0 0
    %5899 = vmatpush1.bf16.msra.mxu0 %v5874
    %5900 = vmatprep.subr.bf16.mxu0 0
    %5901 = vmatpush1.bf16.msra.mxu0 %v5873
    %5902 = vmatprep.subr.bf16.mxu0 0
    %5903 = vmatpush1.bf16.msra.mxu0 %v5872
    %5904 = vmatprep.subr.bf16.mxu0 0
    %5905 = vmatpush2.bf16.msra.mxu0 0
    %5906 = vmatprep.subr.bf16.mxu0 0
    %5907 = vmatpush2.bf16.msra.mxu0 0
    %5908 = vmatprep.subr.bf16.mxu0 0
    %5909 = vmatpush2.bf16.msra.mxu0 0
    %5910 = vmatprep.subr.bf16.mxu0 0
    %5911 = vmatpush2.bf16.msra.mxu0 0
    %5912 = vmatprep.subr.bf16.mxu0 0
    %5913 = vmatpush2.bf16.msra.mxu0 0
    %5914 = vmatprep.subr.bf16.mxu0 0
    %5915 = vmatpush2.bf16.msra.mxu0 0
    %5916 = vmatprep.subr.bf16.mxu0 0
    %5917 = vmatpush2.bf16.msra.mxu0 0
    %5918 = vmatprep.subr.bf16.mxu0 0
    %5919 = vmatpush2.bf16.msra.mxu0 0
    %5920 = vmatprep.mubr.bf16.mxu0 0
    %5921 = vmatmul.mubr.bf16.gmra.mxu0 %v5822
    %v5922 = vpop.f32.mrf.mxu0
    %v5923 = vadd.f32 %v5839, %v5922
    %v5924 = vpop.f32.mrf.mxu0
    %v5925 = vpop.f32.mrf.mxu0
    %v5926 = vpop.f32.mrf.mxu0
    %5927 = vdwg.mxu0
    %5928 = vst [vmem:[%s9] sm:$0x1] %v5923
    // Predicated region
    $region70: #{cnn_batch_forward.1} parent=1 // pred_check
      _
    $region71: #{cnn_batch_forward.1} parent=1 // pred_check_branch
      %5930 = sbr.rel (0) target = $region73
    $region72: #{cnn_batch_forward.1} parent=1 // pred_region
      _
    $region73: #{cnn_batch_forward.1} parent=1 // pred_fallthru
      _
    // Predicated region
    $region74: #{cnn_batch_forward.1} parent=1 // pred_check
      _
    $region75: #{cnn_batch_forward.1} parent=1 // pred_check_branch
      %5932 = sbr.rel (0) target = $region77
    $region76: #{cnn_batch_forward.1} parent=1 // pred_region
      _
    $region77: #{cnn_batch_forward.1} parent=1 // pred_fallthru
      _
    %5933 = vsyncpa [#allocation3], 1
    %5934 = vsyncpa [#allocation5], 1
    %5935 = vsyncpa [#allocation8], 1
    %5936 = vsyncpa [#allocation11], 1
    %5937 = vsyncpa [#allocation14], 1

</llo_original>
